<compile_context>
chip_gen: v6e
topology: v6e:2x2x1
jax: 0.10.0
libtpu: 0.0.40
codegen_flags: <defaults>
</compile_context>

<pallas_src>
import functools
import math

import jax
import jax.numpy as jnp
from jax.experimental import pallas as pl
from jax.experimental.pallas import tpu as pltpu

LN_EPS = 1e-5
MASK_NEG = -1e30          # finite sentinel instead of -inf (avoids 0/0 NaN)
MXU_DTYPE = jnp.bfloat16  # MXU operand dtype; f32 accumulation everywhere


# --------------------------------------------------------------------------
# In-kernel helpers (pure functions on VMEM-resident values)
# --------------------------------------------------------------------------
def _layer_norm(y, g, b, eps):
    mean = jnp.mean(y, axis=-1, keepdims=True)
    var = jnp.mean(jnp.square(y - mean), axis=-1, keepdims=True)
    return (y - mean) * jax.lax.rsqrt(var + eps) * g + b


def _mha_block(q, k, v, mask, wq, wk, wv, wo, g, b, attn_ref,
               num_head, d_k, d_v, inv_temper, eps):
    """Fused multi-head attention + out-proj + residual + LayerNorm.

    q: (N, D) float32, k/v: (M, D) float32, mask: (N, M) int32 or None.
    wq/wk: (D, H*d_k), wv: (D, H*d_v), wo: (H*d_v, D)  (head-major fused).
    attn_ref: output ref block of shape (H, 1, N, M).
    Returns the (N, D) float32 block output.
    """
    cd = MXU_DTYPE
    # All heads in one projection matmul each (MXU N-dim = H*d_k, not d_k).
    qh = jnp.dot(q.astype(cd), wq.astype(cd), preferred_element_type=jnp.float32)
    kh = jnp.dot(k.astype(cd), wk.astype(cd), preferred_element_type=jnp.float32)
    vh = jnp.dot(v.astype(cd), wv.astype(cd), preferred_element_type=jnp.float32)

    ctx = []
    for h in range(num_head):                      # static unroll, H small
        qs = qh[:, h * d_k:(h + 1) * d_k]          # (N, d_k) static lane slice
        ks = kh[:, h * d_k:(h + 1) * d_k]          # (M, d_k)
        vs = vh[:, h * d_v:(h + 1) * d_v]          # (M, d_v)

        # scores = (q_h @ k_h^T) / temper   (contract d_k of both operands)
        s = jax.lax.dot_general(
            qs.astype(cd), ks.astype(cd),
            dimension_numbers=(((1,), (1,)), ((), ())),
            preferred_element_type=jnp.float32) * inv_temper

        if mask is not None:
            s = jnp.where(mask > 0, MASK_NEG, s)

        m = jnp.max(s, axis=-1, keepdims=True)
        p = jnp.exp(s - m)
        denom = jnp.sum(p, axis=-1, keepdims=True)
        attn = p * pl.reciprocal(denom, approx=True)   # EUP, frees VALU

        attn_ref[h, 0] = attn                           # (N, M) per head
        ctx.append(jnp.dot(attn.astype(cd), vs.astype(cd),
                           preferred_element_type=jnp.float32))

    # Head-major concat -> (N, H*d_v), exactly torch.cat(torch.split(...), -1)
    ctx_cat = jnp.concatenate(ctx, axis=-1)
    y = jnp.dot(ctx_cat.astype(cd), wo.astype(cd),
                preferred_element_type=jnp.float32) + q      # residual = q
    return _layer_norm(y, g, b, eps)


# --------------------------------------------------------------------------
# Single fused decoder-layer kernel (per batch element)
# --------------------------------------------------------------------------
def decoder_kernel(*refs, has_mask, num_head, d_k, d_v, inv_temper, eps):
    i = 0
    dec_ref = refs[i]; i += 1
    enc_ref = refs[i]; i += 1
    mask_ref = None
    if has_mask:
        mask_ref = refs[i]; i += 1
    (sa_wq, sa_wk, sa_wv, sa_wo, sa_g, sa_b,
     ca_wq, ca_wk, ca_wv, ca_wo, ca_g, ca_b,
     f_w1, f_b1, f_w2, f_b2, f_g, f_bln) = refs[i:i + 18]
    out_ref, sattn_ref, cattn_ref = refs[i + 18:i + 21]

    x = dec_ref[0]        # (N, D)
    enc = enc_ref[0]      # (M, D)
    mask = mask_ref[0] if has_mask else None

    # ---- self attention (+ out-proj + residual + LN) ----
    sa_out = _mha_block(x, x, x, mask,
                        sa_wq[...], sa_wk[...], sa_wv[...], sa_wo[...],
                        sa_g[...], sa_b[...], sattn_ref,
                        num_head, d_k, d_v, inv_temper, eps)

    # ---- cross attention (+ out-proj + residual + LN), never masked ----
    ca_out = _mha_block(sa_out, enc, enc, None,
                        ca_wq[...], ca_wk[...], ca_wv[...], ca_wo[...],
                        ca_g[...], ca_b[...], cattn_ref,
                        num_head, d_k, d_v, inv_temper, eps)

    # ---- position-wise FFN (1x1 conv == per-token linear) + residual + LN --
    cd = MXU_DTYPE
    h = jnp.dot(ca_out.astype(cd), f_w1[...].astype(cd),
                preferred_element_type=jnp.float32) + f_b1[...]
    h = jnp.maximum(h, 0.0)
    y = jnp.dot(h.astype(cd), f_w2[...].astype(cd),
                preferred_element_type=jnp.float32) + f_b2[...]
    y = y + ca_out
    out_ref[0] = _layer_norm(y, f_g[...], f_bln[...], eps)


# --------------------------------------------------------------------------
# Host wrapper
# --------------------------------------------------------------------------
def _fuse_mha_params(p):
    """torch (H, D, d_k) per-head weights -> fused (D, H*d_k) head-major."""
    H, D, d_k = p["w_q"].shape
    d_v = p["w_v"].shape[-1]
    return {
        "w_q": p["w_q"].transpose(1, 0, 2).reshape(D, H * d_k),
        "w_k": p["w_k"].transpose(1, 0, 2).reshape(D, H * d_k),
        "w_v": p["w_v"].transpose(1, 0, 2).reshape(D, H * d_v),
        "w_out": p["w_out"],            # already stored as (H*d_v, D)
        "ln_g": p["ln_g"],
        "ln_b": p["ln_b"],
    }


def decoder_layer(dec_input, enc_output, params, self_attn_mask=None):
    """dec_input: (B, N, D), enc_output: (B, M, D).

    Returns (out (B,N,D), self_attn (H*B,N,N), cross_attn (H*B,N,M))."""
    B, N, D = dec_input.shape
    _, M, _ = enc_output.shape
    H = params["self_attn"]["w_q"].shape[0]
    d_k = D // H
    d_v = d_k

    sa = _fuse_mha_params(params["self_attn"])
    ca = _fuse_mha_params(params["cross_attn"])
    ff = params["ffn"]

    has_mask = self_attn_mask is not None

    inputs = [dec_input, enc_output]
    in_specs = [
        pl.BlockSpec((1, N, D), lambda b: (b, 0, 0)),      # dec (q/k/v of self)
        pl.BlockSpec((1, M, D), lambda b: (b, 0, 0)),      # enc (k/v of cross)
    ]
    if has_mask:
        inputs.append(self_attn_mask.astype(jnp.int32))
        in_specs.append(pl.BlockSpec((1, N, N), lambda b: (b, 0, 0)))

    weight_arrays = [
        sa["w_q"], sa["w_k"], sa["w_v"], sa["w_out"], sa["ln_g"], sa["ln_b"],
        ca["w_q"], ca["w_k"], ca["w_v"], ca["w_out"], ca["ln_g"], ca["ln_b"],
        ff["w1"], ff["b1"], ff["w2"], ff["b2"], ff["ln_g"], ff["ln_b"],
    ]
    inputs += weight_arrays
    # Constant index_maps -> weights are DMA'd into VMEM once, not per step.
    in_specs += [pl.BlockSpec(w.shape, lambda b: (0, 0)) for w in weight_arrays]

    kernel = functools.partial(
        decoder_kernel, has_mask=has_mask, num_head=H, d_k=d_k, d_v=d_v,
        inv_temper=1.0 / math.sqrt(D),   # sqrt(d_model), matching the module
        eps=LN_EPS)

    out, sattn, cattn = pl.pallas_call(
        kernel,
        out_shape=(
            jax.ShapeDtypeStruct((B, N, D), jnp.float32),
            jax.ShapeDtypeStruct((H, B, N, N), jnp.float32),   # self-attn wts
            jax.ShapeDtypeStruct((H, B, N, M), jnp.float32),   # cross-attn wts
        ),
        grid=(B,),
        in_specs=in_specs,
        out_specs=[
            pl.BlockSpec((1, N, D), lambda b: (b, 0, 0)),
            pl.BlockSpec((H, 1, N, N), lambda b: (0, b, 0, 0)),
            pl.BlockSpec((H, 1, N, M), lambda b: (0, b, 0, 0)),
        ],
        compiler_params=pltpu.CompilerParams(
            dimension_semantics=("parallel",)),
    )(*inputs)

    # (H, B, N, M) -> (H*B, N, M): contiguous reshape, no transpose needed.
    return out, sattn.reshape(H * B, N, N), cattn.reshape(H * B, N, M)


# --------------------------------------------------------------------------
# Deterministic parameter init (xavier-normal style; synthetic, not a ckpt)
# --------------------------------------------------------------------------
def xavier_normal(key, shape, fan_in, fan_out):
    std = math.sqrt(2.0 / (fan_in + fan_out))
    return std * jax.random.normal(key, shape, dtype=jnp.float32)


def init_mha_params(key, d_model, num_head):
    d_k = d_model // num_head
    d_v = d_k
    ks = jax.random.split(key, 4)
    return {
        # torch fan convention for 3-D: fan_in = size(1)*rf, fan_out = size(0)*rf
        "w_q": xavier_normal(ks[0], (num_head, d_model, d_k),
                             d_model * d_k, num_head * d_k),
        "w_k": xavier_normal(ks[1], (num_head, d_model, d_k),
                             d_model * d_k, num_head * d_k),
        "w_v": xavier_normal(ks[2], (num_head, d_model, d_v),
                             d_model * d_v, num_head * d_v),
        # stored already transposed: (num_head*d_v, d_model); out = x @ w_out
        "w_out": xavier_normal(ks[3], (num_head * d_v, d_model),
                               num_head * d_v, d_model),
        "ln_g": jnp.ones((1, d_model), jnp.float32),
        "ln_b": jnp.zeros((1, d_model), jnp.float32),
    }


def init_ffn_params(key, d_model, d_ff):
    ks = jax.random.split(key, 2)
    return {
        # Conv1d(kernel=1) == per-token linear; stored transposed: x @ w1 + b1
        "w1": xavier_normal(ks[0], (d_model, d_ff), d_model, d_ff),
        "b1": jnp.zeros((1, d_ff), jnp.float32),
        "w2": xavier_normal(ks[1], (d_ff, d_model), d_ff, d_model),
        "b2": jnp.zeros((1, d_model), jnp.float32),
        "ln_g": jnp.ones((1, d_model), jnp.float32),
        "ln_b": jnp.zeros((1, d_model), jnp.float32),
    }


def init_decoder_params(key, d_model, num_head, d_ff):
    k1, k2, k3 = jax.random.split(key, 3)
    return {
        "self_attn": init_mha_params(k1, d_model, num_head),
        "cross_attn": init_mha_params(k2, d_model, num_head),
        "ffn": init_ffn_params(k3, d_model, d_ff),
    }


# TODO(synk): dropout (p=0.1) is omitted (identity); attention-weight dropout
#             is inherently non-deterministic and not part of eval semantics.

if __name__ == "__main__":
    d_model, num_head, d_ff = 32, 4, 64
    batch, n_dec, n_enc = 2, 8, 16

    key = jax.random.PRNGKey(0)
    k_params, k_dec, k_enc = jax.random.split(key, 3)

    params = init_decoder_params(k_params, d_model, num_head, d_ff)
    dec_input = jax.random.normal(k_dec, (batch, n_dec, d_model), jnp.float32)
    enc_output = jax.random.normal(k_enc, (batch, n_enc, d_model), jnp.float32)

    # Causal self-attention mask (1 = masked), exercising both the masked
    # (self-attn) and unmasked (cross-attn) kernel paths.
    causal = jnp.triu(jnp.ones((n_dec, n_dec), jnp.int32), k=1)
    self_attn_mask = jnp.tile(causal[None], (batch, 1, 1))

    out, dec_self_attn, cross_attn = decoder_layer(
        dec_input, enc_output, params, self_attn_mask=self_attn_mask)
    jax.block_until_ready((out, dec_self_attn, cross_attn))

    assert out.shape == (batch, n_dec, d_model)
    assert dec_self_attn.shape == (num_head * batch, n_dec, n_dec)
    assert cross_attn.shape == (num_head * batch, n_dec, n_enc)
    assert bool(jnp.isfinite(out).all())
    # Softmax rows sum to ~1 (approx reciprocal in the kernel -> loose tol).
    assert bool(jnp.allclose(dec_self_attn.sum(-1), 1.0, atol=2e-2))
    assert bool(jnp.allclose(cross_attn.sum(-1), 1.0, atol=2e-2))
    print("KERNEL_OK")
</pallas_src>

<mosaic_0001>
module attributes {stable_mosaic.version = 11 : i64} {
  func.func @decoder_kernel(%arg0: i32, %arg1: memref<1x8x32xf32, #tpu.memory_space<vmem>>, %arg2: memref<1x16x32xf32, #tpu.memory_space<vmem>>, %arg3: memref<1x8x8xi32, #tpu.memory_space<vmem>>, %arg4: memref<32x32xf32, #tpu.memory_space<vmem>>, %arg5: memref<32x32xf32, #tpu.memory_space<vmem>>, %arg6: memref<32x32xf32, #tpu.memory_space<vmem>>, %arg7: memref<32x32xf32, #tpu.memory_space<vmem>>, %arg8: memref<1x32xf32, #tpu.memory_space<vmem>>, %arg9: memref<1x32xf32, #tpu.memory_space<vmem>>, %arg10: memref<32x32xf32, #tpu.memory_space<vmem>>, %arg11: memref<32x32xf32, #tpu.memory_space<vmem>>, %arg12: memref<32x32xf32, #tpu.memory_space<vmem>>, %arg13: memref<32x32xf32, #tpu.memory_space<vmem>>, %arg14: memref<1x32xf32, #tpu.memory_space<vmem>>, %arg15: memref<1x32xf32, #tpu.memory_space<vmem>>, %arg16: memref<32x64xf32, #tpu.memory_space<vmem>>, %arg17: memref<1x64xf32, #tpu.memory_space<vmem>>, %arg18: memref<64x32xf32, #tpu.memory_space<vmem>>, %arg19: memref<1x32xf32, #tpu.memory_space<vmem>>, %arg20: memref<1x32xf32, #tpu.memory_space<vmem>>, %arg21: memref<1x32xf32, #tpu.memory_space<vmem>>, %arg22: memref<1x8x32xf32, #tpu.memory_space<vmem>>, %arg23: memref<4x1x8x8xf32, #tpu.memory_space<vmem>>, %arg24: memref<4x1x8x16xf32, #tpu.memory_space<vmem>>) attributes {dimension_semantics = [#tpu.dimension_semantics<parallel>], iteration_bounds = array<i64: 2>, scalar_prefetch = 0 : i64, scratch_operands = 0 : i64, tpu.core_type = #tpu.core_type<tc>, window_params = [{transform_indices = @transform_0, window_bounds = array<i64: 1, 8, 32>}, {transform_indices = @transform_1, window_bounds = array<i64: 1, 16, 32>}, {transform_indices = @transform_2, window_bounds = array<i64: 1, 8, 8>}, {pipeline_mode = #tpu.pipeline_mode<synchronous>, transform_indices = @transform_3, window_bounds = array<i64: 32, 32>}, {pipeline_mode = #tpu.pipeline_mode<synchronous>, transform_indices = @transform_4, window_bounds = array<i64: 32, 32>}, {pipeline_mode = #tpu.pipeline_mode<synchronous>, transform_indices = @transform_5, window_bounds = array<i64: 32, 32>}, {pipeline_mode = #tpu.pipeline_mode<synchronous>, transform_indices = @transform_6, window_bounds = array<i64: 32, 32>}, {pipeline_mode = #tpu.pipeline_mode<synchronous>, transform_indices = @transform_7, window_bounds = array<i64: 1, 32>}, {pipeline_mode = #tpu.pipeline_mode<synchronous>, transform_indices = @transform_8, window_bounds = array<i64: 1, 32>}, {pipeline_mode = #tpu.pipeline_mode<synchronous>, transform_indices = @transform_9, window_bounds = array<i64: 32, 32>}, {pipeline_mode = #tpu.pipeline_mode<synchronous>, transform_indices = @transform_10, window_bounds = array<i64: 32, 32>}, {pipeline_mode = #tpu.pipeline_mode<synchronous>, transform_indices = @transform_11, window_bounds = array<i64: 32, 32>}, {pipeline_mode = #tpu.pipeline_mode<synchronous>, transform_indices = @transform_12, window_bounds = array<i64: 32, 32>}, {pipeline_mode = #tpu.pipeline_mode<synchronous>, transform_indices = @transform_13, window_bounds = array<i64: 1, 32>}, {pipeline_mode = #tpu.pipeline_mode<synchronous>, transform_indices = @transform_14, window_bounds = array<i64: 1, 32>}, {pipeline_mode = #tpu.pipeline_mode<synchronous>, transform_indices = @transform_15, window_bounds = array<i64: 32, 64>}, {pipeline_mode = #tpu.pipeline_mode<synchronous>, transform_indices = @transform_16, window_bounds = array<i64: 1, 64>}, {pipeline_mode = #tpu.pipeline_mode<synchronous>, transform_indices = @transform_17, window_bounds = array<i64: 64, 32>}, {pipeline_mode = #tpu.pipeline_mode<synchronous>, transform_indices = @transform_18, window_bounds = array<i64: 1, 32>}, {pipeline_mode = #tpu.pipeline_mode<synchronous>, transform_indices = @transform_19, window_bounds = array<i64: 1, 32>}, {pipeline_mode = #tpu.pipeline_mode<synchronous>, transform_indices = @transform_20, window_bounds = array<i64: 1, 32>}, {transform_indices = @transform_21, window_bounds = array<i64: 1, 8, 32>}, {transform_indices = @transform_22, window_bounds = array<i64: 4, 1, 8, 8>}, {transform_indices = @transform_23, window_bounds = array<i64: 4, 1, 8, 16>}]} {
    %c0 = arith.constant 0 : index
    %c0_0 = arith.constant 0 : index
    %c0_1 = arith.constant 0 : index
    %0 = vector.load %arg1[%c0, %c0_0, %c0_1] : memref<1x8x32xf32, #tpu.memory_space<vmem>>, vector<1x8x32xf32>
    %1 = vector.shape_cast %0 : vector<1x8x32xf32> to vector<8x32xf32>
    %c0_2 = arith.constant 0 : index
    %c0_3 = arith.constant 0 : index
    %c0_4 = arith.constant 0 : index
    %2 = vector.load %arg2[%c0_2, %c0_3, %c0_4] : memref<1x16x32xf32, #tpu.memory_space<vmem>>, vector<1x16x32xf32>
    %3 = vector.shape_cast %2 : vector<1x16x32xf32> to vector<16x32xf32>
    %c0_5 = arith.constant 0 : index
    %c0_6 = arith.constant 0 : index
    %c0_7 = arith.constant 0 : index
    %4 = vector.load %arg3[%c0_5, %c0_6, %c0_7] : memref<1x8x8xi32, #tpu.memory_space<vmem>>, vector<1x8x8xi32>
    %5 = vector.shape_cast %4 : vector<1x8x8xi32> to vector<8x8xi32>
    %c0_8 = arith.constant 0 : index
    %c0_9 = arith.constant 0 : index
    %6 = vector.load %arg4[%c0_8, %c0_9] : memref<32x32xf32, #tpu.memory_space<vmem>>, vector<32x32xf32>
    %c0_10 = arith.constant 0 : index
    %c0_11 = arith.constant 0 : index
    %7 = vector.load %arg5[%c0_10, %c0_11] : memref<32x32xf32, #tpu.memory_space<vmem>>, vector<32x32xf32>
    %c0_12 = arith.constant 0 : index
    %c0_13 = arith.constant 0 : index
    %8 = vector.load %arg6[%c0_12, %c0_13] : memref<32x32xf32, #tpu.memory_space<vmem>>, vector<32x32xf32>
    %c0_14 = arith.constant 0 : index
    %c0_15 = arith.constant 0 : index
    %9 = vector.load %arg7[%c0_14, %c0_15] : memref<32x32xf32, #tpu.memory_space<vmem>>, vector<32x32xf32>
    %c0_16 = arith.constant 0 : index
    %c0_17 = arith.constant 0 : index
    %10 = vector.load %arg8[%c0_16, %c0_17] : memref<1x32xf32, #tpu.memory_space<vmem>>, vector<1x32xf32>
    %c0_18 = arith.constant 0 : index
    %c0_19 = arith.constant 0 : index
    %11 = vector.load %arg9[%c0_18, %c0_19] : memref<1x32xf32, #tpu.memory_space<vmem>>, vector<1x32xf32>
    %12 = arith.truncf %1 : vector<8x32xf32> to vector<8x32xbf16>
    %13 = arith.truncf %6 : vector<32x32xf32> to vector<32x32xbf16>
    %cst = arith.constant dense<0.000000e+00> : vector<8x32xf32>
    %14 = tpu.matmul %12, %13, %cst {dimension_numbers = #tpu.dot_dimension_numbers<[1], [0], [0], [1], [0, 0, 1, 1], [], []>} : vector<8x32xbf16>, vector<32x32xbf16>, vector<8x32xf32> -> vector<8x32xf32>
    %15 = arith.truncf %1 : vector<8x32xf32> to vector<8x32xbf16>
    %16 = arith.truncf %7 : vector<32x32xf32> to vector<32x32xbf16>
    %cst_20 = arith.constant dense<0.000000e+00> : vector<8x32xf32>
    %17 = tpu.matmul %15, %16, %cst_20 {dimension_numbers = #tpu.dot_dimension_numbers<[1], [0], [0], [1], [0, 0, 1, 1], [], []>} : vector<8x32xbf16>, vector<32x32xbf16>, vector<8x32xf32> -> vector<8x32xf32>
    %18 = arith.truncf %1 : vector<8x32xf32> to vector<8x32xbf16>
    %19 = arith.truncf %8 : vector<32x32xf32> to vector<32x32xbf16>
    %cst_21 = arith.constant dense<0.000000e+00> : vector<8x32xf32>
    %20 = tpu.matmul %18, %19, %cst_21 {dimension_numbers = #tpu.dot_dimension_numbers<[1], [0], [0], [1], [0, 0, 1, 1], [], []>} : vector<8x32xbf16>, vector<32x32xbf16>, vector<8x32xf32> -> vector<8x32xf32>
    %21 = vector.extract_strided_slice %14 {offsets = [0, 0], sizes = [8, 8], strides = [1, 1]} : vector<8x32xf32> to vector<8x8xf32>
    %22 = vector.extract_strided_slice %17 {offsets = [0, 0], sizes = [8, 8], strides = [1, 1]} : vector<8x32xf32> to vector<8x8xf32>
    %23 = vector.extract_strided_slice %20 {offsets = [0, 0], sizes = [8, 8], strides = [1, 1]} : vector<8x32xf32> to vector<8x8xf32>
    %24 = arith.truncf %21 : vector<8x8xf32> to vector<8x8xbf16>
    %25 = arith.truncf %22 : vector<8x8xf32> to vector<8x8xbf16>
    %cst_22 = arith.constant dense<0.000000e+00> : vector<8x8xf32>
    %26 = tpu.matmul %24, %25, %cst_22 {dimension_numbers = #tpu.dot_dimension_numbers<[1], [1], [0], [0], [0, 0, 1, 0], [], []>} : vector<8x8xbf16>, vector<8x8xbf16>, vector<8x8xf32> -> vector<8x8xf32>
    %cst_23 = arith.constant 0.176776692 : f32
    %27 = vector.broadcast %cst_23 : f32 to vector<8x8xf32>
    %28 = arith.mulf %26, %27 : vector<8x8xf32>
    %c0_i32 = arith.constant 0 : i32
    %29 = vector.broadcast %c0_i32 : i32 to vector<8x8xi32>
    %30 = arith.cmpi sgt, %5, %29 : vector<8x8xi32>
    %cst_24 = arith.constant -1.000000e+30 : f32
    %31 = vector.broadcast %cst_24 : f32 to vector<8x8xf32>
    %32 = arith.select %30, %31, %28 : vector<8x8xi1>, vector<8x8xf32>
    %cst_25 = arith.constant dense<0xFF800000> : vector<8xf32>
    %33 = vector.multi_reduction <maximumf>, %32, %cst_25 [1] : vector<8x8xf32> to vector<8xf32>
    %34 = vector.shape_cast %33 : vector<8xf32> to vector<8x1xf32>
    %35 = vector.broadcast %34 : vector<8x1xf32> to vector<8x8xf32>
    %36 = arith.subf %32, %35 : vector<8x8xf32>
    %37 = math.exp %36 : vector<8x8xf32>
    %cst_26 = arith.constant dense<0.000000e+00> : vector<8xf32>
    %38 = vector.multi_reduction <add>, %37, %cst_26 [1] : vector<8x8xf32> to vector<8xf32>
    %39 = vector.shape_cast %38 : vector<8xf32> to vector<8x1xf32>
    %40 = tpu.reciprocal %39 {approx = true} : vector<8x1xf32> -> vector<8x1xf32>
    %41 = vector.broadcast %40 : vector<8x1xf32> to vector<8x8xf32>
    %42 = arith.mulf %37, %41 : vector<8x8xf32>
    %c0_27 = arith.constant 0 : index
    %c0_28 = arith.constant 0 : index
    %c0_29 = arith.constant 0 : index
    %c0_30 = arith.constant 0 : index
    %43 = vector.load %arg23[%c0_27, %c0_28, %c0_29, %c0_30] : memref<4x1x8x8xf32, #tpu.memory_space<vmem>>, vector<1x1x8x8xf32>
    %44 = vector.shape_cast %43 : vector<1x1x8x8xf32> to vector<8x8xf32>
    %45 = vector.shape_cast %42 : vector<8x8xf32> to vector<1x1x8x8xf32>
    tpu.vector_store %arg23[%c0_27, %c0_28, %c0_29, %c0_30], %45 {strides = array<i32>} : memref<4x1x8x8xf32, #tpu.memory_space<vmem>>, vector<1x1x8x8xf32>,
    %46 = arith.truncf %42 : vector<8x8xf32> to vector<8x8xbf16>
    %47 = arith.truncf %23 : vector<8x8xf32> to vector<8x8xbf16>
    %cst_31 = arith.constant dense<0.000000e+00> : vector<8x8xf32>
    %48 = tpu.matmul %46, %47, %cst_31 {dimension_numbers = #tpu.dot_dimension_numbers<[1], [0], [0], [1], [0, 0, 1, 1], [], []>} : vector<8x8xbf16>, vector<8x8xbf16>, vector<8x8xf32> -> vector<8x8xf32>
    %49 = vector.extract_strided_slice %14 {offsets = [0, 8], sizes = [8, 8], strides = [1, 1]} : vector<8x32xf32> to vector<8x8xf32>
    %50 = vector.extract_strided_slice %17 {offsets = [0, 8], sizes = [8, 8], strides = [1, 1]} : vector<8x32xf32> to vector<8x8xf32>
    %51 = vector.extract_strided_slice %20 {offsets = [0, 8], sizes = [8, 8], strides = [1, 1]} : vector<8x32xf32> to vector<8x8xf32>
    %52 = arith.truncf %49 : vector<8x8xf32> to vector<8x8xbf16>
    %53 = arith.truncf %50 : vector<8x8xf32> to vector<8x8xbf16>
    %cst_32 = arith.constant dense<0.000000e+00> : vector<8x8xf32>
    %54 = tpu.matmul %52, %53, %cst_32 {dimension_numbers = #tpu.dot_dimension_numbers<[1], [1], [0], [0], [0, 0, 1, 0], [], []>} : vector<8x8xbf16>, vector<8x8xbf16>, vector<8x8xf32> -> vector<8x8xf32>
    %cst_33 = arith.constant 0.176776692 : f32
    %55 = vector.broadcast %cst_33 : f32 to vector<8x8xf32>
    %56 = arith.mulf %54, %55 : vector<8x8xf32>
    %c0_i32_34 = arith.constant 0 : i32
    %57 = vector.broadcast %c0_i32_34 : i32 to vector<8x8xi32>
    %58 = arith.cmpi sgt, %5, %57 : vector<8x8xi32>
    %cst_35 = arith.constant -1.000000e+30 : f32
    %59 = vector.broadcast %cst_35 : f32 to vector<8x8xf32>
    %60 = arith.select %58, %59, %56 : vector<8x8xi1>, vector<8x8xf32>
    %cst_36 = arith.constant dense<0xFF800000> : vector<8xf32>
    %61 = vector.multi_reduction <maximumf>, %60, %cst_36 [1] : vector<8x8xf32> to vector<8xf32>
    %62 = vector.shape_cast %61 : vector<8xf32> to vector<8x1xf32>
    %63 = vector.broadcast %62 : vector<8x1xf32> to vector<8x8xf32>
    %64 = arith.subf %60, %63 : vector<8x8xf32>
    %65 = math.exp %64 : vector<8x8xf32>
    %cst_37 = arith.constant dense<0.000000e+00> : vector<8xf32>
    %66 = vector.multi_reduction <add>, %65, %cst_37 [1] : vector<8x8xf32> to vector<8xf32>
    %67 = vector.shape_cast %66 : vector<8xf32> to vector<8x1xf32>
    %68 = tpu.reciprocal %67 {approx = true} : vector<8x1xf32> -> vector<8x1xf32>
    %69 = vector.broadcast %68 : vector<8x1xf32> to vector<8x8xf32>
    %70 = arith.mulf %65, %69 : vector<8x8xf32>
    %c1 = arith.constant 1 : index
    %c0_38 = arith.constant 0 : index
    %c0_39 = arith.constant 0 : index
    %c0_40 = arith.constant 0 : index
    %71 = vector.load %arg23[%c1, %c0_38, %c0_39, %c0_40] : memref<4x1x8x8xf32, #tpu.memory_space<vmem>>, vector<1x1x8x8xf32>
    %72 = vector.shape_cast %71 : vector<1x1x8x8xf32> to vector<8x8xf32>
    %73 = vector.shape_cast %70 : vector<8x8xf32> to vector<1x1x8x8xf32>
    tpu.vector_store %arg23[%c1, %c0_38, %c0_39, %c0_40], %73 {strides = array<i32>} : memref<4x1x8x8xf32, #tpu.memory_space<vmem>>, vector<1x1x8x8xf32>,
    %74 = arith.truncf %70 : vector<8x8xf32> to vector<8x8xbf16>
    %75 = arith.truncf %51 : vector<8x8xf32> to vector<8x8xbf16>
    %cst_41 = arith.constant dense<0.000000e+00> : vector<8x8xf32>
    %76 = tpu.matmul %74, %75, %cst_41 {dimension_numbers = #tpu.dot_dimension_numbers<[1], [0], [0], [1], [0, 0, 1, 1], [], []>} : vector<8x8xbf16>, vector<8x8xbf16>, vector<8x8xf32> -> vector<8x8xf32>
    %77 = vector.extract_strided_slice %14 {offsets = [0, 16], sizes = [8, 8], strides = [1, 1]} : vector<8x32xf32> to vector<8x8xf32>
    %78 = vector.extract_strided_slice %17 {offsets = [0, 16], sizes = [8, 8], strides = [1, 1]} : vector<8x32xf32> to vector<8x8xf32>
    %79 = vector.extract_strided_slice %20 {offsets = [0, 16], sizes = [8, 8], strides = [1, 1]} : vector<8x32xf32> to vector<8x8xf32>
    %80 = arith.truncf %77 : vector<8x8xf32> to vector<8x8xbf16>
    %81 = arith.truncf %78 : vector<8x8xf32> to vector<8x8xbf16>
    %cst_42 = arith.constant dense<0.000000e+00> : vector<8x8xf32>
    %82 = tpu.matmul %80, %81, %cst_42 {dimension_numbers = #tpu.dot_dimension_numbers<[1], [1], [0], [0], [0, 0, 1, 0], [], []>} : vector<8x8xbf16>, vector<8x8xbf16>, vector<8x8xf32> -> vector<8x8xf32>
    %cst_43 = arith.constant 0.176776692 : f32
    %83 = vector.broadcast %cst_43 : f32 to vector<8x8xf32>
    %84 = arith.mulf %82, %83 : vector<8x8xf32>
    %c0_i32_44 = arith.constant 0 : i32
    %85 = vector.broadcast %c0_i32_44 : i32 to vector<8x8xi32>
    %86 = arith.cmpi sgt, %5, %85 : vector<8x8xi32>
    %cst_45 = arith.constant -1.000000e+30 : f32
    %87 = vector.broadcast %cst_45 : f32 to vector<8x8xf32>
    %88 = arith.select %86, %87, %84 : vector<8x8xi1>, vector<8x8xf32>
    %cst_46 = arith.constant dense<0xFF800000> : vector<8xf32>
    %89 = vector.multi_reduction <maximumf>, %88, %cst_46 [1] : vector<8x8xf32> to vector<8xf32>
    %90 = vector.shape_cast %89 : vector<8xf32> to vector<8x1xf32>
    %91 = vector.broadcast %90 : vector<8x1xf32> to vector<8x8xf32>
    %92 = arith.subf %88, %91 : vector<8x8xf32>
    %93 = math.exp %92 : vector<8x8xf32>
    %cst_47 = arith.constant dense<0.000000e+00> : vector<8xf32>
    %94 = vector.multi_reduction <add>, %93, %cst_47 [1] : vector<8x8xf32> to vector<8xf32>
    %95 = vector.shape_cast %94 : vector<8xf32> to vector<8x1xf32>
    %96 = tpu.reciprocal %95 {approx = true} : vector<8x1xf32> -> vector<8x1xf32>
    %97 = vector.broadcast %96 : vector<8x1xf32> to vector<8x8xf32>
    %98 = arith.mulf %93, %97 : vector<8x8xf32>
    %c2 = arith.constant 2 : index
    %c0_48 = arith.constant 0 : index
    %c0_49 = arith.constant 0 : index
    %c0_50 = arith.constant 0 : index
    %99 = vector.load %arg23[%c2, %c0_48, %c0_49, %c0_50] : memref<4x1x8x8xf32, #tpu.memory_space<vmem>>, vector<1x1x8x8xf32>
    %100 = vector.shape_cast %99 : vector<1x1x8x8xf32> to vector<8x8xf32>
    %101 = vector.shape_cast %98 : vector<8x8xf32> to vector<1x1x8x8xf32>
    tpu.vector_store %arg23[%c2, %c0_48, %c0_49, %c0_50], %101 {strides = array<i32>} : memref<4x1x8x8xf32, #tpu.memory_space<vmem>>, vector<1x1x8x8xf32>,
    %102 = arith.truncf %98 : vector<8x8xf32> to vector<8x8xbf16>
    %103 = arith.truncf %79 : vector<8x8xf32> to vector<8x8xbf16>
    %cst_51 = arith.constant dense<0.000000e+00> : vector<8x8xf32>
    %104 = tpu.matmul %102, %103, %cst_51 {dimension_numbers = #tpu.dot_dimension_numbers<[1], [0], [0], [1], [0, 0, 1, 1], [], []>} : vector<8x8xbf16>, vector<8x8xbf16>, vector<8x8xf32> -> vector<8x8xf32>
    %105 = vector.extract_strided_slice %14 {offsets = [0, 24], sizes = [8, 8], strides = [1, 1]} : vector<8x32xf32> to vector<8x8xf32>
    %106 = vector.extract_strided_slice %17 {offsets = [0, 24], sizes = [8, 8], strides = [1, 1]} : vector<8x32xf32> to vector<8x8xf32>
    %107 = vector.extract_strided_slice %20 {offsets = [0, 24], sizes = [8, 8], strides = [1, 1]} : vector<8x32xf32> to vector<8x8xf32>
    %108 = arith.truncf %105 : vector<8x8xf32> to vector<8x8xbf16>
    %109 = arith.truncf %106 : vector<8x8xf32> to vector<8x8xbf16>
    %cst_52 = arith.constant dense<0.000000e+00> : vector<8x8xf32>
    %110 = tpu.matmul %108, %109, %cst_52 {dimension_numbers = #tpu.dot_dimension_numbers<[1], [1], [0], [0], [0, 0, 1, 0], [], []>} : vector<8x8xbf16>, vector<8x8xbf16>, vector<8x8xf32> -> vector<8x8xf32>
    %cst_53 = arith.constant 0.176776692 : f32
    %111 = vector.broadcast %cst_53 : f32 to vector<8x8xf32>
    %112 = arith.mulf %110, %111 : vector<8x8xf32>
    %c0_i32_54 = arith.constant 0 : i32
    %113 = vector.broadcast %c0_i32_54 : i32 to vector<8x8xi32>
    %114 = arith.cmpi sgt, %5, %113 : vector<8x8xi32>
    %cst_55 = arith.constant -1.000000e+30 : f32
    %115 = vector.broadcast %cst_55 : f32 to vector<8x8xf32>
    %116 = arith.select %114, %115, %112 : vector<8x8xi1>, vector<8x8xf32>
    %cst_56 = arith.constant dense<0xFF800000> : vector<8xf32>
    %117 = vector.multi_reduction <maximumf>, %116, %cst_56 [1] : vector<8x8xf32> to vector<8xf32>
    %118 = vector.shape_cast %117 : vector<8xf32> to vector<8x1xf32>
    %119 = vector.broadcast %118 : vector<8x1xf32> to vector<8x8xf32>
    %120 = arith.subf %116, %119 : vector<8x8xf32>
    %121 = math.exp %120 : vector<8x8xf32>
    %cst_57 = arith.constant dense<0.000000e+00> : vector<8xf32>
    %122 = vector.multi_reduction <add>, %121, %cst_57 [1] : vector<8x8xf32> to vector<8xf32>
    %123 = vector.shape_cast %122 : vector<8xf32> to vector<8x1xf32>
    %124 = tpu.reciprocal %123 {approx = true} : vector<8x1xf32> -> vector<8x1xf32>
    %125 = vector.broadcast %124 : vector<8x1xf32> to vector<8x8xf32>
    %126 = arith.mulf %121, %125 : vector<8x8xf32>
    %c3 = arith.constant 3 : index
    %c0_58 = arith.constant 0 : index
    %c0_59 = arith.constant 0 : index
    %c0_60 = arith.constant 0 : index
    %127 = vector.load %arg23[%c3, %c0_58, %c0_59, %c0_60] : memref<4x1x8x8xf32, #tpu.memory_space<vmem>>, vector<1x1x8x8xf32>
    %128 = vector.shape_cast %127 : vector<1x1x8x8xf32> to vector<8x8xf32>
    %129 = vector.shape_cast %126 : vector<8x8xf32> to vector<1x1x8x8xf32>
    tpu.vector_store %arg23[%c3, %c0_58, %c0_59, %c0_60], %129 {strides = array<i32>} : memref<4x1x8x8xf32, #tpu.memory_space<vmem>>, vector<1x1x8x8xf32>,
    %130 = arith.truncf %126 : vector<8x8xf32> to vector<8x8xbf16>
    %131 = arith.truncf %107 : vector<8x8xf32> to vector<8x8xbf16>
    %cst_61 = arith.constant dense<0.000000e+00> : vector<8x8xf32>
    %132 = tpu.matmul %130, %131, %cst_61 {dimension_numbers = #tpu.dot_dimension_numbers<[1], [0], [0], [1], [0, 0, 1, 1], [], []>} : vector<8x8xbf16>, vector<8x8xbf16>, vector<8x8xf32> -> vector<8x8xf32>
    %133 = tpu.concatenate %48, %76, %104, %132 in 1 : vector<8x8xf32>, vector<8x8xf32>, vector<8x8xf32>, vector<8x8xf32> -> vector<8x32xf32>
    %134 = arith.truncf %133 : vector<8x32xf32> to vector<8x32xbf16>
    %135 = arith.truncf %9 : vector<32x32xf32> to vector<32x32xbf16>
    %cst_62 = arith.constant dense<0.000000e+00> : vector<8x32xf32>
    %136 = tpu.matmul %134, %135, %cst_62 {dimension_numbers = #tpu.dot_dimension_numbers<[1], [0], [0], [1], [0, 0, 1, 1], [], []>} : vector<8x32xbf16>, vector<32x32xbf16>, vector<8x32xf32> -> vector<8x32xf32>
    %137 = arith.addf %136, %1 : vector<8x32xf32>
    %cst_63 = arith.constant dense<0.000000e+00> : vector<8xf32>
    %138 = vector.multi_reduction <add>, %137, %cst_63 [1] : vector<8x32xf32> to vector<8xf32>
    %139 = vector.shape_cast %138 : vector<8xf32> to vector<8x1xf32>
    %cst_64 = arith.constant 3.200000e+01 : f32
    %140 = vector.broadcast %cst_64 : f32 to vector<8x1xf32>
    %141 = arith.divf %139, %140 : vector<8x1xf32>
    %142 = vector.broadcast %141 : vector<8x1xf32> to vector<8x32xf32>
    %143 = arith.subf %137, %142 : vector<8x32xf32>
    %144 = arith.mulf %143, %143 : vector<8x32xf32>
    %cst_65 = arith.constant dense<0.000000e+00> : vector<8xf32>
    %145 = vector.multi_reduction <add>, %144, %cst_65 [1] : vector<8x32xf32> to vector<8xf32>
    %146 = vector.shape_cast %145 : vector<8xf32> to vector<8x1xf32>
    %cst_66 = arith.constant 3.200000e+01 : f32
    %147 = vector.broadcast %cst_66 : f32 to vector<8x1xf32>
    %148 = arith.divf %146, %147 : vector<8x1xf32>
    %149 = vector.broadcast %141 : vector<8x1xf32> to vector<8x32xf32>
    %150 = arith.subf %137, %149 : vector<8x32xf32>
    %cst_67 = arith.constant 9.99999974E-6 : f32
    %151 = vector.broadcast %cst_67 : f32 to vector<8x1xf32>
    %152 = arith.addf %148, %151 : vector<8x1xf32>
    %153 = math.rsqrt %152 : vector<8x1xf32>
    %154 = vector.broadcast %153 : vector<8x1xf32> to vector<8x32xf32>
    %155 = arith.mulf %150, %154 : vector<8x32xf32>
    %156 = vector.broadcast %10 : vector<1x32xf32> to vector<8x32xf32>
    %157 = arith.mulf %155, %156 : vector<8x32xf32>
    %158 = vector.broadcast %11 : vector<1x32xf32> to vector<8x32xf32>
    %159 = arith.addf %157, %158 : vector<8x32xf32>
    %c0_68 = arith.constant 0 : index
    %c0_69 = arith.constant 0 : index
    %160 = vector.load %arg10[%c0_68, %c0_69] : memref<32x32xf32, #tpu.memory_space<vmem>>, vector<32x32xf32>
    %c0_70 = arith.constant 0 : index
    %c0_71 = arith.constant 0 : index
    %161 = vector.load %arg11[%c0_70, %c0_71] : memref<32x32xf32, #tpu.memory_space<vmem>>, vector<32x32xf32>
    %c0_72 = arith.constant 0 : index
    %c0_73 = arith.constant 0 : index
    %162 = vector.load %arg12[%c0_72, %c0_73] : memref<32x32xf32, #tpu.memory_space<vmem>>, vector<32x32xf32>
    %c0_74 = arith.constant 0 : index
    %c0_75 = arith.constant 0 : index
    %163 = vector.load %arg13[%c0_74, %c0_75] : memref<32x32xf32, #tpu.memory_space<vmem>>, vector<32x32xf32>
    %c0_76 = arith.constant 0 : index
    %c0_77 = arith.constant 0 : index
    %164 = vector.load %arg14[%c0_76, %c0_77] : memref<1x32xf32, #tpu.memory_space<vmem>>, vector<1x32xf32>
    %c0_78 = arith.constant 0 : index
    %c0_79 = arith.constant 0 : index
    %165 = vector.load %arg15[%c0_78, %c0_79] : memref<1x32xf32, #tpu.memory_space<vmem>>, vector<1x32xf32>
    %166 = arith.truncf %159 : vector<8x32xf32> to vector<8x32xbf16>
    %167 = arith.truncf %160 : vector<32x32xf32> to vector<32x32xbf16>
    %cst_80 = arith.constant dense<0.000000e+00> : vector<8x32xf32>
    %168 = tpu.matmul %166, %167, %cst_80 {dimension_numbers = #tpu.dot_dimension_numbers<[1], [0], [0], [1], [0, 0, 1, 1], [], []>} : vector<8x32xbf16>, vector<32x32xbf16>, vector<8x32xf32> -> vector<8x32xf32>
    %169 = arith.truncf %3 : vector<16x32xf32> to vector<16x32xbf16>
    %170 = arith.truncf %161 : vector<32x32xf32> to vector<32x32xbf16>
    %cst_81 = arith.constant dense<0.000000e+00> : vector<16x32xf32>
    %171 = tpu.matmul %169, %170, %cst_81 {dimension_numbers = #tpu.dot_dimension_numbers<[1], [0], [0], [1], [0, 0, 1, 1], [], []>} : vector<16x32xbf16>, vector<32x32xbf16>, vector<16x32xf32> -> vector<16x32xf32>
    %172 = arith.truncf %3 : vector<16x32xf32> to vector<16x32xbf16>
    %173 = arith.truncf %162 : vector<32x32xf32> to vector<32x32xbf16>
    %cst_82 = arith.constant dense<0.000000e+00> : vector<16x32xf32>
    %174 = tpu.matmul %172, %173, %cst_82 {dimension_numbers = #tpu.dot_dimension_numbers<[1], [0], [0], [1], [0, 0, 1, 1], [], []>} : vector<16x32xbf16>, vector<32x32xbf16>, vector<16x32xf32> -> vector<16x32xf32>
    %175 = vector.extract_strided_slice %168 {offsets = [0, 0], sizes = [8, 8], strides = [1, 1]} : vector<8x32xf32> to vector<8x8xf32>
    %176 = vector.extract_strided_slice %171 {offsets = [0, 0], sizes = [16, 8], strides = [1, 1]} : vector<16x32xf32> to vector<16x8xf32>
    %177 = vector.extract_strided_slice %174 {offsets = [0, 0], sizes = [16, 8], strides = [1, 1]} : vector<16x32xf32> to vector<16x8xf32>
    %178 = arith.truncf %175 : vector<8x8xf32> to vector<8x8xbf16>
    %179 = arith.truncf %176 : vector<16x8xf32> to vector<16x8xbf16>
    %cst_83 = arith.constant dense<0.000000e+00> : vector<8x16xf32>
    %180 = tpu.matmul %178, %179, %cst_83 {dimension_numbers = #tpu.dot_dimension_numbers<[1], [1], [0], [0], [0, 0, 1, 0], [], []>} : vector<8x8xbf16>, vector<16x8xbf16>, vector<8x16xf32> -> vector<8x16xf32>
    %cst_84 = arith.constant 0.176776692 : f32
    %181 = vector.broadcast %cst_84 : f32 to vector<8x16xf32>
    %182 = arith.mulf %180, %181 : vector<8x16xf32>
    %cst_85 = arith.constant dense<0xFF800000> : vector<8xf32>
    %183 = vector.multi_reduction <maximumf>, %182, %cst_85 [1] : vector<8x16xf32> to vector<8xf32>
    %184 = vector.shape_cast %183 : vector<8xf32> to vector<8x1xf32>
    %185 = vector.broadcast %184 : vector<8x1xf32> to vector<8x16xf32>
    %186 = arith.subf %182, %185 : vector<8x16xf32>
    %187 = math.exp %186 : vector<8x16xf32>
    %cst_86 = arith.constant dense<0.000000e+00> : vector<8xf32>
    %188 = vector.multi_reduction <add>, %187, %cst_86 [1] : vector<8x16xf32> to vector<8xf32>
    %189 = vector.shape_cast %188 : vector<8xf32> to vector<8x1xf32>
    %190 = tpu.reciprocal %189 {approx = true} : vector<8x1xf32> -> vector<8x1xf32>
    %191 = vector.broadcast %190 : vector<8x1xf32> to vector<8x16xf32>
    %192 = arith.mulf %187, %191 : vector<8x16xf32>
    %c0_87 = arith.constant 0 : index
    %c0_88 = arith.constant 0 : index
    %c0_89 = arith.constant 0 : index
    %c0_90 = arith.constant 0 : index
    %193 = vector.load %arg24[%c0_87, %c0_88, %c0_89, %c0_90] : memref<4x1x8x16xf32, #tpu.memory_space<vmem>>, vector<1x1x8x16xf32>
    %194 = vector.shape_cast %193 : vector<1x1x8x16xf32> to vector<8x16xf32>
    %195 = vector.shape_cast %192 : vector<8x16xf32> to vector<1x1x8x16xf32>
    tpu.vector_store %arg24[%c0_87, %c0_88, %c0_89, %c0_90], %195 {strides = array<i32>} : memref<4x1x8x16xf32, #tpu.memory_space<vmem>>, vector<1x1x8x16xf32>,
    %196 = arith.truncf %192 : vector<8x16xf32> to vector<8x16xbf16>
    %197 = arith.truncf %177 : vector<16x8xf32> to vector<16x8xbf16>
    %cst_91 = arith.constant dense<0.000000e+00> : vector<8x8xf32>
    %198 = tpu.matmul %196, %197, %cst_91 {dimension_numbers = #tpu.dot_dimension_numbers<[1], [0], [0], [1], [0, 0, 1, 1], [], []>} : vector<8x16xbf16>, vector<16x8xbf16>, vector<8x8xf32> -> vector<8x8xf32>
    %199 = vector.extract_strided_slice %168 {offsets = [0, 8], sizes = [8, 8], strides = [1, 1]} : vector<8x32xf32> to vector<8x8xf32>
    %200 = vector.extract_strided_slice %171 {offsets = [0, 8], sizes = [16, 8], strides = [1, 1]} : vector<16x32xf32> to vector<16x8xf32>
    %201 = vector.extract_strided_slice %174 {offsets = [0, 8], sizes = [16, 8], strides = [1, 1]} : vector<16x32xf32> to vector<16x8xf32>
    %202 = arith.truncf %199 : vector<8x8xf32> to vector<8x8xbf16>
    %203 = arith.truncf %200 : vector<16x8xf32> to vector<16x8xbf16>
    %cst_92 = arith.constant dense<0.000000e+00> : vector<8x16xf32>
    %204 = tpu.matmul %202, %203, %cst_92 {dimension_numbers = #tpu.dot_dimension_numbers<[1], [1], [0], [0], [0, 0, 1, 0], [], []>} : vector<8x8xbf16>, vector<16x8xbf16>, vector<8x16xf32> -> vector<8x16xf32>
    %cst_93 = arith.constant 0.176776692 : f32
    %205 = vector.broadcast %cst_93 : f32 to vector<8x16xf32>
    %206 = arith.mulf %204, %205 : vector<8x16xf32>
    %cst_94 = arith.constant dense<0xFF800000> : vector<8xf32>
    %207 = vector.multi_reduction <maximumf>, %206, %cst_94 [1] : vector<8x16xf32> to vector<8xf32>
    %208 = vector.shape_cast %207 : vector<8xf32> to vector<8x1xf32>
    %209 = vector.broadcast %208 : vector<8x1xf32> to vector<8x16xf32>
    %210 = arith.subf %206, %209 : vector<8x16xf32>
    %211 = math.exp %210 : vector<8x16xf32>
    %cst_95 = arith.constant dense<0.000000e+00> : vector<8xf32>
    %212 = vector.multi_reduction <add>, %211, %cst_95 [1] : vector<8x16xf32> to vector<8xf32>
    %213 = vector.shape_cast %212 : vector<8xf32> to vector<8x1xf32>
    %214 = tpu.reciprocal %213 {approx = true} : vector<8x1xf32> -> vector<8x1xf32>
    %215 = vector.broadcast %214 : vector<8x1xf32> to vector<8x16xf32>
    %216 = arith.mulf %211, %215 : vector<8x16xf32>
    %c1_96 = arith.constant 1 : index
    %c0_97 = arith.constant 0 : index
    %c0_98 = arith.constant 0 : index
    %c0_99 = arith.constant 0 : index
    %217 = vector.load %arg24[%c1_96, %c0_97, %c0_98, %c0_99] : memref<4x1x8x16xf32, #tpu.memory_space<vmem>>, vector<1x1x8x16xf32>
    %218 = vector.shape_cast %217 : vector<1x1x8x16xf32> to vector<8x16xf32>
    %219 = vector.shape_cast %216 : vector<8x16xf32> to vector<1x1x8x16xf32>
    tpu.vector_store %arg24[%c1_96, %c0_97, %c0_98, %c0_99], %219 {strides = array<i32>} : memref<4x1x8x16xf32, #tpu.memory_space<vmem>>, vector<1x1x8x16xf32>,
    %220 = arith.truncf %216 : vector<8x16xf32> to vector<8x16xbf16>
    %221 = arith.truncf %201 : vector<16x8xf32> to vector<16x8xbf16>
    %cst_100 = arith.constant dense<0.000000e+00> : vector<8x8xf32>
    %222 = tpu.matmul %220, %221, %cst_100 {dimension_numbers = #tpu.dot_dimension_numbers<[1], [0], [0], [1], [0, 0, 1, 1], [], []>} : vector<8x16xbf16>, vector<16x8xbf16>, vector<8x8xf32> -> vector<8x8xf32>
    %223 = vector.extract_strided_slice %168 {offsets = [0, 16], sizes = [8, 8], strides = [1, 1]} : vector<8x32xf32> to vector<8x8xf32>
    %224 = vector.extract_strided_slice %171 {offsets = [0, 16], sizes = [16, 8], strides = [1, 1]} : vector<16x32xf32> to vector<16x8xf32>
    %225 = vector.extract_strided_slice %174 {offsets = [0, 16], sizes = [16, 8], strides = [1, 1]} : vector<16x32xf32> to vector<16x8xf32>
    %226 = arith.truncf %223 : vector<8x8xf32> to vector<8x8xbf16>
    %227 = arith.truncf %224 : vector<16x8xf32> to vector<16x8xbf16>
    %cst_101 = arith.constant dense<0.000000e+00> : vector<8x16xf32>
    %228 = tpu.matmul %226, %227, %cst_101 {dimension_numbers = #tpu.dot_dimension_numbers<[1], [1], [0], [0], [0, 0, 1, 0], [], []>} : vector<8x8xbf16>, vector<16x8xbf16>, vector<8x16xf32> -> vector<8x16xf32>
    %cst_102 = arith.constant 0.176776692 : f32
    %229 = vector.broadcast %cst_102 : f32 to vector<8x16xf32>
    %230 = arith.mulf %228, %229 : vector<8x16xf32>
    %cst_103 = arith.constant dense<0xFF800000> : vector<8xf32>
    %231 = vector.multi_reduction <maximumf>, %230, %cst_103 [1] : vector<8x16xf32> to vector<8xf32>
    %232 = vector.shape_cast %231 : vector<8xf32> to vector<8x1xf32>
    %233 = vector.broadcast %232 : vector<8x1xf32> to vector<8x16xf32>
    %234 = arith.subf %230, %233 : vector<8x16xf32>
    %235 = math.exp %234 : vector<8x16xf32>
    %cst_104 = arith.constant dense<0.000000e+00> : vector<8xf32>
    %236 = vector.multi_reduction <add>, %235, %cst_104 [1] : vector<8x16xf32> to vector<8xf32>
    %237 = vector.shape_cast %236 : vector<8xf32> to vector<8x1xf32>
    %238 = tpu.reciprocal %237 {approx = true} : vector<8x1xf32> -> vector<8x1xf32>
    %239 = vector.broadcast %238 : vector<8x1xf32> to vector<8x16xf32>
    %240 = arith.mulf %235, %239 : vector<8x16xf32>
    %c2_105 = arith.constant 2 : index
    %c0_106 = arith.constant 0 : index
    %c0_107 = arith.constant 0 : index
    %c0_108 = arith.constant 0 : index
    %241 = vector.load %arg24[%c2_105, %c0_106, %c0_107, %c0_108] : memref<4x1x8x16xf32, #tpu.memory_space<vmem>>, vector<1x1x8x16xf32>
    %242 = vector.shape_cast %241 : vector<1x1x8x16xf32> to vector<8x16xf32>
    %243 = vector.shape_cast %240 : vector<8x16xf32> to vector<1x1x8x16xf32>
    tpu.vector_store %arg24[%c2_105, %c0_106, %c0_107, %c0_108], %243 {strides = array<i32>} : memref<4x1x8x16xf32, #tpu.memory_space<vmem>>, vector<1x1x8x16xf32>,
    %244 = arith.truncf %240 : vector<8x16xf32> to vector<8x16xbf16>
    %245 = arith.truncf %225 : vector<16x8xf32> to vector<16x8xbf16>
    %cst_109 = arith.constant dense<0.000000e+00> : vector<8x8xf32>
    %246 = tpu.matmul %244, %245, %cst_109 {dimension_numbers = #tpu.dot_dimension_numbers<[1], [0], [0], [1], [0, 0, 1, 1], [], []>} : vector<8x16xbf16>, vector<16x8xbf16>, vector<8x8xf32> -> vector<8x8xf32>
    %247 = vector.extract_strided_slice %168 {offsets = [0, 24], sizes = [8, 8], strides = [1, 1]} : vector<8x32xf32> to vector<8x8xf32>
    %248 = vector.extract_strided_slice %171 {offsets = [0, 24], sizes = [16, 8], strides = [1, 1]} : vector<16x32xf32> to vector<16x8xf32>
    %249 = vector.extract_strided_slice %174 {offsets = [0, 24], sizes = [16, 8], strides = [1, 1]} : vector<16x32xf32> to vector<16x8xf32>
    %250 = arith.truncf %247 : vector<8x8xf32> to vector<8x8xbf16>
    %251 = arith.truncf %248 : vector<16x8xf32> to vector<16x8xbf16>
    %cst_110 = arith.constant dense<0.000000e+00> : vector<8x16xf32>
    %252 = tpu.matmul %250, %251, %cst_110 {dimension_numbers = #tpu.dot_dimension_numbers<[1], [1], [0], [0], [0, 0, 1, 0], [], []>} : vector<8x8xbf16>, vector<16x8xbf16>, vector<8x16xf32> -> vector<8x16xf32>
    %cst_111 = arith.constant 0.176776692 : f32
    %253 = vector.broadcast %cst_111 : f32 to vector<8x16xf32>
    %254 = arith.mulf %252, %253 : vector<8x16xf32>
    %cst_112 = arith.constant dense<0xFF800000> : vector<8xf32>
    %255 = vector.multi_reduction <maximumf>, %254, %cst_112 [1] : vector<8x16xf32> to vector<8xf32>
    %256 = vector.shape_cast %255 : vector<8xf32> to vector<8x1xf32>
    %257 = vector.broadcast %256 : vector<8x1xf32> to vector<8x16xf32>
    %258 = arith.subf %254, %257 : vector<8x16xf32>
    %259 = math.exp %258 : vector<8x16xf32>
    %cst_113 = arith.constant dense<0.000000e+00> : vector<8xf32>
    %260 = vector.multi_reduction <add>, %259, %cst_113 [1] : vector<8x16xf32> to vector<8xf32>
    %261 = vector.shape_cast %260 : vector<8xf32> to vector<8x1xf32>
    %262 = tpu.reciprocal %261 {approx = true} : vector<8x1xf32> -> vector<8x1xf32>
    %263 = vector.broadcast %262 : vector<8x1xf32> to vector<8x16xf32>
    %264 = arith.mulf %259, %263 : vector<8x16xf32>
    %c3_114 = arith.constant 3 : index
    %c0_115 = arith.constant 0 : index
    %c0_116 = arith.constant 0 : index
    %c0_117 = arith.constant 0 : index
    %265 = vector.load %arg24[%c3_114, %c0_115, %c0_116, %c0_117] : memref<4x1x8x16xf32, #tpu.memory_space<vmem>>, vector<1x1x8x16xf32>
    %266 = vector.shape_cast %265 : vector<1x1x8x16xf32> to vector<8x16xf32>
    %267 = vector.shape_cast %264 : vector<8x16xf32> to vector<1x1x8x16xf32>
    tpu.vector_store %arg24[%c3_114, %c0_115, %c0_116, %c0_117], %267 {strides = array<i32>} : memref<4x1x8x16xf32, #tpu.memory_space<vmem>>, vector<1x1x8x16xf32>,
    %268 = arith.truncf %264 : vector<8x16xf32> to vector<8x16xbf16>
    %269 = arith.truncf %249 : vector<16x8xf32> to vector<16x8xbf16>
    %cst_118 = arith.constant dense<0.000000e+00> : vector<8x8xf32>
    %270 = tpu.matmul %268, %269, %cst_118 {dimension_numbers = #tpu.dot_dimension_numbers<[1], [0], [0], [1], [0, 0, 1, 1], [], []>} : vector<8x16xbf16>, vector<16x8xbf16>, vector<8x8xf32> -> vector<8x8xf32>
    %271 = tpu.concatenate %198, %222, %246, %270 in 1 : vector<8x8xf32>, vector<8x8xf32>, vector<8x8xf32>, vector<8x8xf32> -> vector<8x32xf32>
    %272 = arith.truncf %271 : vector<8x32xf32> to vector<8x32xbf16>
    %273 = arith.truncf %163 : vector<32x32xf32> to vector<32x32xbf16>
    %cst_119 = arith.constant dense<0.000000e+00> : vector<8x32xf32>
    %274 = tpu.matmul %272, %273, %cst_119 {dimension_numbers = #tpu.dot_dimension_numbers<[1], [0], [0], [1], [0, 0, 1, 1], [], []>} : vector<8x32xbf16>, vector<32x32xbf16>, vector<8x32xf32> -> vector<8x32xf32>
    %275 = arith.addf %274, %159 : vector<8x32xf32>
    %cst_120 = arith.constant dense<0.000000e+00> : vector<8xf32>
    %276 = vector.multi_reduction <add>, %275, %cst_120 [1] : vector<8x32xf32> to vector<8xf32>
    %277 = vector.shape_cast %276 : vector<8xf32> to vector<8x1xf32>
    %cst_121 = arith.constant 3.200000e+01 : f32
    %278 = vector.broadcast %cst_121 : f32 to vector<8x1xf32>
    %279 = arith.divf %277, %278 : vector<8x1xf32>
    %280 = vector.broadcast %279 : vector<8x1xf32> to vector<8x32xf32>
    %281 = arith.subf %275, %280 : vector<8x32xf32>
    %282 = arith.mulf %281, %281 : vector<8x32xf32>
    %cst_122 = arith.constant dense<0.000000e+00> : vector<8xf32>
    %283 = vector.multi_reduction <add>, %282, %cst_122 [1] : vector<8x32xf32> to vector<8xf32>
    %284 = vector.shape_cast %283 : vector<8xf32> to vector<8x1xf32>
    %cst_123 = arith.constant 3.200000e+01 : f32
    %285 = vector.broadcast %cst_123 : f32 to vector<8x1xf32>
    %286 = arith.divf %284, %285 : vector<8x1xf32>
    %287 = vector.broadcast %279 : vector<8x1xf32> to vector<8x32xf32>
    %288 = arith.subf %275, %287 : vector<8x32xf32>
    %cst_124 = arith.constant 9.99999974E-6 : f32
    %289 = vector.broadcast %cst_124 : f32 to vector<8x1xf32>
    %290 = arith.addf %286, %289 : vector<8x1xf32>
    %291 = math.rsqrt %290 : vector<8x1xf32>
    %292 = vector.broadcast %291 : vector<8x1xf32> to vector<8x32xf32>
    %293 = arith.mulf %288, %292 : vector<8x32xf32>
    %294 = vector.broadcast %164 : vector<1x32xf32> to vector<8x32xf32>
    %295 = arith.mulf %293, %294 : vector<8x32xf32>
    %296 = vector.broadcast %165 : vector<1x32xf32> to vector<8x32xf32>
    %297 = arith.addf %295, %296 : vector<8x32xf32>
    %298 = arith.truncf %297 : vector<8x32xf32> to vector<8x32xbf16>
    %c0_125 = arith.constant 0 : index
    %c0_126 = arith.constant 0 : index
    %299 = vector.load %arg16[%c0_125, %c0_126] : memref<32x64xf32, #tpu.memory_space<vmem>>, vector<32x64xf32>
    %300 = arith.truncf %299 : vector<32x64xf32> to vector<32x64xbf16>
    %cst_127 = arith.constant dense<0.000000e+00> : vector<8x64xf32>
    %301 = tpu.matmul %298, %300, %cst_127 {dimension_numbers = #tpu.dot_dimension_numbers<[1], [0], [0], [1], [0, 0, 1, 1], [], []>} : vector<8x32xbf16>, vector<32x64xbf16>, vector<8x64xf32> -> vector<8x64xf32>
    %c0_128 = arith.constant 0 : index
    %c0_129 = arith.constant 0 : index
    %302 = vector.load %arg17[%c0_128, %c0_129] : memref<1x64xf32, #tpu.memory_space<vmem>>, vector<1x64xf32>
    %303 = vector.broadcast %302 : vector<1x64xf32> to vector<8x64xf32>
    %304 = arith.addf %301, %303 : vector<8x64xf32>
    %cst_130 = arith.constant 0.000000e+00 : f32
    %305 = vector.broadcast %cst_130 : f32 to vector<8x64xf32>
    %306 = arith.maximumf %304, %305 : vector<8x64xf32>
    %307 = arith.truncf %306 : vector<8x64xf32> to vector<8x64xbf16>
    %c0_131 = arith.constant 0 : index
    %c0_132 = arith.constant 0 : index
    %308 = vector.load %arg18[%c0_131, %c0_132] : memref<64x32xf32, #tpu.memory_space<vmem>>, vector<64x32xf32>
    %309 = arith.truncf %308 : vector<64x32xf32> to vector<64x32xbf16>
    %cst_133 = arith.constant dense<0.000000e+00> : vector<8x32xf32>
    %310 = tpu.matmul %307, %309, %cst_133 {dimension_numbers = #tpu.dot_dimension_numbers<[1], [0], [0], [1], [0, 0, 1, 1], [], []>} : vector<8x64xbf16>, vector<64x32xbf16>, vector<8x32xf32> -> vector<8x32xf32>
    %c0_134 = arith.constant 0 : index
    %c0_135 = arith.constant 0 : index
    %311 = vector.load %arg19[%c0_134, %c0_135] : memref<1x32xf32, #tpu.memory_space<vmem>>, vector<1x32xf32>
    %312 = vector.broadcast %311 : vector<1x32xf32> to vector<8x32xf32>
    %313 = arith.addf %310, %312 : vector<8x32xf32>
    %314 = arith.addf %313, %297 : vector<8x32xf32>
    %c0_136 = arith.constant 0 : index
    %c0_137 = arith.constant 0 : index
    %315 = vector.load %arg20[%c0_136, %c0_137] : memref<1x32xf32, #tpu.memory_space<vmem>>, vector<1x32xf32>
    %c0_138 = arith.constant 0 : index
    %c0_139 = arith.constant 0 : index
    %316 = vector.load %arg21[%c0_138, %c0_139] : memref<1x32xf32, #tpu.memory_space<vmem>>, vector<1x32xf32>
    %cst_140 = arith.constant dense<0.000000e+00> : vector<8xf32>
    %317 = vector.multi_reduction <add>, %314, %cst_140 [1] : vector<8x32xf32> to vector<8xf32>
    %318 = vector.shape_cast %317 : vector<8xf32> to vector<8x1xf32>
    %cst_141 = arith.constant 3.200000e+01 : f32
    %319 = vector.broadcast %cst_141 : f32 to vector<8x1xf32>
    %320 = arith.divf %318, %319 : vector<8x1xf32>
    %321 = vector.broadcast %320 : vector<8x1xf32> to vector<8x32xf32>
    %322 = arith.subf %314, %321 : vector<8x32xf32>
    %323 = arith.mulf %322, %322 : vector<8x32xf32>
    %cst_142 = arith.constant dense<0.000000e+00> : vector<8xf32>
    %324 = vector.multi_reduction <add>, %323, %cst_142 [1] : vector<8x32xf32> to vector<8xf32>
    %325 = vector.shape_cast %324 : vector<8xf32> to vector<8x1xf32>
    %cst_143 = arith.constant 3.200000e+01 : f32
    %326 = vector.broadcast %cst_143 : f32 to vector<8x1xf32>
    %327 = arith.divf %325, %326 : vector<8x1xf32>
    %328 = vector.broadcast %320 : vector<8x1xf32> to vector<8x32xf32>
    %329 = arith.subf %314, %328 : vector<8x32xf32>
    %cst_144 = arith.constant 9.99999974E-6 : f32
    %330 = vector.broadcast %cst_144 : f32 to vector<8x1xf32>
    %331 = arith.addf %327, %330 : vector<8x1xf32>
    %332 = math.rsqrt %331 : vector<8x1xf32>
    %333 = vector.broadcast %332 : vector<8x1xf32> to vector<8x32xf32>
    %334 = arith.mulf %329, %333 : vector<8x32xf32>
    %335 = vector.broadcast %315 : vector<1x32xf32> to vector<8x32xf32>
    %336 = arith.mulf %334, %335 : vector<8x32xf32>
    %337 = vector.broadcast %316 : vector<1x32xf32> to vector<8x32xf32>
    %338 = arith.addf %336, %337 : vector<8x32xf32>
    %c0_145 = arith.constant 0 : index
    %c0_146 = arith.constant 0 : index
    %c0_147 = arith.constant 0 : index
    %339 = vector.load %arg22[%c0_145, %c0_146, %c0_147] : memref<1x8x32xf32, #tpu.memory_space<vmem>>, vector<1x8x32xf32>
    %340 = vector.shape_cast %339 : vector<1x8x32xf32> to vector<8x32xf32>
    %341 = vector.shape_cast %338 : vector<8x32xf32> to vector<1x8x32xf32>
    tpu.vector_store %arg22[%c0_145, %c0_146, %c0_147], %341 {strides = array<i32>} : memref<1x8x32xf32, #tpu.memory_space<vmem>>, vector<1x8x32xf32>,
    return
  }
  func.func @transform_0(%arg0: i32) -> (i32, i32, i32) {
    %c0_i32 = arith.constant 0 : i32
    %c0_i32_0 = arith.constant 0 : i32
    %c0_i32_1 = arith.constant 0 : i32
    return %arg0, %c0_i32, %c0_i32_0 : i32, i32, i32
  }
  func.func @transform_1(%arg0: i32) -> (i32, i32, i32) {
    %c0_i32 = arith.constant 0 : i32
    %c0_i32_0 = arith.constant 0 : i32
    %c0_i32_1 = arith.constant 0 : i32
    return %arg0, %c0_i32, %c0_i32_0 : i32, i32, i32
  }
  func.func @transform_2(%arg0: i32) -> (i32, i32, i32) {
    %c0_i32 = arith.constant 0 : i32
    %c0_i32_0 = arith.constant 0 : i32
    %c0_i32_1 = arith.constant 0 : i32
    return %arg0, %c0_i32, %c0_i32_0 : i32, i32, i32
  }
  func.func @transform_3(%arg0: i32) -> (i32, i32) {
    %c0_i32 = arith.constant 0 : i32
    %c0_i32_0 = arith.constant 0 : i32
    %c0_i32_1 = arith.constant 0 : i32
    return %c0_i32, %c0_i32_0 : i32, i32
  }
  func.func @transform_4(%arg0: i32) -> (i32, i32) {
    %c0_i32 = arith.constant 0 : i32
    %c0_i32_0 = arith.constant 0 : i32
    %c0_i32_1 = arith.constant 0 : i32
    return %c0_i32, %c0_i32_0 : i32, i32
  }
  func.func @transform_5(%arg0: i32) -> (i32, i32) {
    %c0_i32 = arith.constant 0 : i32
    %c0_i32_0 = arith.constant 0 : i32
    %c0_i32_1 = arith.constant 0 : i32
    return %c0_i32, %c0_i32_0 : i32, i32
  }
  func.func @transform_6(%arg0: i32) -> (i32, i32) {
    %c0_i32 = arith.constant 0 : i32
    %c0_i32_0 = arith.constant 0 : i32
    %c0_i32_1 = arith.constant 0 : i32
    return %c0_i32, %c0_i32_0 : i32, i32
  }
  func.func @transform_7(%arg0: i32) -> (i32, i32) {
    %c0_i32 = arith.constant 0 : i32
    %c0_i32_0 = arith.constant 0 : i32
    %c0_i32_1 = arith.constant 0 : i32
    return %c0_i32, %c0_i32_0 : i32, i32
  }
  func.func @transform_8(%arg0: i32) -> (i32, i32) {
    %c0_i32 = arith.constant 0 : i32
    %c0_i32_0 = arith.constant 0 : i32
    %c0_i32_1 = arith.constant 0 : i32
    return %c0_i32, %c0_i32_0 : i32, i32
  }
  func.func @transform_9(%arg0: i32) -> (i32, i32) {
    %c0_i32 = arith.constant 0 : i32
    %c0_i32_0 = arith.constant 0 : i32
    %c0_i32_1 = arith.constant 0 : i32
    return %c0_i32, %c0_i32_0 : i32, i32
  }
  func.func @transform_10(%arg0: i32) -> (i32, i32) {
    %c0_i32 = arith.constant 0 : i32
    %c0_i32_0 = arith.constant 0 : i32
    %c0_i32_1 = arith.constant 0 : i32
    return %c0_i32, %c0_i32_0 : i32, i32
  }
  func.func @transform_11(%arg0: i32) -> (i32, i32) {
    %c0_i32 = arith.constant 0 : i32
    %c0_i32_0 = arith.constant 0 : i32
    %c0_i32_1 = arith.constant 0 : i32
    return %c0_i32, %c0_i32_0 : i32, i32
  }
  func.func @transform_12(%arg0: i32) -> (i32, i32) {
    %c0_i32 = arith.constant 0 : i32
    %c0_i32_0 = arith.constant 0 : i32
    %c0_i32_1 = arith.constant 0 : i32
    return %c0_i32, %c0_i32_0 : i32, i32
  }
  func.func @transform_13(%arg0: i32) -> (i32, i32) {
    %c0_i32 = arith.constant 0 : i32
    %c0_i32_0 = arith.constant 0 : i32
    %c0_i32_1 = arith.constant 0 : i32
    return %c0_i32, %c0_i32_0 : i32, i32
  }
  func.func @transform_14(%arg0: i32) -> (i32, i32) {
    %c0_i32 = arith.constant 0 : i32
    %c0_i32_0 = arith.constant 0 : i32
    %c0_i32_1 = arith.constant 0 : i32
    return %c0_i32, %c0_i32_0 : i32, i32
  }
  func.func @transform_15(%arg0: i32) -> (i32, i32) {
    %c0_i32 = arith.constant 0 : i32
    %c0_i32_0 = arith.constant 0 : i32
    %c0_i32_1 = arith.constant 0 : i32
    return %c0_i32, %c0_i32_0 : i32, i32
  }
  func.func @transform_16(%arg0: i32) -> (i32, i32) {
    %c0_i32 = arith.constant 0 : i32
    %c0_i32_0 = arith.constant 0 : i32
    %c0_i32_1 = arith.constant 0 : i32
    return %c0_i32, %c0_i32_0 : i32, i32
  }
  func.func @transform_17(%arg0: i32) -> (i32, i32) {
    %c0_i32 = arith.constant 0 : i32
    %c0_i32_0 = arith.constant 0 : i32
    %c0_i32_1 = arith.constant 0 : i32
    return %c0_i32, %c0_i32_0 : i32, i32
  }
  func.func @transform_18(%arg0: i32) -> (i32, i32) {
    %c0_i32 = arith.constant 0 : i32
    %c0_i32_0 = arith.constant 0 : i32
    %c0_i32_1 = arith.constant 0 : i32
    return %c0_i32, %c0_i32_0 : i32, i32
  }
  func.func @transform_19(%arg0: i32) -> (i32, i32) {
    %c0_i32 = arith.constant 0 : i32
    %c0_i32_0 = arith.constant 0 : i32
    %c0_i32_1 = arith.constant 0 : i32
    return %c0_i32, %c0_i32_0 : i32, i32
  }
  func.func @transform_20(%arg0: i32) -> (i32, i32) {
    %c0_i32 = arith.constant 0 : i32
    %c0_i32_0 = arith.constant 0 : i32
    %c0_i32_1 = arith.constant 0 : i32
    return %c0_i32, %c0_i32_0 : i32, i32
  }
  func.func @transform_21(%arg0: i32) -> (i32, i32, i32) {
    %c0_i32 = arith.constant 0 : i32
    %c0_i32_0 = arith.constant 0 : i32
    %c0_i32_1 = arith.constant 0 : i32
    return %arg0, %c0_i32, %c0_i32_0 : i32, i32, i32
  }
  func.func @transform_22(%arg0: i32) -> (i32, i32, i32, i32) {
    %c0_i32 = arith.constant 0 : i32
    %c0_i32_0 = arith.constant 0 : i32
    %c0_i32_1 = arith.constant 0 : i32
    %c0_i32_2 = arith.constant 0 : i32
    return %c0_i32, %arg0, %c0_i32_0, %c0_i32_1 : i32, i32, i32, i32
  }
  func.func @transform_23(%arg0: i32) -> (i32, i32, i32, i32) {
    %c0_i32 = arith.constant 0 : i32
    %c0_i32_0 = arith.constant 0 : i32
    %c0_i32_1 = arith.constant 0 : i32
    %c0_i32_2 = arith.constant 0 : i32
    return %c0_i32, %arg0, %c0_i32_0, %c0_i32_1 : i32, i32, i32, i32
  }
}

</mosaic_0001>

<llo_original>
// kernel: tpu_custom_call.1
$region0: #{tpu_custom_call.1}
  #allocation0 [shape = 'u32[]', space=smem, size = 0x4, offset = 0x4, fixed_abs, tag = 'smem constant byte address 0x4 - core index']
  #allocation1 [shape = 'u32[144,128]{1,0:T(1,128)}', space=vmem, size = 0x12000, scoped, tag = 'internal scratch']
  %s0 = inlined_call_operand.hbm [shape: f32[2,8,32], index: 0, kind: input, shape index: {}]
  %s1 = inlined_call_operand.vmem [shape: f32[2,16,32], index: 1, kind: input, shape index: {}]
  %s2 = inlined_call_operand.hbm [shape: s32[2,8,8], index: 2, kind: input, shape index: {}]
  %s3 = inlined_call_operand.vmem [shape: f32[32,32], index: 3, kind: input, shape index: {}]
  %s4 = inlined_call_operand.vmem [shape: f32[32,32], index: 4, kind: input, shape index: {}]
  %s5 = inlined_call_operand.hbm [shape: f32[32,32], index: 5, kind: input, shape index: {}]
  %s6 = inlined_call_operand.hbm [shape: f32[32,32], index: 6, kind: input, shape index: {}]
  %s7 = inlined_call_operand.vmem [shape: f32[1,32], index: 7, kind: input, shape index: {}]
  %s8 = inlined_call_operand.vmem [shape: f32[1,32], index: 8, kind: input, shape index: {}]
  %s9 = inlined_call_operand.hbm [shape: f32[32,32], index: 9, kind: input, shape index: {}]
  %s10 = inlined_call_operand.hbm [shape: f32[32,32], index: 10, kind: input, shape index: {}]
  %s11 = inlined_call_operand.hbm [shape: f32[32,32], index: 11, kind: input, shape index: {}]
  %s12 = inlined_call_operand.hbm [shape: f32[32,32], index: 12, kind: input, shape index: {}]
  %s13 = inlined_call_operand.vmem [shape: f32[1,32], index: 13, kind: input, shape index: {}]
  %s14 = inlined_call_operand.vmem [shape: f32[1,32], index: 14, kind: input, shape index: {}]
  %s15 = inlined_call_operand.hbm [shape: f32[32,64], index: 15, kind: input, shape index: {}]
  %s16 = inlined_call_operand.vmem [shape: f32[1,64], index: 16, kind: input, shape index: {}]
  %s17 = inlined_call_operand.vmem [shape: f32[64,32], index: 17, kind: input, shape index: {}]
  %s18 = inlined_call_operand.vmem [shape: f32[1,32], index: 18, kind: input, shape index: {}]
  %s19 = inlined_call_operand.vmem [shape: f32[1,32], index: 19, kind: input, shape index: {}]
  %s20 = inlined_call_operand.vmem [shape: f32[1,32], index: 20, kind: input, shape index: {}]
  %s21 = inlined_call_operand.hbm [shape: f32[2,8,32], index: 21, kind: output, shape index: {0}]
  %s22 = inlined_call_operand.hbm [shape: f32[4,2,8,8], index: 22, kind: output, shape index: {1}]
  %s23 = inlined_call_operand.hbm [shape: f32[4,2,8,16], index: 23, kind: output, shape index: {2}]
  %24 = xla_tuple %s21, %s22, %s23
  %s25 = sld [smem:[#allocation0]]
  $region169: #{tpu_custom_call.1} parent=0
    _
  %s27 = ssub.s32 1, %s25
  %s28 = scalar_select 0, %s27, %s25
  $region1: #{tpu_custom_call.1} parent=0
    #allocation2 [shape = 'u8[8192]{0}', space=vmem, size = 0x2000, scoped, tag = 'input window, operand 0']
    #allocation3 [shape = 's32[2]{0}', space=sflag, size = 0x8, scoped, tag = 'scoped memory for tpu_custom_call.1']
    #allocation4 [shape = 's32[2]{0}', space=sflag, size = 0x8, scoped, tag = 'scoped memory for tpu_custom_call.1']
    #allocation5 [shape = 'u8[8192]{0}', space=vmem, size = 0x2000, scoped, tag = 'input window, operand 2']
    #allocation6 [shape = 's32[2]{0}', space=sflag, size = 0x8, scoped, tag = 'scoped memory for tpu_custom_call.1']
    #allocation7 [shape = 'u8[16384]{0}', space=vmem, size = 0x4000, scoped, tag = 'input window, operand 5, single buffered']
    #allocation8 [shape = 'u8[16384]{0}', space=vmem, size = 0x4000, scoped, tag = 'input window, operand 6, single buffered']
    #allocation9 [shape = 's32[1]{0}', space=sflag, size = 0x4, scoped, tag = 'scoped memory for tpu_custom_call.1']
    #allocation10 [shape = 'u8[16384]{0}', space=vmem, size = 0x4000, scoped, tag = 'input window, operand 9, single buffered']
    #allocation11 [shape = 'u8[16384]{0}', space=vmem, size = 0x4000, scoped, tag = 'input window, operand 10, single buffered']
    #allocation12 [shape = 's32[1]{0}', space=sflag, size = 0x4, scoped, tag = 'scoped memory for tpu_custom_call.1']
    #allocation13 [shape = 'u8[16384]{0}', space=vmem, size = 0x4000, scoped, tag = 'input window, operand 11, single buffered']
    #allocation14 [shape = 'u8[16384]{0}', space=vmem, size = 0x4000, scoped, tag = 'input window, operand 12, single buffered']
    #allocation15 [shape = 's32[1]{0}', space=sflag, size = 0x4, scoped, tag = 'scoped memory for tpu_custom_call.1']
    #allocation16 [shape = 'u8[16384]{0}', space=vmem, size = 0x4000, scoped, tag = 'input window, operand 15, single buffered']
    #allocation17 [shape = 'u8[8192]{0}', space=vmem, size = 0x2000, scoped, tag = 'output window, operand 0']
    #allocation18 [shape = 'u8[32768]{0}', space=vmem, size = 0x8000, scoped, tag = 'output window, operand 1']
    #allocation19 [shape = 's32[2]{0}', space=sflag, size = 0x8, scoped, tag = 'scoped memory for tpu_custom_call.1']
    #allocation20 [shape = 'u8[32768]{0}', space=vmem, size = 0x8000, scoped, tag = 'output window, operand 2']
    %29 = vsyncpa [#allocation3], 0
    %s30 = scalar_lea.sflag [#allocation3], 1
    %31 = vsyncpa %s30, 0
    %32 = vsyncpa [#allocation6], 0
    %s33 = scalar_lea.sflag [#allocation6], 1
    %34 = vsyncpa %s33, 0
    %35 = vsyncpa [#allocation9], 0
    %36 = vsyncpa [#allocation12], 0
    %37 = vsyncpa [#allocation15], 0
    %38 = vsyncpa [#allocation4], 0
    %s39 = scalar_lea.sflag [#allocation4], 1
    %40 = vsyncpa %s39, 0
    %41 = vsyncpa [#allocation19], 0
    %s42 = scalar_lea.sflag [#allocation19], 1
    %43 = vsyncpa %s42, 0
    loop: start=0, step=1, limit=4
    $region2: #{tpu_custom_call.1} parent=1 // loop_pre_header
      _
    $region3: #{tpu_custom_call.1} parent=1 // loop_header
      %s45 = sphi 0, %s49
      %p46 = scmp.ge.s32.totalorder %s45, 4
      %s55 = sphi 0, %s57
      %s58 = sphi 0, %s55
      %s59 = sphi 0, %s58
      %s75 = sphi 0, %s59
      %s81 = sphi 0, %s83
      %s84 = sphi 0, %s81
      %s85 = sphi 0, %s84
      %s101 = sphi 0, %s85
      %s107 = sphi 0, %s109
      %s110 = sphi 0, %s107
      %s111 = sphi 0, %s110
      %s127 = sphi 0, %s111
      %s131 = sphi 0, %s131
      %s133 = sphi 0, %s131
      %s134 = sphi 0, %s133
      %s148 = sphi 0, %s134
      %s152 = sphi 0, %s152
      %s154 = sphi 0, %s152
      %s155 = sphi 0, %s154
      %s169 = sphi 0, %s155
      %s173 = sphi 0, %s173
      %s175 = sphi 0, %s173
      %s176 = sphi 0, %s175
      %s190 = sphi 0, %s176
      %s194 = sphi 0, %s194
      %s196 = sphi 0, %s194
      %s197 = sphi 0, %s196
      %s211 = sphi 0, %s197
      %s215 = sphi 0, %s215
      %s217 = sphi 0, %s215
      %s218 = sphi 0, %s217
      %s232 = sphi 0, %s218
      %s236 = sphi 0, %s236
      %s238 = sphi 0, %s236
      %s239 = sphi 0, %s238
      %s253 = sphi 0, %s239
      %s257 = sphi 0, %s257
      %s259 = sphi 0, %s257
      %s260 = sphi 0, %s259
      %s274 = sphi 0, %s260
      %s278 = sphi 0, %s278
      %s280 = sphi 0, %s278
      %s281 = sphi 0, %s280
      %s295 = sphi 0, %s281
      %s299 = sphi 0, %s299
      %s301 = sphi 0, %s299
      %s302 = sphi 0, %s301
      %s316 = sphi 0, %s302
      %s320 = sphi 0, %s320
      %s322 = sphi 0, %s320
      %s323 = sphi 0, %s322
      %s337 = sphi 0, %s323
      %s341 = sphi 0, %s341
      %s343 = sphi 0, %s341
      %s344 = sphi 0, %s343
      %s358 = sphi 0, %s344
      %s362 = sphi 0, %s362
      %s364 = sphi 0, %s362
      %s365 = sphi 0, %s364
      %s379 = sphi 0, %s365
      %s383 = sphi 0, %s383
      %s385 = sphi 0, %s383
      %s386 = sphi 0, %s385
      %s400 = sphi 0, %s386
      %s404 = sphi 0, %s404
      %s406 = sphi 0, %s404
      %s407 = sphi 0, %s406
      %s421 = sphi 0, %s407
      %s425 = sphi 0, %s425
      %s427 = sphi 0, %s425
      %s428 = sphi 0, %s427
      %s442 = sphi 0, %s428
      %s446 = sphi 0, %s446
      %s448 = sphi 0, %s446
      %s449 = sphi 0, %s448
      %s463 = sphi 0, %s449
      %s467 = sphi 0, %s467
      %s469 = sphi 0, %s467
      %s470 = sphi 0, %s469
      %s484 = sphi 0, %s470
      %s488 = sphi 0, %s488
      %s490 = sphi 0, %s488
      %s491 = sphi 0, %s490
      %s505 = sphi 0, %s491
      %s511 = sphi 0, %s513
      %s514 = sphi 0, %s511
      %s515 = sphi 0, %s514
      %s531 = sphi 0, %s515
      %s537 = sphi 0, %s539
      %s540 = sphi 0, %s537
      %s541 = sphi 0, %s540
      %s557 = sphi 0, %s541
      %s563 = sphi 0, %s565
      %s566 = sphi 0, %s563
      %s567 = sphi 0, %s566
      %s583 = sphi 0, %s567
    $region4: #{tpu_custom_call.1} parent=1 // loop_header_branch
      %48 = sbr.rel (%p46) target = $region8
    $region5: #{tpu_custom_call.1} parent=1 // loop_body
      %s50 = ssub.s32 %s45, 1
      %s51 = ssub.s32 %s45, 2
      %s52 = sadd.s32 %s45, 1
      %s53 = ssub.s32 %s45, %s52
      %p54 = scmp.eq.s32.totalorder %s53, 0
      %s56 = sadd.s32 %s55, 1
      %s57 = scalar_select %p54, %s55, %s56
      %p60 = pneg %p54
      %p61 = scmp.eq.s32.totalorder %s45, 1
      %p62 = por %p60, %p61
      %p63 = scmp.ne.s32.totalorder %s55, %s58
      %p64 = scmp.eq.s32.totalorder %s45, 0
      %p65 = por %p63, %p64
      %p66 = scmp.ne.s32.totalorder %s55, %s58
      %p67 = scmp.eq.s32.totalorder %s50, 1
      %p68 = por %p66, %p67
      %p69 = scmp.ne.s32.totalorder %s58, %s59
      %p70 = scmp.eq.s32.totalorder %s50, 0
      %p71 = por %p69, %p70
      %p72 = scmp.ne.s32.totalorder %s58, %s59
      %p73 = scmp.eq.s32.totalorder %s51, 1
      %p74 = por %p72, %p73
      %p76 = scmp.ne.s32.totalorder %s59, %s75
      %p77 = scmp.eq.s32.totalorder %s51, 0
      %p78 = por %p76, %p77
      %s79 = ssub.s32 %s45, %s52
      %p80 = scmp.eq.s32.totalorder %s79, 0
      %s82 = sadd.s32 %s81, 1
      %s83 = scalar_select %p80, %s81, %s82
      %p86 = pneg %p80
      %p87 = scmp.eq.s32.totalorder %s45, 1
      %p88 = por %p86, %p87
      %p89 = scmp.ne.s32.totalorder %s81, %s84
      %p90 = scmp.eq.s32.totalorder %s45, 0
      %p91 = por %p89, %p90
      %p92 = scmp.ne.s32.totalorder %s81, %s84
      %p93 = scmp.eq.s32.totalorder %s50, 1
      %p94 = por %p92, %p93
      %p95 = scmp.ne.s32.totalorder %s84, %s85
      %p96 = scmp.eq.s32.totalorder %s50, 0
      %p97 = por %p95, %p96
      %p98 = scmp.ne.s32.totalorder %s84, %s85
      %p99 = scmp.eq.s32.totalorder %s51, 1
      %p100 = por %p98, %p99
      %p102 = scmp.ne.s32.totalorder %s85, %s101
      %p103 = scmp.eq.s32.totalorder %s51, 0
      %p104 = por %p102, %p103
      %s105 = ssub.s32 %s45, %s52
      %p106 = scmp.eq.s32.totalorder %s105, 0
      %s108 = sadd.s32 %s107, 1
      %s109 = scalar_select %p106, %s107, %s108
      %p112 = pneg %p106
      %p113 = scmp.eq.s32.totalorder %s45, 1
      %p114 = por %p112, %p113
      %p115 = scmp.ne.s32.totalorder %s107, %s110
      %p116 = scmp.eq.s32.totalorder %s45, 0
      %p117 = por %p115, %p116
      %p118 = scmp.ne.s32.totalorder %s107, %s110
      %p119 = scmp.eq.s32.totalorder %s50, 1
      %p120 = por %p118, %p119
      %p121 = scmp.ne.s32.totalorder %s110, %s111
      %p122 = scmp.eq.s32.totalorder %s50, 0
      %p123 = por %p121, %p122
      %p124 = scmp.ne.s32.totalorder %s110, %s111
      %p125 = scmp.eq.s32.totalorder %s51, 1
      %p126 = por %p124, %p125
      %p128 = scmp.ne.s32.totalorder %s111, %s127
      %p129 = scmp.eq.s32.totalorder %s51, 0
      %p130 = por %p128, %p129
      %s132 = sadd.s32 %s131, 1
      %p135 = scmp.eq.s32.totalorder %s45, 1
      %p136 = scmp.ne.s32.totalorder %s131, %s133
      %p137 = scmp.eq.s32.totalorder %s45, 0
      %p138 = por %p136, %p137
      %p139 = scmp.ne.s32.totalorder %s131, %s133
      %p140 = scmp.eq.s32.totalorder %s50, 1
      %p141 = por %p139, %p140
      %p142 = scmp.ne.s32.totalorder %s133, %s134
      %p143 = scmp.eq.s32.totalorder %s50, 0
      %p144 = por %p142, %p143
      %p145 = scmp.ne.s32.totalorder %s133, %s134
      %p146 = scmp.eq.s32.totalorder %s51, 1
      %p147 = por %p145, %p146
      %p149 = scmp.ne.s32.totalorder %s134, %s148
      %p150 = scmp.eq.s32.totalorder %s51, 0
      %p151 = por %p149, %p150
      %s153 = sadd.s32 %s152, 1
      %p156 = scmp.eq.s32.totalorder %s45, 1
      %p157 = scmp.ne.s32.totalorder %s152, %s154
      %p158 = scmp.eq.s32.totalorder %s45, 0
      %p159 = por %p157, %p158
      %p160 = scmp.ne.s32.totalorder %s152, %s154
      %p161 = scmp.eq.s32.totalorder %s50, 1
      %p162 = por %p160, %p161
      %p163 = scmp.ne.s32.totalorder %s154, %s155
      %p164 = scmp.eq.s32.totalorder %s50, 0
      %p165 = por %p163, %p164
      %p166 = scmp.ne.s32.totalorder %s154, %s155
      %p167 = scmp.eq.s32.totalorder %s51, 1
      %p168 = por %p166, %p167
      %p170 = scmp.ne.s32.totalorder %s155, %s169
      %p171 = scmp.eq.s32.totalorder %s51, 0
      %p172 = por %p170, %p171
      %s174 = sadd.s32 %s173, 1
      %p177 = scmp.eq.s32.totalorder %s45, 1
      %p178 = scmp.ne.s32.totalorder %s173, %s175
      %p179 = scmp.eq.s32.totalorder %s45, 0
      %p180 = por %p178, %p179
      %p181 = scmp.ne.s32.totalorder %s173, %s175
      %p182 = scmp.eq.s32.totalorder %s50, 1
      %p183 = por %p181, %p182
      %p184 = scmp.ne.s32.totalorder %s175, %s176
      %p185 = scmp.eq.s32.totalorder %s50, 0
      %p186 = por %p184, %p185
      %p187 = scmp.ne.s32.totalorder %s175, %s176
      %p188 = scmp.eq.s32.totalorder %s51, 1
      %p189 = por %p187, %p188
      %p191 = scmp.ne.s32.totalorder %s176, %s190
      %p192 = scmp.eq.s32.totalorder %s51, 0
      %p193 = por %p191, %p192
      %s195 = sadd.s32 %s194, 1
      %p198 = scmp.eq.s32.totalorder %s45, 1
      %p199 = scmp.ne.s32.totalorder %s194, %s196
      %p200 = scmp.eq.s32.totalorder %s45, 0
      %p201 = por %p199, %p200
      %p202 = scmp.ne.s32.totalorder %s194, %s196
      %p203 = scmp.eq.s32.totalorder %s50, 1
      %p204 = por %p202, %p203
      %p205 = scmp.ne.s32.totalorder %s196, %s197
      %p206 = scmp.eq.s32.totalorder %s50, 0
      %p207 = por %p205, %p206
      %p208 = scmp.ne.s32.totalorder %s196, %s197
      %p209 = scmp.eq.s32.totalorder %s51, 1
      %p210 = por %p208, %p209
      %p212 = scmp.ne.s32.totalorder %s197, %s211
      %p213 = scmp.eq.s32.totalorder %s51, 0
      %p214 = por %p212, %p213
      %s216 = sadd.s32 %s215, 1
      %p219 = scmp.eq.s32.totalorder %s45, 1
      %p220 = scmp.ne.s32.totalorder %s215, %s217
      %p221 = scmp.eq.s32.totalorder %s45, 0
      %p222 = por %p220, %p221
      %p223 = scmp.ne.s32.totalorder %s215, %s217
      %p224 = scmp.eq.s32.totalorder %s50, 1
      %p225 = por %p223, %p224
      %p226 = scmp.ne.s32.totalorder %s217, %s218
      %p227 = scmp.eq.s32.totalorder %s50, 0
      %p228 = por %p226, %p227
      %p229 = scmp.ne.s32.totalorder %s217, %s218
      %p230 = scmp.eq.s32.totalorder %s51, 1
      %p231 = por %p229, %p230
      %p233 = scmp.ne.s32.totalorder %s218, %s232
      %p234 = scmp.eq.s32.totalorder %s51, 0
      %p235 = por %p233, %p234
      %s237 = sadd.s32 %s236, 1
      %p240 = scmp.eq.s32.totalorder %s45, 1
      %p241 = scmp.ne.s32.totalorder %s236, %s238
      %p242 = scmp.eq.s32.totalorder %s45, 0
      %p243 = por %p241, %p242
      %p244 = scmp.ne.s32.totalorder %s236, %s238
      %p245 = scmp.eq.s32.totalorder %s50, 1
      %p246 = por %p244, %p245
      %p247 = scmp.ne.s32.totalorder %s238, %s239
      %p248 = scmp.eq.s32.totalorder %s50, 0
      %p249 = por %p247, %p248
      %p250 = scmp.ne.s32.totalorder %s238, %s239
      %p251 = scmp.eq.s32.totalorder %s51, 1
      %p252 = por %p250, %p251
      %p254 = scmp.ne.s32.totalorder %s239, %s253
      %p255 = scmp.eq.s32.totalorder %s51, 0
      %p256 = por %p254, %p255
      %s258 = sadd.s32 %s257, 1
      %p261 = scmp.eq.s32.totalorder %s45, 1
      %p262 = scmp.ne.s32.totalorder %s257, %s259
      %p263 = scmp.eq.s32.totalorder %s45, 0
      %p264 = por %p262, %p263
      %p265 = scmp.ne.s32.totalorder %s257, %s259
      %p266 = scmp.eq.s32.totalorder %s50, 1
      %p267 = por %p265, %p266
      %p268 = scmp.ne.s32.totalorder %s259, %s260
      %p269 = scmp.eq.s32.totalorder %s50, 0
      %p270 = por %p268, %p269
      %p271 = scmp.ne.s32.totalorder %s259, %s260
      %p272 = scmp.eq.s32.totalorder %s51, 1
      %p273 = por %p271, %p272
      %p275 = scmp.ne.s32.totalorder %s260, %s274
      %p276 = scmp.eq.s32.totalorder %s51, 0
      %p277 = por %p275, %p276
      %s279 = sadd.s32 %s278, 1
      %p282 = scmp.eq.s32.totalorder %s45, 1
      %p283 = scmp.ne.s32.totalorder %s278, %s280
      %p284 = scmp.eq.s32.totalorder %s45, 0
      %p285 = por %p283, %p284
      %p286 = scmp.ne.s32.totalorder %s278, %s280
      %p287 = scmp.eq.s32.totalorder %s50, 1
      %p288 = por %p286, %p287
      %p289 = scmp.ne.s32.totalorder %s280, %s281
      %p290 = scmp.eq.s32.totalorder %s50, 0
      %p291 = por %p289, %p290
      %p292 = scmp.ne.s32.totalorder %s280, %s281
      %p293 = scmp.eq.s32.totalorder %s51, 1
      %p294 = por %p292, %p293
      %p296 = scmp.ne.s32.totalorder %s281, %s295
      %p297 = scmp.eq.s32.totalorder %s51, 0
      %p298 = por %p296, %p297
      %s300 = sadd.s32 %s299, 1
      %p303 = scmp.eq.s32.totalorder %s45, 1
      %p304 = scmp.ne.s32.totalorder %s299, %s301
      %p305 = scmp.eq.s32.totalorder %s45, 0
      %p306 = por %p304, %p305
      %p307 = scmp.ne.s32.totalorder %s299, %s301
      %p308 = scmp.eq.s32.totalorder %s50, 1
      %p309 = por %p307, %p308
      %p310 = scmp.ne.s32.totalorder %s301, %s302
      %p311 = scmp.eq.s32.totalorder %s50, 0
      %p312 = por %p310, %p311
      %p313 = scmp.ne.s32.totalorder %s301, %s302
      %p314 = scmp.eq.s32.totalorder %s51, 1
      %p315 = por %p313, %p314
      %p317 = scmp.ne.s32.totalorder %s302, %s316
      %p318 = scmp.eq.s32.totalorder %s51, 0
      %p319 = por %p317, %p318
      %s321 = sadd.s32 %s320, 1
      %p324 = scmp.eq.s32.totalorder %s45, 1
      %p325 = scmp.ne.s32.totalorder %s320, %s322
      %p326 = scmp.eq.s32.totalorder %s45, 0
      %p327 = por %p325, %p326
      %p328 = scmp.ne.s32.totalorder %s320, %s322
      %p329 = scmp.eq.s32.totalorder %s50, 1
      %p330 = por %p328, %p329
      %p331 = scmp.ne.s32.totalorder %s322, %s323
      %p332 = scmp.eq.s32.totalorder %s50, 0
      %p333 = por %p331, %p332
      %p334 = scmp.ne.s32.totalorder %s322, %s323
      %p335 = scmp.eq.s32.totalorder %s51, 1
      %p336 = por %p334, %p335
      %p338 = scmp.ne.s32.totalorder %s323, %s337
      %p339 = scmp.eq.s32.totalorder %s51, 0
      %p340 = por %p338, %p339
      %s342 = sadd.s32 %s341, 1
      %p345 = scmp.eq.s32.totalorder %s45, 1
      %p346 = scmp.ne.s32.totalorder %s341, %s343
      %p347 = scmp.eq.s32.totalorder %s45, 0
      %p348 = por %p346, %p347
      %p349 = scmp.ne.s32.totalorder %s341, %s343
      %p350 = scmp.eq.s32.totalorder %s50, 1
      %p351 = por %p349, %p350
      %p352 = scmp.ne.s32.totalorder %s343, %s344
      %p353 = scmp.eq.s32.totalorder %s50, 0
      %p354 = por %p352, %p353
      %p355 = scmp.ne.s32.totalorder %s343, %s344
      %p356 = scmp.eq.s32.totalorder %s51, 1
      %p357 = por %p355, %p356
      %p359 = scmp.ne.s32.totalorder %s344, %s358
      %p360 = scmp.eq.s32.totalorder %s51, 0
      %p361 = por %p359, %p360
      %s363 = sadd.s32 %s362, 1
      %p366 = scmp.eq.s32.totalorder %s45, 1
      %p367 = scmp.ne.s32.totalorder %s362, %s364
      %p368 = scmp.eq.s32.totalorder %s45, 0
      %p369 = por %p367, %p368
      %p370 = scmp.ne.s32.totalorder %s362, %s364
      %p371 = scmp.eq.s32.totalorder %s50, 1
      %p372 = por %p370, %p371
      %p373 = scmp.ne.s32.totalorder %s364, %s365
      %p374 = scmp.eq.s32.totalorder %s50, 0
      %p375 = por %p373, %p374
      %p376 = scmp.ne.s32.totalorder %s364, %s365
      %p377 = scmp.eq.s32.totalorder %s51, 1
      %p378 = por %p376, %p377
      %p380 = scmp.ne.s32.totalorder %s365, %s379
      %p381 = scmp.eq.s32.totalorder %s51, 0
      %p382 = por %p380, %p381
      %s384 = sadd.s32 %s383, 1
      %p387 = scmp.eq.s32.totalorder %s45, 1
      %p388 = scmp.ne.s32.totalorder %s383, %s385
      %p389 = scmp.eq.s32.totalorder %s45, 0
      %p390 = por %p388, %p389
      %p391 = scmp.ne.s32.totalorder %s383, %s385
      %p392 = scmp.eq.s32.totalorder %s50, 1
      %p393 = por %p391, %p392
      %p394 = scmp.ne.s32.totalorder %s385, %s386
      %p395 = scmp.eq.s32.totalorder %s50, 0
      %p396 = por %p394, %p395
      %p397 = scmp.ne.s32.totalorder %s385, %s386
      %p398 = scmp.eq.s32.totalorder %s51, 1
      %p399 = por %p397, %p398
      %p401 = scmp.ne.s32.totalorder %s386, %s400
      %p402 = scmp.eq.s32.totalorder %s51, 0
      %p403 = por %p401, %p402
      %s405 = sadd.s32 %s404, 1
      %p408 = scmp.eq.s32.totalorder %s45, 1
      %p409 = scmp.ne.s32.totalorder %s404, %s406
      %p410 = scmp.eq.s32.totalorder %s45, 0
      %p411 = por %p409, %p410
      %p412 = scmp.ne.s32.totalorder %s404, %s406
      %p413 = scmp.eq.s32.totalorder %s50, 1
      %p414 = por %p412, %p413
      %p415 = scmp.ne.s32.totalorder %s406, %s407
      %p416 = scmp.eq.s32.totalorder %s50, 0
      %p417 = por %p415, %p416
      %p418 = scmp.ne.s32.totalorder %s406, %s407
      %p419 = scmp.eq.s32.totalorder %s51, 1
      %p420 = por %p418, %p419
      %p422 = scmp.ne.s32.totalorder %s407, %s421
      %p423 = scmp.eq.s32.totalorder %s51, 0
      %p424 = por %p422, %p423
      %s426 = sadd.s32 %s425, 1
      %p429 = scmp.eq.s32.totalorder %s45, 1
      %p430 = scmp.ne.s32.totalorder %s425, %s427
      %p431 = scmp.eq.s32.totalorder %s45, 0
      %p432 = por %p430, %p431
      %p433 = scmp.ne.s32.totalorder %s425, %s427
      %p434 = scmp.eq.s32.totalorder %s50, 1
      %p435 = por %p433, %p434
      %p436 = scmp.ne.s32.totalorder %s427, %s428
      %p437 = scmp.eq.s32.totalorder %s50, 0
      %p438 = por %p436, %p437
      %p439 = scmp.ne.s32.totalorder %s427, %s428
      %p440 = scmp.eq.s32.totalorder %s51, 1
      %p441 = por %p439, %p440
      %p443 = scmp.ne.s32.totalorder %s428, %s442
      %p444 = scmp.eq.s32.totalorder %s51, 0
      %p445 = por %p443, %p444
      %s447 = sadd.s32 %s446, 1
      %p450 = scmp.eq.s32.totalorder %s45, 1
      %p451 = scmp.ne.s32.totalorder %s446, %s448
      %p452 = scmp.eq.s32.totalorder %s45, 0
      %p453 = por %p451, %p452
      %p454 = scmp.ne.s32.totalorder %s446, %s448
      %p455 = scmp.eq.s32.totalorder %s50, 1
      %p456 = por %p454, %p455
      %p457 = scmp.ne.s32.totalorder %s448, %s449
      %p458 = scmp.eq.s32.totalorder %s50, 0
      %p459 = por %p457, %p458
      %p460 = scmp.ne.s32.totalorder %s448, %s449
      %p461 = scmp.eq.s32.totalorder %s51, 1
      %p462 = por %p460, %p461
      %p464 = scmp.ne.s32.totalorder %s449, %s463
      %p465 = scmp.eq.s32.totalorder %s51, 0
      %p466 = por %p464, %p465
      %s468 = sadd.s32 %s467, 1
      %p471 = scmp.eq.s32.totalorder %s45, 1
      %p472 = scmp.ne.s32.totalorder %s467, %s469
      %p473 = scmp.eq.s32.totalorder %s45, 0
      %p474 = por %p472, %p473
      %p475 = scmp.ne.s32.totalorder %s467, %s469
      %p476 = scmp.eq.s32.totalorder %s50, 1
      %p477 = por %p475, %p476
      %p478 = scmp.ne.s32.totalorder %s469, %s470
      %p479 = scmp.eq.s32.totalorder %s50, 0
      %p480 = por %p478, %p479
      %p481 = scmp.ne.s32.totalorder %s469, %s470
      %p482 = scmp.eq.s32.totalorder %s51, 1
      %p483 = por %p481, %p482
      %p485 = scmp.ne.s32.totalorder %s470, %s484
      %p486 = scmp.eq.s32.totalorder %s51, 0
      %p487 = por %p485, %p486
      %s489 = sadd.s32 %s488, 1
      %p492 = scmp.eq.s32.totalorder %s45, 1
      %p493 = scmp.ne.s32.totalorder %s488, %s490
      %p494 = scmp.eq.s32.totalorder %s45, 0
      %p495 = por %p493, %p494
      %p496 = scmp.ne.s32.totalorder %s488, %s490
      %p497 = scmp.eq.s32.totalorder %s50, 1
      %p498 = por %p496, %p497
      %p499 = scmp.ne.s32.totalorder %s490, %s491
      %p500 = scmp.eq.s32.totalorder %s50, 0
      %p501 = por %p499, %p500
      %p502 = scmp.ne.s32.totalorder %s490, %s491
      %p503 = scmp.eq.s32.totalorder %s51, 1
      %p504 = por %p502, %p503
      %p506 = scmp.ne.s32.totalorder %s491, %s505
      %p507 = scmp.eq.s32.totalorder %s51, 0
      %p508 = por %p506, %p507
      %s509 = ssub.s32 %s45, %s52
      %p510 = scmp.eq.s32.totalorder %s509, 0
      %s512 = sadd.s32 %s511, 1
      %s513 = scalar_select %p510, %s511, %s512
      %p516 = pneg %p510
      %p517 = scmp.eq.s32.totalorder %s45, 1
      %p518 = por %p516, %p517
      %p519 = scmp.ne.s32.totalorder %s511, %s514
      %p520 = scmp.eq.s32.totalorder %s45, 0
      %p521 = por %p519, %p520
      %p522 = scmp.ne.s32.totalorder %s511, %s514
      %p523 = scmp.eq.s32.totalorder %s50, 1
      %p524 = por %p522, %p523
      %p525 = scmp.ne.s32.totalorder %s514, %s515
      %p526 = scmp.eq.s32.totalorder %s50, 0
      %p527 = por %p525, %p526
      %p528 = scmp.ne.s32.totalorder %s514, %s515
      %p529 = scmp.eq.s32.totalorder %s51, 1
      %p530 = por %p528, %p529
      %p532 = scmp.ne.s32.totalorder %s515, %s531
      %p533 = scmp.eq.s32.totalorder %s51, 0
      %p534 = por %p532, %p533
      %s535 = ssub.s32 %s45, %s52
      %p536 = scmp.eq.s32.totalorder %s535, 0
      %s538 = sadd.s32 %s537, 1
      %s539 = scalar_select %p536, %s537, %s538
      %p542 = pneg %p536
      %p543 = scmp.eq.s32.totalorder %s45, 1
      %p544 = por %p542, %p543
      %p545 = scmp.ne.s32.totalorder %s537, %s540
      %p546 = scmp.eq.s32.totalorder %s45, 0
      %p547 = por %p545, %p546
      %p548 = scmp.ne.s32.totalorder %s537, %s540
      %p549 = scmp.eq.s32.totalorder %s50, 1
      %p550 = por %p548, %p549
      %p551 = scmp.ne.s32.totalorder %s540, %s541
      %p552 = scmp.eq.s32.totalorder %s50, 0
      %p553 = por %p551, %p552
      %p554 = scmp.ne.s32.totalorder %s540, %s541
      %p555 = scmp.eq.s32.totalorder %s51, 1
      %p556 = por %p554, %p555
      %p558 = scmp.ne.s32.totalorder %s541, %s557
      %p559 = scmp.eq.s32.totalorder %s51, 0
      %p560 = por %p558, %p559
      %s561 = ssub.s32 %s45, %s52
      %p562 = scmp.eq.s32.totalorder %s561, 0
      %s564 = sadd.s32 %s563, 1
      %s565 = scalar_select %p562, %s563, %s564
      %p568 = pneg %p562
      %p569 = scmp.eq.s32.totalorder %s45, 1
      %p570 = por %p568, %p569
      %p571 = scmp.ne.s32.totalorder %s563, %s566
      %p572 = scmp.eq.s32.totalorder %s45, 0
      %p573 = por %p571, %p572
      %p574 = scmp.ne.s32.totalorder %s563, %s566
      %p575 = scmp.eq.s32.totalorder %s50, 1
      %p576 = por %p574, %p575
      %p577 = scmp.ne.s32.totalorder %s566, %s567
      %p578 = scmp.eq.s32.totalorder %s50, 0
      %p579 = por %p577, %p578
      %p580 = scmp.ne.s32.totalorder %s566, %s567
      %p581 = scmp.eq.s32.totalorder %s51, 1
      %p582 = por %p580, %p581
      %p584 = scmp.ne.s32.totalorder %s567, %s583
      %p585 = scmp.eq.s32.totalorder %s51, 0
      %p586 = por %p584, %p585
      %p587 = scmp.le.s32.totalorder 1, %s45
      %p588 = scmp.lt.s32.totalorder %s45, 3
      %p589 = pnand %p587, %p588
      %p590 = pneg %p589
      // Predicated region
      $region9: #{tpu_custom_call.1} parent=5 // pred_check
        _
      $region10: #{tpu_custom_call.1} parent=5 // pred_check_branch
        %592 = sbr.rel (%p589) target = $region12
      $region11: #{tpu_custom_call.1} parent=5 // pred_region
        %s593 = ssub.s32 %s45, 1
        // Predicated region
        $region13: #{tpu_custom_call.1} parent=11 // pred_check
          %p594 = pneg %p144
        $region14: #{tpu_custom_call.1} parent=11 // pred_check_branch
          %596 = sbr.rel (%p594) target = $region16
        $region15: #{tpu_custom_call.1} parent=11 // pred_region
          _
        $region16: #{tpu_custom_call.1} parent=11 // pred_fallthru
          _
        // Predicated region
        $region17: #{tpu_custom_call.1} parent=11 // pred_check
          %p597 = pneg %p165
        $region18: #{tpu_custom_call.1} parent=11 // pred_check_branch
          %599 = sbr.rel (%p597) target = $region20
        $region19: #{tpu_custom_call.1} parent=11 // pred_region
          _
        $region20: #{tpu_custom_call.1} parent=11 // pred_fallthru
          _
        // Predicated region
        $region21: #{tpu_custom_call.1} parent=11 // pred_check
          %p600 = pneg %p186
        $region22: #{tpu_custom_call.1} parent=11 // pred_check_branch
          %602 = sbr.rel (%p600) target = $region24
        $region23: #{tpu_custom_call.1} parent=11 // pred_region
          %s604 = ssub.s32 512, 512
          %605 = vsyncadd [#allocation6], %s604
          %s606 = sshll.u32 [#allocation7], 4
          %s607 = int_to_ptr.vmem [resolvable:$true] %s606
          %612 = dma.hbm_to_vmem [thread:$0]  %s5, 512, %s607, [#allocation6], 128, 128, 8
        $region24: #{tpu_custom_call.1} parent=11 // pred_fallthru
          _
        // Predicated region
        $region25: #{tpu_custom_call.1} parent=11 // pred_check
          %p613 = pneg %p207
        $region26: #{tpu_custom_call.1} parent=11 // pred_check_branch
          %615 = sbr.rel (%p613) target = $region28
        $region27: #{tpu_custom_call.1} parent=11 // pred_region
          %s617 = ssub.s32 512, 512
          %618 = vsyncadd [#allocation9], %s617
          %s619 = sshll.u32 [#allocation8], 4
          %s620 = int_to_ptr.vmem [resolvable:$true] %s619
          %625 = dma.hbm_to_vmem [thread:$0]  %s6, 512, %s620, [#allocation9], 128, 128, 8
        $region28: #{tpu_custom_call.1} parent=11 // pred_fallthru
          _
        // Predicated region
        $region29: #{tpu_custom_call.1} parent=11 // pred_check
          %p626 = pneg %p228
        $region30: #{tpu_custom_call.1} parent=11 // pred_check_branch
          %628 = sbr.rel (%p626) target = $region32
        $region31: #{tpu_custom_call.1} parent=11 // pred_region
          _
        $region32: #{tpu_custom_call.1} parent=11 // pred_fallthru
          _
        // Predicated region
        $region33: #{tpu_custom_call.1} parent=11 // pred_check
          %p629 = pneg %p249
        $region34: #{tpu_custom_call.1} parent=11 // pred_check_branch
          %631 = sbr.rel (%p629) target = $region36
        $region35: #{tpu_custom_call.1} parent=11 // pred_region
          _
        $region36: #{tpu_custom_call.1} parent=11 // pred_fallthru
          _
        // Predicated region
        $region37: #{tpu_custom_call.1} parent=11 // pred_check
          %p632 = pneg %p270
        $region38: #{tpu_custom_call.1} parent=11 // pred_check_branch
          %634 = sbr.rel (%p632) target = $region40
        $region39: #{tpu_custom_call.1} parent=11 // pred_region
          %s636 = ssub.s32 512, 512
          %637 = vsyncadd [#allocation9], %s636
          %s638 = sshll.u32 [#allocation10], 4
          %s639 = int_to_ptr.vmem [resolvable:$true] %s638
          %644 = dma.hbm_to_vmem [thread:$0]  %s9, 512, %s639, [#allocation9], 128, 128, 8
        $region40: #{tpu_custom_call.1} parent=11 // pred_fallthru
          _
        // Predicated region
        $region41: #{tpu_custom_call.1} parent=11 // pred_check
          %p645 = pneg %p291
        $region42: #{tpu_custom_call.1} parent=11 // pred_check_branch
          %647 = sbr.rel (%p645) target = $region44
        $region43: #{tpu_custom_call.1} parent=11 // pred_region
          %s649 = ssub.s32 512, 512
          %650 = vsyncadd [#allocation12], %s649
          %s651 = sshll.u32 [#allocation11], 4
          %s652 = int_to_ptr.vmem [resolvable:$true] %s651
          %657 = dma.hbm_to_vmem [thread:$0]  %s10, 512, %s652, [#allocation12], 128, 128, 8
        $region44: #{tpu_custom_call.1} parent=11 // pred_fallthru
          _
        // Predicated region
        $region45: #{tpu_custom_call.1} parent=11 // pred_check
          %p658 = pneg %p312
        $region46: #{tpu_custom_call.1} parent=11 // pred_check_branch
          %660 = sbr.rel (%p658) target = $region48
        $region47: #{tpu_custom_call.1} parent=11 // pred_region
          %s662 = ssub.s32 512, 512
          %663 = vsyncadd [#allocation12], %s662
          %s664 = sshll.u32 [#allocation13], 4
          %s665 = int_to_ptr.vmem [resolvable:$true] %s664
          %670 = dma.hbm_to_vmem [thread:$0]  %s11, 512, %s665, [#allocation12], 128, 128, 8
        $region48: #{tpu_custom_call.1} parent=11 // pred_fallthru
          _
        // Predicated region
        $region49: #{tpu_custom_call.1} parent=11 // pred_check
          %p671 = pneg %p333
        $region50: #{tpu_custom_call.1} parent=11 // pred_check_branch
          %673 = sbr.rel (%p671) target = $region52
        $region51: #{tpu_custom_call.1} parent=11 // pred_region
          %s675 = ssub.s32 512, 512
          %676 = vsyncadd [#allocation15], %s675
          %s677 = sshll.u32 [#allocation14], 4
          %s678 = int_to_ptr.vmem [resolvable:$true] %s677
          %683 = dma.hbm_to_vmem [thread:$0]  %s12, 512, %s678, [#allocation15], 128, 128, 8
        $region52: #{tpu_custom_call.1} parent=11 // pred_fallthru
          _
        // Predicated region
        $region53: #{tpu_custom_call.1} parent=11 // pred_check
          %p684 = pneg %p354
        $region54: #{tpu_custom_call.1} parent=11 // pred_check_branch
          %686 = sbr.rel (%p684) target = $region56
        $region55: #{tpu_custom_call.1} parent=11 // pred_region
          _
        $region56: #{tpu_custom_call.1} parent=11 // pred_fallthru
          _
        // Predicated region
        $region57: #{tpu_custom_call.1} parent=11 // pred_check
          %p687 = pneg %p375
        $region58: #{tpu_custom_call.1} parent=11 // pred_check_branch
          %689 = sbr.rel (%p687) target = $region60
        $region59: #{tpu_custom_call.1} parent=11 // pred_region
          _
        $region60: #{tpu_custom_call.1} parent=11 // pred_fallthru
          _
        // Predicated region
        $region61: #{tpu_custom_call.1} parent=11 // pred_check
          %p690 = pneg %p396
        $region62: #{tpu_custom_call.1} parent=11 // pred_check_branch
          %692 = sbr.rel (%p690) target = $region64
        $region63: #{tpu_custom_call.1} parent=11 // pred_region
          %s694 = ssub.s32 512, 512
          %695 = vsyncadd [#allocation15], %s694
          %s696 = sshll.u32 [#allocation16], 4
          %s697 = int_to_ptr.vmem [resolvable:$true] %s696
          %702 = dma.hbm_to_vmem [thread:$0]  %s15, 512, %s697, [#allocation15], 128, 128, 8
        $region64: #{tpu_custom_call.1} parent=11 // pred_fallthru
          _
        // Predicated region
        $region65: #{tpu_custom_call.1} parent=11 // pred_check
          %p703 = pneg %p417
        $region66: #{tpu_custom_call.1} parent=11 // pred_check_branch
          %705 = sbr.rel (%p703) target = $region68
        $region67: #{tpu_custom_call.1} parent=11 // pred_region
          _
        $region68: #{tpu_custom_call.1} parent=11 // pred_fallthru
          _
        // Predicated region
        $region69: #{tpu_custom_call.1} parent=11 // pred_check
          %p706 = pneg %p438
        $region70: #{tpu_custom_call.1} parent=11 // pred_check_branch
          %708 = sbr.rel (%p706) target = $region72
        $region71: #{tpu_custom_call.1} parent=11 // pred_region
          _
        $region72: #{tpu_custom_call.1} parent=11 // pred_fallthru
          _
        // Predicated region
        $region73: #{tpu_custom_call.1} parent=11 // pred_check
          %p709 = pneg %p459
        $region74: #{tpu_custom_call.1} parent=11 // pred_check_branch
          %711 = sbr.rel (%p709) target = $region76
        $region75: #{tpu_custom_call.1} parent=11 // pred_region
          _
        $region76: #{tpu_custom_call.1} parent=11 // pred_fallthru
          _
        // Predicated region
        $region77: #{tpu_custom_call.1} parent=11 // pred_check
          %p712 = pneg %p480
        $region78: #{tpu_custom_call.1} parent=11 // pred_check_branch
          %714 = sbr.rel (%p712) target = $region80
        $region79: #{tpu_custom_call.1} parent=11 // pred_region
          _
        $region80: #{tpu_custom_call.1} parent=11 // pred_fallthru
          _
        // Predicated region
        $region81: #{tpu_custom_call.1} parent=11 // pred_check
          %p715 = pneg %p501
        $region82: #{tpu_custom_call.1} parent=11 // pred_check_branch
          %717 = sbr.rel (%p715) target = $region84
        $region83: #{tpu_custom_call.1} parent=11 // pred_region
          _
        $region84: #{tpu_custom_call.1} parent=11 // pred_fallthru
          _
      $region12: #{tpu_custom_call.1} parent=5 // pred_fallthru
        _
      %p718 = scmp.lt.s32.totalorder %s45, 2
      // Predicated region
      $region85: #{tpu_custom_call.1} parent=5 // pred_check
        %p719 = pneg %p718
      $region86: #{tpu_custom_call.1} parent=5 // pred_check_branch
        %721 = sbr.rel (%p719) target = $region88
      $region87: #{tpu_custom_call.1} parent=5 // pred_region
        // Predicated region
        $region89: #{tpu_custom_call.1} parent=87 // pred_check
          %p722 = pneg %p65
        $region90: #{tpu_custom_call.1} parent=87 // pred_check_branch
          %724 = sbr.rel (%p722) target = $region92
        $region91: #{tpu_custom_call.1} parent=87 // pred_region
          %s725 = sand.u32 %s55, 1
          %s726 = scalar_lea.sflag [#allocation3], %s725
          %s727 = sand.u32 %s55, 1
          %s728 = smul.addr %s727, 8
          %s729 = scalar_lea.vmem [#allocation2], %s728
          %s731 = ssub.s32 128, 128
          %732 = vsyncadd %s726, %s731
          %s733 = smul.addr %s45, 128
          %s734 = scalar_lea.hbm %s0, %s733
          %s736 = sshll.u32 %s729, 4
          %s737 = int_to_ptr.vmem [resolvable:$true] %s736
          %739 = dma.hbm_to_vmem [thread:$0]  %s734, 128, %s737, %s726
        $region92: #{tpu_custom_call.1} parent=87 // pred_fallthru
          _
        // Predicated region
        $region93: #{tpu_custom_call.1} parent=87 // pred_check
          %p740 = pneg %p91
        $region94: #{tpu_custom_call.1} parent=87 // pred_check_branch
          %742 = sbr.rel (%p740) target = $region96
        $region95: #{tpu_custom_call.1} parent=87 // pred_region
          %p743 = scmp.lt.s32.totalorder %s45, 1
          %s744 = scalar_select %p743, %s45, 1
          %s745 = smul.addr %s744, 2
          %s746 = smul.addr %s745, 8
          %s747 = scalar_lea.vmem %s1, %s746
        $region96: #{tpu_custom_call.1} parent=87 // pred_fallthru
          _
        // Predicated region
        $region97: #{tpu_custom_call.1} parent=87 // pred_check
          %p748 = pneg %p117
        $region98: #{tpu_custom_call.1} parent=87 // pred_check_branch
          %750 = sbr.rel (%p748) target = $region100
        $region99: #{tpu_custom_call.1} parent=87 // pred_region
          %s751 = sand.u32 %s45, 1
          %s752 = scalar_lea.sflag [#allocation6], %s751
          %s753 = sand.u32 %s107, 1
          %s754 = smul.addr %s753, 8
          %s755 = scalar_lea.vmem [#allocation5], %s754
          %s757 = ssub.s32 128, 128
          %758 = vsyncadd %s752, %s757
          %s759 = smul.addr %s45, 128
          %s760 = scalar_lea.hbm %s2, %s759
          %s762 = sshll.u32 %s755, 4
          %s763 = int_to_ptr.vmem [resolvable:$true] %s762
          %765 = dma.hbm_to_vmem [thread:$0]  %s760, 128, %s763, %s752
        $region100: #{tpu_custom_call.1} parent=87 // pred_fallthru
          _
      $region88: #{tpu_custom_call.1} parent=5 // pred_fallthru
        _
      %p766 = scmp.le.s32.totalorder 1, %s45
      %p767 = scmp.lt.s32.totalorder %s45, 3
      %p768 = pnand %p766, %p767
      %p769 = pneg %p768
      // Predicated region
      $region101: #{tpu_custom_call.1} parent=5 // pred_check
        _
      $region102: #{tpu_custom_call.1} parent=5 // pred_check_branch
        %771 = sbr.rel (%p768) target = $region104
      $region103: #{tpu_custom_call.1} parent=5 // pred_region
        %s772 = ssub.s32 %s45, 1
        %s773 = sand.u32 %s58, 1
        %s774 = scalar_lea.sflag [#allocation3], %s773
        %s775 = sand.u32 %s58, 1
        %s776 = smul.addr %s775, 8
        %s777 = scalar_lea.vmem [#allocation2], %s776
        // Predicated region
        $region105: #{tpu_custom_call.1} parent=103 // pred_check
          %p778 = pneg %p71
        $region106: #{tpu_custom_call.1} parent=103 // pred_check_branch
          %780 = sbr.rel (%p778) target = $region108
        $region107: #{tpu_custom_call.1} parent=103 // pred_region
          %781 = dma.done %s774, 128
        $region108: #{tpu_custom_call.1} parent=103 // pred_fallthru
          _
        %s782 = sand.u32 %s50, 1
        %s783 = scalar_lea.sflag [#allocation6], %s782
        %s784 = sand.u32 %s110, 1
        %s785 = smul.addr %s784, 8
        %s786 = scalar_lea.vmem [#allocation5], %s785
        // Predicated region
        $region109: #{tpu_custom_call.1} parent=103 // pred_check
          %p787 = pneg %p123
        $region110: #{tpu_custom_call.1} parent=103 // pred_check_branch
          %789 = sbr.rel (%p787) target = $region112
        $region111: #{tpu_custom_call.1} parent=103 // pred_region
          %790 = dma.done %s783, 128
        $region112: #{tpu_custom_call.1} parent=103 // pred_fallthru
          _
        // Predicated region
        $region113: #{tpu_custom_call.1} parent=103 // pred_check
          %p791 = pneg %p186
        $region114: #{tpu_custom_call.1} parent=103 // pred_check_branch
          %793 = sbr.rel (%p791) target = $region116
        $region115: #{tpu_custom_call.1} parent=103 // pred_region
          %794 = dma.done [#allocation6], 512
        $region116: #{tpu_custom_call.1} parent=103 // pred_fallthru
          _
        // Predicated region
        $region117: #{tpu_custom_call.1} parent=103 // pred_check
          %p795 = pneg %p207
        $region118: #{tpu_custom_call.1} parent=103 // pred_check_branch
          %797 = sbr.rel (%p795) target = $region120
        $region119: #{tpu_custom_call.1} parent=103 // pred_region
          %798 = dma.done [#allocation9], 512
        $region120: #{tpu_custom_call.1} parent=103 // pred_fallthru
          _
        // Predicated region
        $region121: #{tpu_custom_call.1} parent=103 // pred_check
          %p799 = pneg %p270
        $region122: #{tpu_custom_call.1} parent=103 // pred_check_branch
          %801 = sbr.rel (%p799) target = $region124
        $region123: #{tpu_custom_call.1} parent=103 // pred_region
          %802 = dma.done [#allocation9], 512
        $region124: #{tpu_custom_call.1} parent=103 // pred_fallthru
          _
        // Predicated region
        $region125: #{tpu_custom_call.1} parent=103 // pred_check
          %p803 = pneg %p291
        $region126: #{tpu_custom_call.1} parent=103 // pred_check_branch
          %805 = sbr.rel (%p803) target = $region128
        $region127: #{tpu_custom_call.1} parent=103 // pred_region
          %806 = dma.done [#allocation12], 512
        $region128: #{tpu_custom_call.1} parent=103 // pred_fallthru
          _
        // Predicated region
        $region129: #{tpu_custom_call.1} parent=103 // pred_check
          %p807 = pneg %p312
        $region130: #{tpu_custom_call.1} parent=103 // pred_check_branch
          %809 = sbr.rel (%p807) target = $region132
        $region131: #{tpu_custom_call.1} parent=103 // pred_region
          %810 = dma.done [#allocation12], 512
        $region132: #{tpu_custom_call.1} parent=103 // pred_fallthru
          _
        // Predicated region
        $region133: #{tpu_custom_call.1} parent=103 // pred_check
          %p811 = pneg %p333
        $region134: #{tpu_custom_call.1} parent=103 // pred_check_branch
          %813 = sbr.rel (%p811) target = $region136
        $region135: #{tpu_custom_call.1} parent=103 // pred_region
          %814 = dma.done [#allocation15], 512
        $region136: #{tpu_custom_call.1} parent=103 // pred_fallthru
          _
        // Predicated region
        $region137: #{tpu_custom_call.1} parent=103 // pred_check
          %p815 = pneg %p396
        $region138: #{tpu_custom_call.1} parent=103 // pred_check_branch
          %817 = sbr.rel (%p815) target = $region140
        $region139: #{tpu_custom_call.1} parent=103 // pred_region
          %818 = dma.done [#allocation15], 512
        $region140: #{tpu_custom_call.1} parent=103 // pred_fallthru
          _
        %s819 = sand.u32 %s58, 1
        %s820 = scalar_lea.sflag [#allocation3], %s819
        %s821 = sand.u32 %s58, 1
        %s822 = smul.addr %s821, 8
        %s823 = scalar_lea.vmem [#allocation2], %s822
        %p824 = pneg %p71
        %p825 = pneg %p68
        %p826 = scmp.lt.s32.totalorder %s50, 1
        %s827 = scalar_select %p826, %s50, 1
        %s828 = smul.addr %s827, 2
        %s829 = smul.addr %s828, 8
        %s830 = scalar_lea.vmem %s1, %s829
        %p831 = pneg %p97
        %p832 = pneg %p94
        %s833 = sand.u32 %s50, 1
        %s834 = scalar_lea.sflag [#allocation6], %s833
        %s835 = sand.u32 %s110, 1
        %s836 = smul.addr %s835, 8
        %s837 = scalar_lea.vmem [#allocation5], %s836
        %p838 = pneg %p123
        %p839 = pneg %p120
        %p840 = pneg %p144
        %p841 = pneg %p141
        %p842 = pneg %p165
        %p843 = pneg %p162
        %p844 = pneg %p186
        %p845 = pneg %p183
        %p846 = pneg %p207
        %p847 = pneg %p204
        %p848 = pneg %p228
        %p849 = pneg %p225
        %p850 = pneg %p249
        %p851 = pneg %p246
        %p852 = pneg %p270
        %p853 = pneg %p267
        %p854 = pneg %p291
        %p855 = pneg %p288
        %p856 = pneg %p312
        %p857 = pneg %p309
        %p858 = pneg %p333
        %p859 = pneg %p330
        %p860 = pneg %p354
        %p861 = pneg %p351
        %p862 = pneg %p375
        %p863 = pneg %p372
        %p864 = pneg %p396
        %p865 = pneg %p393
        %p866 = pneg %p417
        %p867 = pneg %p414
        %p868 = pneg %p438
        %p869 = pneg %p435
        %p870 = pneg %p459
        %p871 = pneg %p456
        %p872 = pneg %p480
        %p873 = pneg %p477
        %p874 = pneg %p501
        %p875 = pneg %p498
        %p876 = pneg %p527
        %p877 = pneg %p524
        %s878 = sand.u32 %s514, 1
        %s879 = scalar_lea.sflag [#allocation4], %s878
        %s880 = sand.u32 %s514, 1
        %s881 = smul.addr %s880, 8
        %s882 = scalar_lea.vmem [#allocation17], %s881
        %p883 = pneg %p553
        %p884 = pneg %p550
        %s885 = sand.u32 %s50, 1
        %s886 = scalar_lea.sflag [#allocation19], %s885
        %s887 = sand.u32 %s540, 1
        %s888 = smul.addr %s887, 32
        %s889 = scalar_lea.vmem [#allocation18], %s888
        %p890 = pneg %p579
        %p891 = pneg %p576
        %s892 = sand.u32 %s50, 1
        %s893 = scalar_lea.sflag [#allocation19], %s892
        %s894 = sand.u32 %s566, 1
        %s895 = smul.addr %s894, 32
        %s896 = scalar_lea.vmem [#allocation20], %s895
        %p897 = scmp.lt.s32.totalorder %s50, 1
        %s898 = scalar_select %p897, %s50, 1
        %s899 = smul.addr %s898, 2
        %s900 = smul.addr %s899, 8
        %s901 = scalar_lea.vmem %s1, %s900
        %v903 = vld [vmem:[%s777] sm:$0xff]
        %v904 = vld [vmem:[%s901] sm:$0xff]
        %v905 = vld [vmem:[%s901 + $0x8] sm:$0xff]
        %v906 = vld [vmem:[%s786] sm:$0xff]
        %v907 = vld [vmem:[%s3] sm:$0xff]
        %v908 = vld [vmem:[%s3 + $0x8] sm:$0xff]
        %v909 = vld [vmem:[%s3 + $0x10] sm:$0xff]
        %v910 = vld [vmem:[%s3 + $0x18] sm:$0xff]
        %v911 = vld [vmem:[%s4] sm:$0xff]
        %v912 = vld [vmem:[%s4 + $0x8] sm:$0xff]
        %v913 = vld [vmem:[%s4 + $0x10] sm:$0xff]
        %v914 = vld [vmem:[%s4 + $0x18] sm:$0xff]
        %v915 = vld [vmem:[#allocation7] sm:$0xff]
        %v916 = vld [vmem:[#allocation7 + $0x8] sm:$0xff]
        %v917 = vld [vmem:[#allocation7 + $0x10] sm:$0xff]
        %v918 = vld [vmem:[#allocation7 + $0x18] sm:$0xff]
        %v919 = vld [vmem:[#allocation8] sm:$0xff]
        %v920 = vld [vmem:[#allocation8 + $0x8] sm:$0xff]
        %v921 = vld [vmem:[#allocation8 + $0x10] sm:$0xff]
        %v922 = vld [vmem:[#allocation8 + $0x18] sm:$0xff]
        %v923 = vld [vmem:[%s7] sm:$0x1]
        %v924 = vld [vmem:[%s8] sm:$0x1]
        %v925 = vpack.c.bf16 %v903, %v903
        %v926 = vpack.c.bf16 %v908, %v907
        %v927 = vpack.c.bf16 %v910, %v909
        %vm928 = vcmask 261120
        %v930 = vsel %vm928, %v925, 0
        %932 = vmatprep.subr.bf16.mxu0 0
        %933 = vmatpush1.bf16.msra.mxu0 0
        %934 = vmatprep.subr.bf16.mxu0 0
        %935 = vmatpush1.bf16.msra.mxu0 0
        %936 = vmatprep.subr.bf16.mxu0 0
        %937 = vmatpush1.bf16.msra.mxu0 0
        %938 = vmatprep.subr.bf16.mxu0 0
        %939 = vmatpush1.bf16.msra.mxu0 0
        %940 = vmatprep.subr.bf16.mxu0 0
        %941 = vmatpush1.bf16.msra.mxu0 0
        %942 = vmatprep.subr.bf16.mxu0 0
        %943 = vmatpush1.bf16.msra.mxu0 0
        %944 = vmatprep.subr.bf16.mxu0 0
        %945 = vmatpush1.bf16.msra.mxu0 %v927
        %946 = vmatprep.subr.bf16.mxu0 0
        %947 = vmatpush1.bf16.msra.mxu0 %v926
        %948 = vmatprep.subr.bf16.mxu0 0
        %949 = vmatpush2.bf16.msra.mxu0 0
        %950 = vmatprep.subr.bf16.mxu0 0
        %951 = vmatpush2.bf16.msra.mxu0 0
        %952 = vmatprep.subr.bf16.mxu0 0
        %953 = vmatpush2.bf16.msra.mxu0 0
        %954 = vmatprep.subr.bf16.mxu0 0
        %955 = vmatpush2.bf16.msra.mxu0 0
        %956 = vmatprep.subr.bf16.mxu0 0
        %957 = vmatpush2.bf16.msra.mxu0 0
        %958 = vmatprep.subr.bf16.mxu0 0
        %959 = vmatpush2.bf16.msra.mxu0 0
        %960 = vmatprep.subr.bf16.mxu0 0
        %961 = vmatpush2.bf16.msra.mxu0 0
        %962 = vmatprep.subr.bf16.mxu0 0
        %963 = vmatpush2.bf16.msra.mxu0 0
        %964 = vmatprep.mubr.bf16.mxu0 0
        %965 = vmatmul.mubr.bf16.gmra.mxu0 %v930
        %v966 = vpop.f32.mrf.mxu0
        %v967 = vadd.f32 0.0, %v966
        %v968 = vpop.f32.mrf.mxu0
        %v969 = vpop.f32.mrf.mxu0
        %v970 = vpop.f32.mrf.mxu0
        %971 = vdwg.mxu0
        %v972 = vpack.c.bf16 %v912, %v911
        %v973 = vpack.c.bf16 %v914, %v913
        %974 = vmatprep.subr.bf16.mxu0 0
        %975 = vmatpush1.bf16.msra.mxu0 0
        %976 = vmatprep.subr.bf16.mxu0 0
        %977 = vmatpush1.bf16.msra.mxu0 0
        %978 = vmatprep.subr.bf16.mxu0 0
        %979 = vmatpush1.bf16.msra.mxu0 0
        %980 = vmatprep.subr.bf16.mxu0 0
        %981 = vmatpush1.bf16.msra.mxu0 0
        %982 = vmatprep.subr.bf16.mxu0 0
        %983 = vmatpush1.bf16.msra.mxu0 0
        %984 = vmatprep.subr.bf16.mxu0 0
        %985 = vmatpush1.bf16.msra.mxu0 0
        %986 = vmatprep.subr.bf16.mxu0 0
        %987 = vmatpush1.bf16.msra.mxu0 %v973
        %988 = vmatprep.subr.bf16.mxu0 0
        %989 = vmatpush1.bf16.msra.mxu0 %v972
        %990 = vmatprep.subr.bf16.mxu0 0
        %991 = vmatpush2.bf16.msra.mxu0 0
        %992 = vmatprep.subr.bf16.mxu0 0
        %993 = vmatpush2.bf16.msra.mxu0 0
        %994 = vmatprep.subr.bf16.mxu0 0
        %995 = vmatpush2.bf16.msra.mxu0 0
        %996 = vmatprep.subr.bf16.mxu0 0
        %997 = vmatpush2.bf16.msra.mxu0 0
        %998 = vmatprep.subr.bf16.mxu0 0
        %999 = vmatpush2.bf16.msra.mxu0 0
        %1000 = vmatprep.subr.bf16.mxu0 0
        %1001 = vmatpush2.bf16.msra.mxu0 0
        %1002 = vmatprep.subr.bf16.mxu0 0
        %1003 = vmatpush2.bf16.msra.mxu0 0
        %1004 = vmatprep.subr.bf16.mxu0 0
        %1005 = vmatpush2.bf16.msra.mxu0 0
        %1006 = vmatprep.mubr.bf16.mxu0 0
        %1007 = vmatmul.mubr.bf16.gmra.mxu0 %v930
        %v1008 = vpop.f32.mrf.mxu0
        %v1009 = vadd.f32 0.0, %v1008
        %v1010 = vpop.f32.mrf.mxu0
        %v1011 = vpop.f32.mrf.mxu0
        %v1012 = vpop.f32.mrf.mxu0
        %1013 = vdwg.mxu0
        %v1014 = vpack.c.bf16 %v916, %v915
        %v1015 = vpack.c.bf16 %v918, %v917
        %1016 = vmatprep.subr.bf16.mxu0 0
        %1017 = vmatpush1.bf16.msra.mxu0 0
        %1018 = vmatprep.subr.bf16.mxu0 0
        %1019 = vmatpush1.bf16.msra.mxu0 0
        %1020 = vmatprep.subr.bf16.mxu0 0
        %1021 = vmatpush1.bf16.msra.mxu0 0
        %1022 = vmatprep.subr.bf16.mxu0 0
        %1023 = vmatpush1.bf16.msra.mxu0 0
        %1024 = vmatprep.subr.bf16.mxu0 0
        %1025 = vmatpush1.bf16.msra.mxu0 0
        %1026 = vmatprep.subr.bf16.mxu0 0
        %1027 = vmatpush1.bf16.msra.mxu0 0
        %1028 = vmatprep.subr.bf16.mxu0 0
        %1029 = vmatpush1.bf16.msra.mxu0 %v1015
        %1030 = vmatprep.subr.bf16.mxu0 0
        %1031 = vmatpush1.bf16.msra.mxu0 %v1014
        %1032 = vmatprep.subr.bf16.mxu0 0
        %1033 = vmatpush2.bf16.msra.mxu0 0
        %1034 = vmatprep.subr.bf16.mxu0 0
        %1035 = vmatpush2.bf16.msra.mxu0 0
        %1036 = vmatprep.subr.bf16.mxu0 0
        %1037 = vmatpush2.bf16.msra.mxu0 0
        %1038 = vmatprep.subr.bf16.mxu0 0
        %1039 = vmatpush2.bf16.msra.mxu0 0
        %1040 = vmatprep.subr.bf16.mxu0 0
        %1041 = vmatpush2.bf16.msra.mxu0 0
        %1042 = vmatprep.subr.bf16.mxu0 0
        %1043 = vmatpush2.bf16.msra.mxu0 0
        %1044 = vmatprep.subr.bf16.mxu0 0
        %1045 = vmatpush2.bf16.msra.mxu0 0
        %1046 = vmatprep.subr.bf16.mxu0 0
        %1047 = vmatpush2.bf16.msra.mxu0 0
        %1048 = vmatprep.mubr.bf16.mxu0 0
        %1049 = vmatmul.mubr.bf16.gmra.mxu0 %v930
        %v1050 = vpop.f32.mrf.mxu0
        %v1051 = vadd.f32 0.0, %v1050
        %v1052 = vpop.f32.mrf.mxu0
        %v1053 = vpop.f32.mrf.mxu0
        %v1054 = vpop.f32.mrf.mxu0
        %1055 = vdwg.mxu0
        %v1056 = vpack.c.bf16 %v967, %v967
        %v1057 = vpack.c.bf16 %v1009, %v1009
        %vm1058 = vcmask 64512
        %v1060 = vsel %vm1058, %v1056, 0
        %v1063 = vsel %vm1058, %v1057, 0
        %1065 = vmatprep.subr.bf16.mxu0 0
        %1066 = vmatpush1.bf16.xpose.msra.mxu0 0
        %1067 = vmatprep.subr.bf16.mxu0 0
        %1068 = vmatpush1.bf16.xpose.msra.mxu0 0
        %1069 = vmatprep.subr.bf16.mxu0 0
        %1070 = vmatpush1.bf16.xpose.msra.mxu0 0
        %1071 = vmatprep.subr.bf16.mxu0 0
        %1072 = vmatpush1.bf16.xpose.msra.mxu0 0
        %1073 = vmatprep.subr.bf16.mxu0 0
        %1074 = vmatpush1.bf16.xpose.msra.mxu0 0
        %1075 = vmatprep.subr.bf16.mxu0 0
        %1076 = vmatpush1.bf16.xpose.msra.mxu0 0
        %1077 = vmatprep.subr.bf16.mxu0 0
        %1078 = vmatpush1.bf16.xpose.msra.mxu0 0
        %1079 = vmatprep.subr.bf16.mxu0 0
        %1080 = vmatpush1.bf16.xpose.msra.mxu0 %v1063
        %1081 = vmatprep.subr.bf16.mxu0 0
        %1082 = vmatpush2.bf16.xpose.msra.mxu0 0
        %1083 = vmatprep.subr.bf16.mxu0 0
        %1084 = vmatpush2.bf16.xpose.msra.mxu0 0
        %1085 = vmatprep.subr.bf16.mxu0 0
        %1086 = vmatpush2.bf16.xpose.msra.mxu0 0
        %1087 = vmatprep.subr.bf16.mxu0 0
        %1088 = vmatpush2.bf16.xpose.msra.mxu0 0
        %1089 = vmatprep.subr.bf16.mxu0 0
        %1090 = vmatpush2.bf16.xpose.msra.mxu0 0
        %1091 = vmatprep.subr.bf16.mxu0 0
        %1092 = vmatpush2.bf16.xpose.msra.mxu0 0
        %1093 = vmatprep.subr.bf16.mxu0 0
        %1094 = vmatpush2.bf16.xpose.msra.mxu0 0
        %1095 = vmatprep.subr.bf16.mxu0 0
        %1096 = vmatpush2.bf16.xpose.msra.mxu0 0
        %1097 = vmatprep.mubr.bf16.mxu0 0
        %1098 = vmatmul.mubr.bf16.gmra.mxu0 %v1060
        %v1099 = vpop.f32.mrf.mxu0
        %v1100 = vadd.f32 0.0, %v1099
        %v1101 = vpop.f32.mrf.mxu0
        %v1102 = vpop.f32.mrf.mxu0
        %v1103 = vpop.f32.mrf.mxu0
        %1104 = vdwg.mxu0
        %v1105 = vmul.f32 %v1100, 0.17677669
        %vm1106 = vcmp.gt.s32.totalorder %v906, 0
        %v1107 = vsel %vm1106, -1e+30, %v1105
        %v1108 = vsel %vm1058, %v1107, -inf
        %1109 = vmax.xlane.f32.xlu0 %v1108
        %v1110 = vpop.xlane.xlu0 %1109
        %v1111 = vsub.f32 %v1107, %v1110
        %v1112 = vmul.f32 %v1111, 1.442695
        %v1113 = vpow.pop %v1112
        %v1114 = vsel %vm1058, %v1113, 0.0
        %1115 = vadd.xlane.f32.xlu0 %v1114
        %v1116 = vpop.xlane.xlu0 %1115
        %v1117 = vrcp.pop %v1116
        %v1118 = vmul.f32 %v1113, %v1117
        %1119 = vst.msk [vmem:[%s889] sm:$0xff] %vm1058, %v1118
        %v1120 = vpack.c.bf16 %v1118, %v1118
        %v1121 = vpack.c.bf16 %v1051, %v1051
        %v1123 = vsel %vm1058, %v1120, 0
        %vm1125 = vcmask 1043456
        %v1127 = vsel %vm1125, %v1121, 0
        %1129 = vmatprep.subr.bf16.mxu0 0
        %1130 = vmatpush1.bf16.msra.mxu0 0
        %1131 = vmatprep.subr.bf16.mxu0 0
        %1132 = vmatpush1.bf16.msra.mxu0 0
        %1133 = vmatprep.subr.bf16.mxu0 0
        %1134 = vmatpush1.bf16.msra.mxu0 0
        %1135 = vmatprep.subr.bf16.mxu0 0
        %1136 = vmatpush1.bf16.msra.mxu0 0
        %1137 = vmatprep.subr.bf16.mxu0 0
        %1138 = vmatpush1.bf16.msra.mxu0 0
        %1139 = vmatprep.subr.bf16.mxu0 0
        %1140 = vmatpush1.bf16.msra.mxu0 0
        %1141 = vmatprep.subr.bf16.mxu0 0
        %1142 = vmatpush1.bf16.msra.mxu0 0
        %1143 = vmatprep.subr.bf16.mxu0 0
        %1144 = vmatpush1.bf16.msra.mxu0 %v1127
        %1145 = vmatprep.subr.bf16.mxu0 0
        %1146 = vmatpush2.bf16.msra.mxu0 0
        %1147 = vmatprep.subr.bf16.mxu0 0
        %1148 = vmatpush2.bf16.msra.mxu0 0
        %1149 = vmatprep.subr.bf16.mxu0 0
        %1150 = vmatpush2.bf16.msra.mxu0 0
        %1151 = vmatprep.subr.bf16.mxu0 0
        %1152 = vmatpush2.bf16.msra.mxu0 0
        %1153 = vmatprep.subr.bf16.mxu0 0
        %1154 = vmatpush2.bf16.msra.mxu0 0
        %1155 = vmatprep.subr.bf16.mxu0 0
        %1156 = vmatpush2.bf16.msra.mxu0 0
        %1157 = vmatprep.subr.bf16.mxu0 0
        %1158 = vmatpush2.bf16.msra.mxu0 0
        %1159 = vmatprep.subr.bf16.mxu0 0
        %1160 = vmatpush2.bf16.msra.mxu0 0
        %1161 = vmatprep.mubr.bf16.mxu0 0
        %1162 = vmatmul.mubr.bf16.gmra.mxu0 %v1123
        %v1163 = vpop.f32.mrf.mxu0
        %v1164 = vadd.f32 0.0, %v1163
        %v1165 = vpop.f32.mrf.mxu0
        %v1166 = vpop.f32.mrf.mxu0
        %v1167 = vpop.f32.mrf.mxu0
        %1168 = vdwg.mxu0
        %1170 = vrot.lane.b32.xlu0 %v1056, 120
        %v1171 = vpop.permute.xlu0 %1170
        %1173 = vrot.lane.b32.xlu0 %v1057, 120
        %v1174 = vpop.permute.xlu0 %1173
        %v1176 = vsel %vm1058, %v1171, 0
        %v1179 = vsel %vm1058, %v1174, 0
        %1181 = vmatprep.subr.bf16.mxu0 0
        %1182 = vmatpush1.bf16.xpose.msra.mxu0 0
        %1183 = vmatprep.subr.bf16.mxu0 0
        %1184 = vmatpush1.bf16.xpose.msra.mxu0 0
        %1185 = vmatprep.subr.bf16.mxu0 0
        %1186 = vmatpush1.bf16.xpose.msra.mxu0 0
        %1187 = vmatprep.subr.bf16.mxu0 0
        %1188 = vmatpush1.bf16.xpose.msra.mxu0 0
        %1189 = vmatprep.subr.bf16.mxu0 0
        %1190 = vmatpush1.bf16.xpose.msra.mxu0 0
        %1191 = vmatprep.subr.bf16.mxu0 0
        %1192 = vmatpush1.bf16.xpose.msra.mxu0 0
        %1193 = vmatprep.subr.bf16.mxu0 0
        %1194 = vmatpush1.bf16.xpose.msra.mxu0 0
        %1195 = vmatprep.subr.bf16.mxu0 0
        %1196 = vmatpush1.bf16.xpose.msra.mxu0 %v1179
        %1197 = vmatprep.subr.bf16.mxu0 0
        %1198 = vmatpush2.bf16.xpose.msra.mxu0 0
        %1199 = vmatprep.subr.bf16.mxu0 0
        %1200 = vmatpush2.bf16.xpose.msra.mxu0 0
        %1201 = vmatprep.subr.bf16.mxu0 0
        %1202 = vmatpush2.bf16.xpose.msra.mxu0 0
        %1203 = vmatprep.subr.bf16.mxu0 0
        %1204 = vmatpush2.bf16.xpose.msra.mxu0 0
        %1205 = vmatprep.subr.bf16.mxu0 0
        %1206 = vmatpush2.bf16.xpose.msra.mxu0 0
        %1207 = vmatprep.subr.bf16.mxu0 0
        %1208 = vmatpush2.bf16.xpose.msra.mxu0 0
        %1209 = vmatprep.subr.bf16.mxu0 0
        %1210 = vmatpush2.bf16.xpose.msra.mxu0 0
        %1211 = vmatprep.subr.bf16.mxu0 0
        %1212 = vmatpush2.bf16.xpose.msra.mxu0 0
        %1213 = vmatprep.mubr.bf16.mxu0 0
        %1214 = vmatmul.mubr.bf16.gmra.mxu0 %v1176
        %v1215 = vpop.f32.mrf.mxu0
        %v1216 = vadd.f32 0.0, %v1215
        %v1217 = vpop.f32.mrf.mxu0
        %v1218 = vpop.f32.mrf.mxu0
        %v1219 = vpop.f32.mrf.mxu0
        %1220 = vdwg.mxu0
        %v1221 = vmul.f32 %v1216, 0.17677669
        %v1222 = vsel %vm1106, -1e+30, %v1221
        %v1223 = vsel %vm1058, %v1222, -inf
        %1224 = vmax.xlane.f32.xlu0 %v1223
        %v1225 = vpop.xlane.xlu0 %1224
        %v1226 = vsub.f32 %v1222, %v1225
        %v1227 = vmul.f32 %v1226, 1.442695
        %v1228 = vpow.pop %v1227
        %v1229 = vsel %vm1058, %v1228, 0.0
        %1230 = vadd.xlane.f32.xlu0 %v1229
        %v1231 = vpop.xlane.xlu0 %1230
        %v1232 = vrcp.pop %v1231
        %v1233 = vmul.f32 %v1228, %v1232
        %s1234 = scalar_lea.vmem %s889, 8 [#allocation18]
        %1235 = vst.msk [vmem:[%s1234] sm:$0xff] %vm1058, %v1233
        %v1236 = vpack.c.bf16 %v1233, %v1233
        %1238 = vrot.lane.b32.xlu0 %v1121, 120
        %v1239 = vpop.permute.xlu0 %1238
        %v1241 = vsel %vm1058, %v1236, 0
        %v1244 = vsel %vm1125, %v1239, 0
        %1246 = vmatprep.subr.bf16.mxu0 0
        %1247 = vmatpush1.bf16.msra.mxu0 0
        %1248 = vmatprep.subr.bf16.mxu0 0
        %1249 = vmatpush1.bf16.msra.mxu0 0
        %1250 = vmatprep.subr.bf16.mxu0 0
        %1251 = vmatpush1.bf16.msra.mxu0 0
        %1252 = vmatprep.subr.bf16.mxu0 0
        %1253 = vmatpush1.bf16.msra.mxu0 0
        %1254 = vmatprep.subr.bf16.mxu0 0
        %1255 = vmatpush1.bf16.msra.mxu0 0
        %1256 = vmatprep.subr.bf16.mxu0 0
        %1257 = vmatpush1.bf16.msra.mxu0 0
        %1258 = vmatprep.subr.bf16.mxu0 0
        %1259 = vmatpush1.bf16.msra.mxu0 0
        %1260 = vmatprep.subr.bf16.mxu0 0
        %1261 = vmatpush1.bf16.msra.mxu0 %v1244
        %1262 = vmatprep.subr.bf16.mxu0 0
        %1263 = vmatpush2.bf16.msra.mxu0 0
        %1264 = vmatprep.subr.bf16.mxu0 0
        %1265 = vmatpush2.bf16.msra.mxu0 0
        %1266 = vmatprep.subr.bf16.mxu0 0
        %1267 = vmatpush2.bf16.msra.mxu0 0
        %1268 = vmatprep.subr.bf16.mxu0 0
        %1269 = vmatpush2.bf16.msra.mxu0 0
        %1270 = vmatprep.subr.bf16.mxu0 0
        %1271 = vmatpush2.bf16.msra.mxu0 0
        %1272 = vmatprep.subr.bf16.mxu0 0
        %1273 = vmatpush2.bf16.msra.mxu0 0
        %1274 = vmatprep.subr.bf16.mxu0 0
        %1275 = vmatpush2.bf16.msra.mxu0 0
        %1276 = vmatprep.subr.bf16.mxu0 0
        %1277 = vmatpush2.bf16.msra.mxu0 0
        %1278 = vmatprep.mubr.bf16.mxu0 0
        %1279 = vmatmul.mubr.bf16.gmra.mxu0 %v1241
        %v1280 = vpop.f32.mrf.mxu0
        %v1281 = vadd.f32 0.0, %v1280
        %v1282 = vpop.f32.mrf.mxu0
        %v1283 = vpop.f32.mrf.mxu0
        %v1284 = vpop.f32.mrf.mxu0
        %1285 = vdwg.mxu0
        %1286 = vrot.lane.b32.xlu0 %v1056, 112
        %v1287 = vpop.permute.xlu0 %1286
        %1288 = vrot.lane.b32.xlu0 %v1057, 112
        %v1289 = vpop.permute.xlu0 %1288
        %v1291 = vsel %vm1058, %v1287, 0
        %v1294 = vsel %vm1058, %v1289, 0
        %1296 = vmatprep.subr.bf16.mxu0 0
        %1297 = vmatpush1.bf16.xpose.msra.mxu0 0
        %1298 = vmatprep.subr.bf16.mxu0 0
        %1299 = vmatpush1.bf16.xpose.msra.mxu0 0
        %1300 = vmatprep.subr.bf16.mxu0 0
        %1301 = vmatpush1.bf16.xpose.msra.mxu0 0
        %1302 = vmatprep.subr.bf16.mxu0 0
        %1303 = vmatpush1.bf16.xpose.msra.mxu0 0
        %1304 = vmatprep.subr.bf16.mxu0 0
        %1305 = vmatpush1.bf16.xpose.msra.mxu0 0
        %1306 = vmatprep.subr.bf16.mxu0 0
        %1307 = vmatpush1.bf16.xpose.msra.mxu0 0
        %1308 = vmatprep.subr.bf16.mxu0 0
        %1309 = vmatpush1.bf16.xpose.msra.mxu0 0
        %1310 = vmatprep.subr.bf16.mxu0 0
        %1311 = vmatpush1.bf16.xpose.msra.mxu0 %v1294
        %1312 = vmatprep.subr.bf16.mxu0 0
        %1313 = vmatpush2.bf16.xpose.msra.mxu0 0
        %1314 = vmatprep.subr.bf16.mxu0 0
        %1315 = vmatpush2.bf16.xpose.msra.mxu0 0
        %1316 = vmatprep.subr.bf16.mxu0 0
        %1317 = vmatpush2.bf16.xpose.msra.mxu0 0
        %1318 = vmatprep.subr.bf16.mxu0 0
        %1319 = vmatpush2.bf16.xpose.msra.mxu0 0
        %1320 = vmatprep.subr.bf16.mxu0 0
        %1321 = vmatpush2.bf16.xpose.msra.mxu0 0
        %1322 = vmatprep.subr.bf16.mxu0 0
        %1323 = vmatpush2.bf16.xpose.msra.mxu0 0
        %1324 = vmatprep.subr.bf16.mxu0 0
        %1325 = vmatpush2.bf16.xpose.msra.mxu0 0
        %1326 = vmatprep.subr.bf16.mxu0 0
        %1327 = vmatpush2.bf16.xpose.msra.mxu0 0
        %1328 = vmatprep.mubr.bf16.mxu0 0
        %1329 = vmatmul.mubr.bf16.gmra.mxu0 %v1291
        %v1330 = vpop.f32.mrf.mxu0
        %v1331 = vadd.f32 0.0, %v1330
        %v1332 = vpop.f32.mrf.mxu0
        %v1333 = vpop.f32.mrf.mxu0
        %v1334 = vpop.f32.mrf.mxu0
        %1335 = vdwg.mxu0
        %v1336 = vmul.f32 %v1331, 0.17677669
        %v1337 = vsel %vm1106, -1e+30, %v1336
        %v1338 = vsel %vm1058, %v1337, -inf
        %1339 = vmax.xlane.f32.xlu0 %v1338
        %v1340 = vpop.xlane.xlu0 %1339
        %v1341 = vsub.f32 %v1337, %v1340
        %v1342 = vmul.f32 %v1341, 1.442695
        %v1343 = vpow.pop %v1342
        %v1344 = vsel %vm1058, %v1343, 0.0
        %1345 = vadd.xlane.f32.xlu0 %v1344
        %v1346 = vpop.xlane.xlu0 %1345
        %v1347 = vrcp.pop %v1346
        %v1348 = vmul.f32 %v1343, %v1347
        %s1349 = scalar_lea.vmem %s889, 16 [#allocation18]
        %1350 = vst.msk [vmem:[%s1349] sm:$0xff] %vm1058, %v1348
        %v1351 = vpack.c.bf16 %v1348, %v1348
        %1352 = vrot.lane.b32.xlu0 %v1121, 112
        %v1353 = vpop.permute.xlu0 %1352
        %v1355 = vsel %vm1058, %v1351, 0
        %v1358 = vsel %vm1125, %v1353, 0
        %1360 = vmatprep.subr.bf16.mxu0 0
        %1361 = vmatpush1.bf16.msra.mxu0 0
        %1362 = vmatprep.subr.bf16.mxu0 0
        %1363 = vmatpush1.bf16.msra.mxu0 0
        %1364 = vmatprep.subr.bf16.mxu0 0
        %1365 = vmatpush1.bf16.msra.mxu0 0
        %1366 = vmatprep.subr.bf16.mxu0 0
        %1367 = vmatpush1.bf16.msra.mxu0 0
        %1368 = vmatprep.subr.bf16.mxu0 0
        %1369 = vmatpush1.bf16.msra.mxu0 0
        %1370 = vmatprep.subr.bf16.mxu0 0
        %1371 = vmatpush1.bf16.msra.mxu0 0
        %1372 = vmatprep.subr.bf16.mxu0 0
        %1373 = vmatpush1.bf16.msra.mxu0 0
        %1374 = vmatprep.subr.bf16.mxu0 0
        %1375 = vmatpush1.bf16.msra.mxu0 %v1358
        %1376 = vmatprep.subr.bf16.mxu0 0
        %1377 = vmatpush2.bf16.msra.mxu0 0
        %1378 = vmatprep.subr.bf16.mxu0 0
        %1379 = vmatpush2.bf16.msra.mxu0 0
        %1380 = vmatprep.subr.bf16.mxu0 0
        %1381 = vmatpush2.bf16.msra.mxu0 0
        %1382 = vmatprep.subr.bf16.mxu0 0
        %1383 = vmatpush2.bf16.msra.mxu0 0
        %1384 = vmatprep.subr.bf16.mxu0 0
        %1385 = vmatpush2.bf16.msra.mxu0 0
        %1386 = vmatprep.subr.bf16.mxu0 0
        %1387 = vmatpush2.bf16.msra.mxu0 0
        %1388 = vmatprep.subr.bf16.mxu0 0
        %1389 = vmatpush2.bf16.msra.mxu0 0
        %1390 = vmatprep.subr.bf16.mxu0 0
        %1391 = vmatpush2.bf16.msra.mxu0 0
        %1392 = vmatprep.mubr.bf16.mxu0 0
        %1393 = vmatmul.mubr.bf16.gmra.mxu0 %v1355
        %v1394 = vpop.f32.mrf.mxu0
        %v1395 = vadd.f32 0.0, %v1394
        %v1396 = vpop.f32.mrf.mxu0
        %v1397 = vpop.f32.mrf.mxu0
        %v1398 = vpop.f32.mrf.mxu0
        %1399 = vdwg.mxu0
        %1400 = vrot.lane.b32.xlu0 %v1056, 104
        %v1401 = vpop.permute.xlu0 %1400
        %1402 = vrot.lane.b32.xlu0 %v1057, 104
        %v1403 = vpop.permute.xlu0 %1402
        %v1405 = vsel %vm1058, %v1401, 0
        %v1408 = vsel %vm1058, %v1403, 0
        %1410 = vmatprep.subr.bf16.mxu0 0
        %1411 = vmatpush1.bf16.xpose.msra.mxu0 0
        %1412 = vmatprep.subr.bf16.mxu0 0
        %1413 = vmatpush1.bf16.xpose.msra.mxu0 0
        %1414 = vmatprep.subr.bf16.mxu0 0
        %1415 = vmatpush1.bf16.xpose.msra.mxu0 0
        %1416 = vmatprep.subr.bf16.mxu0 0
        %1417 = vmatpush1.bf16.xpose.msra.mxu0 0
        %1418 = vmatprep.subr.bf16.mxu0 0
        %1419 = vmatpush1.bf16.xpose.msra.mxu0 0
        %1420 = vmatprep.subr.bf16.mxu0 0
        %1421 = vmatpush1.bf16.xpose.msra.mxu0 0
        %1422 = vmatprep.subr.bf16.mxu0 0
        %1423 = vmatpush1.bf16.xpose.msra.mxu0 0
        %1424 = vmatprep.subr.bf16.mxu0 0
        %1425 = vmatpush1.bf16.xpose.msra.mxu0 %v1408
        %1426 = vmatprep.subr.bf16.mxu0 0
        %1427 = vmatpush2.bf16.xpose.msra.mxu0 0
        %1428 = vmatprep.subr.bf16.mxu0 0
        %1429 = vmatpush2.bf16.xpose.msra.mxu0 0
        %1430 = vmatprep.subr.bf16.mxu0 0
        %1431 = vmatpush2.bf16.xpose.msra.mxu0 0
        %1432 = vmatprep.subr.bf16.mxu0 0
        %1433 = vmatpush2.bf16.xpose.msra.mxu0 0
        %1434 = vmatprep.subr.bf16.mxu0 0
        %1435 = vmatpush2.bf16.xpose.msra.mxu0 0
        %1436 = vmatprep.subr.bf16.mxu0 0
        %1437 = vmatpush2.bf16.xpose.msra.mxu0 0
        %1438 = vmatprep.subr.bf16.mxu0 0
        %1439 = vmatpush2.bf16.xpose.msra.mxu0 0
        %1440 = vmatprep.subr.bf16.mxu0 0
        %1441 = vmatpush2.bf16.xpose.msra.mxu0 0
        %1442 = vmatprep.mubr.bf16.mxu0 0
        %1443 = vmatmul.mubr.bf16.gmra.mxu0 %v1405
        %v1444 = vpop.f32.mrf.mxu0
        %v1445 = vadd.f32 0.0, %v1444
        %v1446 = vpop.f32.mrf.mxu0
        %v1447 = vpop.f32.mrf.mxu0
        %v1448 = vpop.f32.mrf.mxu0
        %1449 = vdwg.mxu0
        %v1450 = vmul.f32 %v1445, 0.17677669
        %v1451 = vsel %vm1106, -1e+30, %v1450
        %v1452 = vsel %vm1058, %v1451, -inf
        %1453 = vmax.xlane.f32.xlu0 %v1452
        %v1454 = vpop.xlane.xlu0 %1453
        %v1455 = vsub.f32 %v1451, %v1454
        %v1456 = vmul.f32 %v1455, 1.442695
        %v1457 = vpow.pop %v1456
        %v1458 = vsel %vm1058, %v1457, 0.0
        %1459 = vadd.xlane.f32.xlu0 %v1458
        %v1460 = vpop.xlane.xlu0 %1459
        %v1461 = vrcp.pop %v1460
        %v1462 = vmul.f32 %v1457, %v1461
        %s1463 = scalar_lea.vmem %s889, 24 [#allocation18]
        %1464 = vst.msk [vmem:[%s1463] sm:$0xff] %vm1058, %v1462
        %v1465 = vpack.c.bf16 %v1462, %v1462
        %1466 = vrot.lane.b32.xlu0 %v1121, 104
        %v1467 = vpop.permute.xlu0 %1466
        %v1469 = vsel %vm1058, %v1465, 0
        %v1472 = vsel %vm1125, %v1467, 0
        %1474 = vmatprep.subr.bf16.mxu0 0
        %1475 = vmatpush1.bf16.msra.mxu0 0
        %1476 = vmatprep.subr.bf16.mxu0 0
        %1477 = vmatpush1.bf16.msra.mxu0 0
        %1478 = vmatprep.subr.bf16.mxu0 0
        %1479 = vmatpush1.bf16.msra.mxu0 0
        %1480 = vmatprep.subr.bf16.mxu0 0
        %1481 = vmatpush1.bf16.msra.mxu0 0
        %1482 = vmatprep.subr.bf16.mxu0 0
        %1483 = vmatpush1.bf16.msra.mxu0 0
        %1484 = vmatprep.subr.bf16.mxu0 0
        %1485 = vmatpush1.bf16.msra.mxu0 0
        %1486 = vmatprep.subr.bf16.mxu0 0
        %1487 = vmatpush1.bf16.msra.mxu0 0
        %1488 = vmatprep.subr.bf16.mxu0 0
        %1489 = vmatpush1.bf16.msra.mxu0 %v1472
        %1490 = vmatprep.subr.bf16.mxu0 0
        %1491 = vmatpush2.bf16.msra.mxu0 0
        %1492 = vmatprep.subr.bf16.mxu0 0
        %1493 = vmatpush2.bf16.msra.mxu0 0
        %1494 = vmatprep.subr.bf16.mxu0 0
        %1495 = vmatpush2.bf16.msra.mxu0 0
        %1496 = vmatprep.subr.bf16.mxu0 0
        %1497 = vmatpush2.bf16.msra.mxu0 0
        %1498 = vmatprep.subr.bf16.mxu0 0
        %1499 = vmatpush2.bf16.msra.mxu0 0
        %1500 = vmatprep.subr.bf16.mxu0 0
        %1501 = vmatpush2.bf16.msra.mxu0 0
        %1502 = vmatprep.subr.bf16.mxu0 0
        %1503 = vmatpush2.bf16.msra.mxu0 0
        %1504 = vmatprep.subr.bf16.mxu0 0
        %1505 = vmatpush2.bf16.msra.mxu0 0
        %1506 = vmatprep.mubr.bf16.mxu0 0
        %1507 = vmatmul.mubr.bf16.gmra.mxu0 %v1469
        %v1508 = vpop.f32.mrf.mxu0
        %v1509 = vadd.f32 0.0, %v1508
        %v1510 = vpop.f32.mrf.mxu0
        %v1511 = vpop.f32.mrf.mxu0
        %v1512 = vpop.f32.mrf.mxu0
        %1513 = vdwg.mxu0
        %1515 = vrot.lane.b32.xlu0 %v1281, 8
        %v1516 = vpop.permute.xlu0 %1515
        %1519 = vrot.lane.b32.xlu0 %v1395, 16
        %v1520 = vpop.permute.xlu0 %1519
        %1523 = vrot.lane.b32.xlu0 %v1509, 24
        %v1524 = vpop.permute.xlu0 %1523
        %v1526 = vsel %vm1058, %v1164, %v1516
        %vm1527 = vcmask 130048
        %v1528 = vsel %vm1527, %v1526, %v1520
        %vm1529 = vcmask 195584
        %v1530 = vsel %vm1529, %v1528, %v1524
        %v1531 = vpack.c.bf16 %v1530, %v1530
        %v1532 = vpack.c.bf16 %v920, %v919
        %v1533 = vpack.c.bf16 %v922, %v921
        %v1535 = vsel %vm928, %v1531, 0
        %1537 = vmatprep.subr.bf16.mxu0 0
        %1538 = vmatpush1.bf16.msra.mxu0 0
        %1539 = vmatprep.subr.bf16.mxu0 0
        %1540 = vmatpush1.bf16.msra.mxu0 0
        %1541 = vmatprep.subr.bf16.mxu0 0
        %1542 = vmatpush1.bf16.msra.mxu0 0
        %1543 = vmatprep.subr.bf16.mxu0 0
        %1544 = vmatpush1.bf16.msra.mxu0 0
        %1545 = vmatprep.subr.bf16.mxu0 0
        %1546 = vmatpush1.bf16.msra.mxu0 0
        %1547 = vmatprep.subr.bf16.mxu0 0
        %1548 = vmatpush1.bf16.msra.mxu0 0
        %1549 = vmatprep.subr.bf16.mxu0 0
        %1550 = vmatpush1.bf16.msra.mxu0 %v1533
        %1551 = vmatprep.subr.bf16.mxu0 0
        %1552 = vmatpush1.bf16.msra.mxu0 %v1532
        %1553 = vmatprep.subr.bf16.mxu0 0
        %1554 = vmatpush2.bf16.msra.mxu0 0
        %1555 = vmatprep.subr.bf16.mxu0 0
        %1556 = vmatpush2.bf16.msra.mxu0 0
        %1557 = vmatprep.subr.bf16.mxu0 0
        %1558 = vmatpush2.bf16.msra.mxu0 0
        %1559 = vmatprep.subr.bf16.mxu0 0
        %1560 = vmatpush2.bf16.msra.mxu0 0
        %1561 = vmatprep.subr.bf16.mxu0 0
        %1562 = vmatpush2.bf16.msra.mxu0 0
        %1563 = vmatprep.subr.bf16.mxu0 0
        %1564 = vmatpush2.bf16.msra.mxu0 0
        %1565 = vmatprep.subr.bf16.mxu0 0
        %1566 = vmatpush2.bf16.msra.mxu0 0
        %1567 = vmatprep.subr.bf16.mxu0 0
        %1568 = vmatpush2.bf16.msra.mxu0 0
        %1569 = vmatprep.mubr.bf16.mxu0 0
        %1570 = vmatmul.mubr.bf16.gmra.mxu0 %v1535
        %v1571 = vpop.f32.mrf.mxu0
        %v1572 = vadd.f32 %v903, %v1571
        %v1573 = vpop.f32.mrf.mxu0
        %v1574 = vpop.f32.mrf.mxu0
        %v1575 = vpop.f32.mrf.mxu0
        %1576 = vdwg.mxu0
        %v1577 = vsel %vm928, %v1572, 0.0
        %1578 = vadd.xlane.f32.xlu0 %v1577
        %v1579 = vpop.xlane.xlu0 %1578
        %v1580 = vrcp.pop 32.0
        %v1581 = vmul.f32 %v1579, %v1580
        %v1582 = vsub.f32 %v1572, %v1581
        %v1583 = vmul.f32 %v1582, %v1582
        %v1584 = vsel %vm928, %v1583, 0.0
        %1585 = vadd.xlane.f32.xlu0 %v1584
        %v1586 = vpop.xlane.xlu0 %1585
        %v1587 = vmul.f32 %v1586, %v1580
        %v1588 = vadd.f32 %v1587, 1e-05
        %v1589 = vrsqrt.pop %v1588
        %v1590 = vmul.f32 %v1582, %v1589
        %v1592 = vlaneseq
        %v1593 = vshrl.u32 %v1592, 7
        %v1594 = vsub.s32 0, %v1593
        %v1595 = vrot.slane %v923, %v1594
        %v1597 = vmul.f32 %v1590, %v1595
        %v1599 = vlaneseq
        %v1600 = vshrl.u32 %v1599, 7
        %v1601 = vsub.s32 0, %v1600
        %v1602 = vrot.slane %v924, %v1601
        %v1604 = vadd.f32 %v1597, %v1602
        %v1605 = vld [vmem:[#allocation10] sm:$0xff]
        %v1606 = vld [vmem:[#allocation10 + $0x8] sm:$0xff]
        %v1607 = vld [vmem:[#allocation10 + $0x10] sm:$0xff]
        %v1608 = vld [vmem:[#allocation10 + $0x18] sm:$0xff]
        %v1609 = vld [vmem:[#allocation11] sm:$0xff]
        %v1610 = vld [vmem:[#allocation11 + $0x8] sm:$0xff]
        %v1611 = vld [vmem:[#allocation11 + $0x10] sm:$0xff]
        %v1612 = vld [vmem:[#allocation11 + $0x18] sm:$0xff]
        %v1613 = vld [vmem:[#allocation13] sm:$0xff]
        %v1614 = vld [vmem:[#allocation13 + $0x8] sm:$0xff]
        %v1615 = vld [vmem:[#allocation13 + $0x10] sm:$0xff]
        %v1616 = vld [vmem:[#allocation13 + $0x18] sm:$0xff]
        %v1617 = vld [vmem:[#allocation14] sm:$0xff]
        %v1618 = vld [vmem:[#allocation14 + $0x8] sm:$0xff]
        %v1619 = vld [vmem:[#allocation14 + $0x10] sm:$0xff]
        %v1620 = vld [vmem:[#allocation14 + $0x18] sm:$0xff]
        %v1621 = vld [vmem:[%s13] sm:$0x1]
        %v1622 = vld [vmem:[%s14] sm:$0x1]
        %v1623 = vpack.c.bf16 %v1604, %v1604
        %v1624 = vpack.c.bf16 %v1606, %v1605
        %v1625 = vpack.c.bf16 %v1608, %v1607
        %v1627 = vsel %vm928, %v1623, 0
        %1629 = vmatprep.subr.bf16.mxu0 0
        %1630 = vmatpush1.bf16.msra.mxu0 0
        %1631 = vmatprep.subr.bf16.mxu0 0
        %1632 = vmatpush1.bf16.msra.mxu0 0
        %1633 = vmatprep.subr.bf16.mxu0 0
        %1634 = vmatpush1.bf16.msra.mxu0 0
        %1635 = vmatprep.subr.bf16.mxu0 0
        %1636 = vmatpush1.bf16.msra.mxu0 0
        %1637 = vmatprep.subr.bf16.mxu0 0
        %1638 = vmatpush1.bf16.msra.mxu0 0
        %1639 = vmatprep.subr.bf16.mxu0 0
        %1640 = vmatpush1.bf16.msra.mxu0 0
        %1641 = vmatprep.subr.bf16.mxu0 0
        %1642 = vmatpush1.bf16.msra.mxu0 %v1625
        %1643 = vmatprep.subr.bf16.mxu0 0
        %1644 = vmatpush1.bf16.msra.mxu0 %v1624
        %1645 = vmatprep.subr.bf16.mxu0 0
        %1646 = vmatpush2.bf16.msra.mxu0 0
        %1647 = vmatprep.subr.bf16.mxu0 0
        %1648 = vmatpush2.bf16.msra.mxu0 0
        %1649 = vmatprep.subr.bf16.mxu0 0
        %1650 = vmatpush2.bf16.msra.mxu0 0
        %1651 = vmatprep.subr.bf16.mxu0 0
        %1652 = vmatpush2.bf16.msra.mxu0 0
        %1653 = vmatprep.subr.bf16.mxu0 0
        %1654 = vmatpush2.bf16.msra.mxu0 0
        %1655 = vmatprep.subr.bf16.mxu0 0
        %1656 = vmatpush2.bf16.msra.mxu0 0
        %1657 = vmatprep.subr.bf16.mxu0 0
        %1658 = vmatpush2.bf16.msra.mxu0 0
        %1659 = vmatprep.subr.bf16.mxu0 0
        %1660 = vmatpush2.bf16.msra.mxu0 0
        %1661 = vmatprep.mubr.bf16.mxu0 0
        %1662 = vmatmul.mubr.bf16.gmra.mxu0 %v1627
        %v1663 = vpop.f32.mrf.mxu0
        %v1664 = vadd.f32 0.0, %v1663
        %v1665 = vpop.f32.mrf.mxu0
        %v1666 = vpop.f32.mrf.mxu0
        %v1667 = vpop.f32.mrf.mxu0
        %1668 = vdwg.mxu0
        %v1669 = vpack.c.bf16 %v905, %v904
        %v1670 = vpack.c.bf16 %v1610, %v1609
        %v1671 = vpack.c.bf16 %v1612, %v1611
        %v1673 = vsel %vm928, %v1669, 0
        %1675 = vmatprep.subr.bf16.mxu0 0
        %1676 = vmatpush1.bf16.msra.mxu0 0
        %1677 = vmatprep.subr.bf16.mxu0 0
        %1678 = vmatpush1.bf16.msra.mxu0 0
        %1679 = vmatprep.subr.bf16.mxu0 0
        %1680 = vmatpush1.bf16.msra.mxu0 0
        %1681 = vmatprep.subr.bf16.mxu0 0
        %1682 = vmatpush1.bf16.msra.mxu0 0
        %1683 = vmatprep.subr.bf16.mxu0 0
        %1684 = vmatpush1.bf16.msra.mxu0 0
        %1685 = vmatprep.subr.bf16.mxu0 0
        %1686 = vmatpush1.bf16.msra.mxu0 0
        %1687 = vmatprep.subr.bf16.mxu0 0
        %1688 = vmatpush1.bf16.msra.mxu0 %v1671
        %1689 = vmatprep.subr.bf16.mxu0 0
        %1690 = vmatpush1.bf16.msra.mxu0 %v1670
        %1691 = vmatprep.subr.bf16.mxu0 0
        %1692 = vmatpush2.bf16.msra.mxu0 0
        %1693 = vmatprep.subr.bf16.mxu0 0
        %1694 = vmatpush2.bf16.msra.mxu0 0
        %1695 = vmatprep.subr.bf16.mxu0 0
        %1696 = vmatpush2.bf16.msra.mxu0 0
        %1697 = vmatprep.subr.bf16.mxu0 0
        %1698 = vmatpush2.bf16.msra.mxu0 0
        %1699 = vmatprep.subr.bf16.mxu0 0
        %1700 = vmatpush2.bf16.msra.mxu0 0
        %1701 = vmatprep.subr.bf16.mxu0 0
        %1702 = vmatpush2.bf16.msra.mxu0 0
        %1703 = vmatprep.subr.bf16.mxu0 0
        %1704 = vmatpush2.bf16.msra.mxu0 0
        %1705 = vmatprep.subr.bf16.mxu0 0
        %1706 = vmatpush2.bf16.msra.mxu0 0
        %1707 = vmatprep.mubr.bf16.mxu0 0
        %1708 = vmatmul.mubr.bf16.gmra.mxu0 %v1673
        %v1709 = vpop.f32.mrf.mxu0
        %v1710 = vadd.f32 0.0, %v1709
        %v1711 = vpop.f32.mrf.mxu0
        %v1712 = vpop.f32.mrf.mxu0
        %v1713 = vadd.f32 0.0, %v1712
        %v1714 = vpop.f32.mrf.mxu0
        %1715 = vdwg.mxu0
        %v1716 = vpack.c.bf16 %v1614, %v1613
        %v1717 = vpack.c.bf16 %v1616, %v1615
        %1718 = vmatprep.subr.bf16.mxu0 0
        %1719 = vmatpush1.bf16.msra.mxu0 0
        %1720 = vmatprep.subr.bf16.mxu0 0
        %1721 = vmatpush1.bf16.msra.mxu0 0
        %1722 = vmatprep.subr.bf16.mxu0 0
        %1723 = vmatpush1.bf16.msra.mxu0 0
        %1724 = vmatprep.subr.bf16.mxu0 0
        %1725 = vmatpush1.bf16.msra.mxu0 0
        %1726 = vmatprep.subr.bf16.mxu0 0
        %1727 = vmatpush1.bf16.msra.mxu0 0
        %1728 = vmatprep.subr.bf16.mxu0 0
        %1729 = vmatpush1.bf16.msra.mxu0 0
        %1730 = vmatprep.subr.bf16.mxu0 0
        %1731 = vmatpush1.bf16.msra.mxu0 %v1717
        %1732 = vmatprep.subr.bf16.mxu0 0
        %1733 = vmatpush1.bf16.msra.mxu0 %v1716
        %1734 = vmatprep.subr.bf16.mxu0 0
        %1735 = vmatpush2.bf16.msra.mxu0 0
        %1736 = vmatprep.subr.bf16.mxu0 0
        %1737 = vmatpush2.bf16.msra.mxu0 0
        %1738 = vmatprep.subr.bf16.mxu0 0
        %1739 = vmatpush2.bf16.msra.mxu0 0
        %1740 = vmatprep.subr.bf16.mxu0 0
        %1741 = vmatpush2.bf16.msra.mxu0 0
        %1742 = vmatprep.subr.bf16.mxu0 0
        %1743 = vmatpush2.bf16.msra.mxu0 0
        %1744 = vmatprep.subr.bf16.mxu0 0
        %1745 = vmatpush2.bf16.msra.mxu0 0
        %1746 = vmatprep.subr.bf16.mxu0 0
        %1747 = vmatpush2.bf16.msra.mxu0 0
        %1748 = vmatprep.subr.bf16.mxu0 0
        %1749 = vmatpush2.bf16.msra.mxu0 0
        %1750 = vmatprep.mubr.bf16.mxu0 0
        %1751 = vmatmul.mubr.bf16.gmra.mxu0 %v1673
        %v1752 = vpop.f32.mrf.mxu0
        %v1753 = vadd.f32 0.0, %v1752
        %v1754 = vpop.f32.mrf.mxu0
        %v1755 = vpop.f32.mrf.mxu0
        %v1756 = vadd.f32 0.0, %v1755
        %v1757 = vpop.f32.mrf.mxu0
        %1758 = vdwg.mxu0
        %v1759 = vpack.c.bf16 %v1664, %v1664
        %v1760 = vpack.c.bf16 %v1713, %v1710
        %v1762 = vsel %vm1058, %v1759, 0
        %v1765 = vsel %vm1058, %v1760, 0
        %1767 = vmatprep.subr.bf16.mxu0 0
        %1768 = vmatpush1.bf16.xpose.msra.mxu0 0
        %1769 = vmatprep.subr.bf16.mxu0 0
        %1770 = vmatpush1.bf16.xpose.msra.mxu0 0
        %1771 = vmatprep.subr.bf16.mxu0 0
        %1772 = vmatpush1.bf16.xpose.msra.mxu0 0
        %1773 = vmatprep.subr.bf16.mxu0 0
        %1774 = vmatpush1.bf16.xpose.msra.mxu0 0
        %1775 = vmatprep.subr.bf16.mxu0 0
        %1776 = vmatpush1.bf16.xpose.msra.mxu0 0
        %1777 = vmatprep.subr.bf16.mxu0 0
        %1778 = vmatpush1.bf16.xpose.msra.mxu0 0
        %1779 = vmatprep.subr.bf16.mxu0 0
        %1780 = vmatpush1.bf16.xpose.msra.mxu0 0
        %1781 = vmatprep.subr.bf16.mxu0 0
        %1782 = vmatpush1.bf16.xpose.msra.mxu0 %v1765
        %1783 = vmatprep.subr.bf16.mxu0 0
        %1784 = vmatpush2.bf16.xpose.msra.mxu0 0
        %1785 = vmatprep.subr.bf16.mxu0 0
        %1786 = vmatpush2.bf16.xpose.msra.mxu0 0
        %1787 = vmatprep.subr.bf16.mxu0 0
        %1788 = vmatpush2.bf16.xpose.msra.mxu0 0
        %1789 = vmatprep.subr.bf16.mxu0 0
        %1790 = vmatpush2.bf16.xpose.msra.mxu0 0
        %1791 = vmatprep.subr.bf16.mxu0 0
        %1792 = vmatpush2.bf16.xpose.msra.mxu0 0
        %1793 = vmatprep.subr.bf16.mxu0 0
        %1794 = vmatpush2.bf16.xpose.msra.mxu0 0
        %1795 = vmatprep.subr.bf16.mxu0 0
        %1796 = vmatpush2.bf16.xpose.msra.mxu0 0
        %1797 = vmatprep.subr.bf16.mxu0 0
        %1798 = vmatpush2.bf16.xpose.msra.mxu0 0
        %1799 = vmatprep.mubr.bf16.mxu0 0
        %1800 = vmatmul.mubr.bf16.gmra.mxu0 %v1762
        %v1801 = vpop.f32.mrf.mxu0
        %v1802 = vadd.f32 0.0, %v1801
        %v1803 = vpop.f32.mrf.mxu0
        %v1804 = vpop.f32.mrf.mxu0
        %v1805 = vpop.f32.mrf.mxu0
        %1806 = vdwg.mxu0
        %v1807 = vmul.f32 %v1802, 0.17677669
        %v1808 = vsel %vm1527, %v1807, -inf
        %1809 = vmax.xlane.f32.xlu0 %v1808
        %v1810 = vpop.xlane.xlu0 %1809
        %v1811 = vsub.f32 %v1807, %v1810
        %v1812 = vmul.f32 %v1811, 1.442695
        %v1813 = vpow.pop %v1812
        %v1814 = vsel %vm1527, %v1813, 0.0
        %1815 = vadd.xlane.f32.xlu0 %v1814
        %v1816 = vpop.xlane.xlu0 %1815
        %v1817 = vrcp.pop %v1816
        %v1818 = vmul.f32 %v1813, %v1817
        %1819 = vst.msk [vmem:[%s896] sm:$0xff] %vm1527, %v1818
        %v1820 = vpack.c.bf16 %v1818, %v1818
        %v1821 = vpack.c.bf16 %v1756, %v1753
        %v1823 = vsel %vm1527, %v1820, 0
        %1825 = vmatprep.subr.bf16.mxu0 0
        %1826 = vmatpush1.bf16.msra.mxu0 0
        %1827 = vmatprep.subr.bf16.mxu0 0
        %1828 = vmatpush1.bf16.msra.mxu0 0
        %1829 = vmatprep.subr.bf16.mxu0 0
        %1830 = vmatpush1.bf16.msra.mxu0 0
        %1831 = vmatprep.subr.bf16.mxu0 0
        %1832 = vmatpush1.bf16.msra.mxu0 0
        %1833 = vmatprep.subr.bf16.mxu0 0
        %1834 = vmatpush1.bf16.msra.mxu0 0
        %1835 = vmatprep.subr.bf16.mxu0 0
        %1836 = vmatpush1.bf16.msra.mxu0 0
        %1837 = vmatprep.subr.bf16.mxu0 0
        %1838 = vmatpush1.bf16.msra.mxu0 0
        %1839 = vmatprep.subr.bf16.mxu0 0
        %1840 = vmatpush1.bf16.msra.mxu0 %v1821
        %1841 = vmatprep.subr.bf16.mxu0 0
        %1842 = vmatpush2.bf16.msra.mxu0 0
        %1843 = vmatprep.subr.bf16.mxu0 0
        %1844 = vmatpush2.bf16.msra.mxu0 0
        %1845 = vmatprep.subr.bf16.mxu0 0
        %1846 = vmatpush2.bf16.msra.mxu0 0
        %1847 = vmatprep.subr.bf16.mxu0 0
        %1848 = vmatpush2.bf16.msra.mxu0 0
        %1849 = vmatprep.subr.bf16.mxu0 0
        %1850 = vmatpush2.bf16.msra.mxu0 0
        %1851 = vmatprep.subr.bf16.mxu0 0
        %1852 = vmatpush2.bf16.msra.mxu0 0
        %1853 = vmatprep.subr.bf16.mxu0 0
        %1854 = vmatpush2.bf16.msra.mxu0 0
        %1855 = vmatprep.subr.bf16.mxu0 0
        %1856 = vmatpush2.bf16.msra.mxu0 0
        %1857 = vmatprep.mubr.bf16.mxu0 0
        %1858 = vmatmul.mubr.bf16.gmra.mxu0 %v1823
        %v1859 = vpop.f32.mrf.mxu0
        %v1860 = vadd.f32 0.0, %v1859
        %v1861 = vpop.f32.mrf.mxu0
        %v1862 = vpop.f32.mrf.mxu0
        %v1863 = vpop.f32.mrf.mxu0
        %1864 = vdwg.mxu0
        %1866 = vrot.lane.b32.xlu0 %v1759, 120
        %v1867 = vpop.permute.xlu0 %1866
        %1869 = vrot.lane.b32.xlu0 %v1760, 120
        %v1870 = vpop.permute.xlu0 %1869
        %v1872 = vsel %vm1058, %v1867, 0
        %v1875 = vsel %vm1058, %v1870, 0
        %1877 = vmatprep.subr.bf16.mxu0 0
        %1878 = vmatpush1.bf16.xpose.msra.mxu0 0
        %1879 = vmatprep.subr.bf16.mxu0 0
        %1880 = vmatpush1.bf16.xpose.msra.mxu0 0
        %1881 = vmatprep.subr.bf16.mxu0 0
        %1882 = vmatpush1.bf16.xpose.msra.mxu0 0
        %1883 = vmatprep.subr.bf16.mxu0 0
        %1884 = vmatpush1.bf16.xpose.msra.mxu0 0
        %1885 = vmatprep.subr.bf16.mxu0 0
        %1886 = vmatpush1.bf16.xpose.msra.mxu0 0
        %1887 = vmatprep.subr.bf16.mxu0 0
        %1888 = vmatpush1.bf16.xpose.msra.mxu0 0
        %1889 = vmatprep.subr.bf16.mxu0 0
        %1890 = vmatpush1.bf16.xpose.msra.mxu0 0
        %1891 = vmatprep.subr.bf16.mxu0 0
        %1892 = vmatpush1.bf16.xpose.msra.mxu0 %v1875
        %1893 = vmatprep.subr.bf16.mxu0 0
        %1894 = vmatpush2.bf16.xpose.msra.mxu0 0
        %1895 = vmatprep.subr.bf16.mxu0 0
        %1896 = vmatpush2.bf16.xpose.msra.mxu0 0
        %1897 = vmatprep.subr.bf16.mxu0 0
        %1898 = vmatpush2.bf16.xpose.msra.mxu0 0
        %1899 = vmatprep.subr.bf16.mxu0 0
        %1900 = vmatpush2.bf16.xpose.msra.mxu0 0
        %1901 = vmatprep.subr.bf16.mxu0 0
        %1902 = vmatpush2.bf16.xpose.msra.mxu0 0
        %1903 = vmatprep.subr.bf16.mxu0 0
        %1904 = vmatpush2.bf16.xpose.msra.mxu0 0
        %1905 = vmatprep.subr.bf16.mxu0 0
        %1906 = vmatpush2.bf16.xpose.msra.mxu0 0
        %1907 = vmatprep.subr.bf16.mxu0 0
        %1908 = vmatpush2.bf16.xpose.msra.mxu0 0
        %1909 = vmatprep.mubr.bf16.mxu0 0
        %1910 = vmatmul.mubr.bf16.gmra.mxu0 %v1872
        %v1911 = vpop.f32.mrf.mxu0
        %v1912 = vadd.f32 0.0, %v1911
        %v1913 = vpop.f32.mrf.mxu0
        %v1914 = vpop.f32.mrf.mxu0
        %v1915 = vpop.f32.mrf.mxu0
        %1916 = vdwg.mxu0
        %v1917 = vmul.f32 %v1912, 0.17677669
        %v1918 = vsel %vm1527, %v1917, -inf
        %1919 = vmax.xlane.f32.xlu0 %v1918
        %v1920 = vpop.xlane.xlu0 %1919
        %v1921 = vsub.f32 %v1917, %v1920
        %v1922 = vmul.f32 %v1921, 1.442695
        %v1923 = vpow.pop %v1922
        %v1924 = vsel %vm1527, %v1923, 0.0
        %1925 = vadd.xlane.f32.xlu0 %v1924
        %v1926 = vpop.xlane.xlu0 %1925
        %v1927 = vrcp.pop %v1926
        %v1928 = vmul.f32 %v1923, %v1927
        %s1929 = scalar_lea.vmem %s896, 8 [#allocation20]
        %1930 = vst.msk [vmem:[%s1929] sm:$0xff] %vm1527, %v1928
        %v1931 = vpack.c.bf16 %v1928, %v1928
        %1933 = vrot.lane.b32.xlu0 %v1821, 120
        %v1934 = vpop.permute.xlu0 %1933
        %v1937 = vsel %vm1527, %v1931, 0
        %1939 = vmatprep.subr.bf16.mxu0 0
        %1940 = vmatpush1.bf16.msra.mxu0 0
        %1941 = vmatprep.subr.bf16.mxu0 0
        %1942 = vmatpush1.bf16.msra.mxu0 0
        %1943 = vmatprep.subr.bf16.mxu0 0
        %1944 = vmatpush1.bf16.msra.mxu0 0
        %1945 = vmatprep.subr.bf16.mxu0 0
        %1946 = vmatpush1.bf16.msra.mxu0 0
        %1947 = vmatprep.subr.bf16.mxu0 0
        %1948 = vmatpush1.bf16.msra.mxu0 0
        %1949 = vmatprep.subr.bf16.mxu0 0
        %1950 = vmatpush1.bf16.msra.mxu0 0
        %1951 = vmatprep.subr.bf16.mxu0 0
        %1952 = vmatpush1.bf16.msra.mxu0 0
        %1953 = vmatprep.subr.bf16.mxu0 0
        %1954 = vmatpush1.bf16.msra.mxu0 %v1934
        %1955 = vmatprep.subr.bf16.mxu0 0
        %1956 = vmatpush2.bf16.msra.mxu0 0
        %1957 = vmatprep.subr.bf16.mxu0 0
        %1958 = vmatpush2.bf16.msra.mxu0 0
        %1959 = vmatprep.subr.bf16.mxu0 0
        %1960 = vmatpush2.bf16.msra.mxu0 0
        %1961 = vmatprep.subr.bf16.mxu0 0
        %1962 = vmatpush2.bf16.msra.mxu0 0
        %1963 = vmatprep.subr.bf16.mxu0 0
        %1964 = vmatpush2.bf16.msra.mxu0 0
        %1965 = vmatprep.subr.bf16.mxu0 0
        %1966 = vmatpush2.bf16.msra.mxu0 0
        %1967 = vmatprep.subr.bf16.mxu0 0
        %1968 = vmatpush2.bf16.msra.mxu0 0
        %1969 = vmatprep.subr.bf16.mxu0 0
        %1970 = vmatpush2.bf16.msra.mxu0 0
        %1971 = vmatprep.mubr.bf16.mxu0 0
        %1972 = vmatmul.mubr.bf16.gmra.mxu0 %v1937
        %v1973 = vpop.f32.mrf.mxu0
        %v1974 = vadd.f32 0.0, %v1973
        %v1975 = vpop.f32.mrf.mxu0
        %v1976 = vpop.f32.mrf.mxu0
        %v1977 = vpop.f32.mrf.mxu0
        %1978 = vdwg.mxu0
        %1979 = vrot.lane.b32.xlu0 %v1759, 112
        %v1980 = vpop.permute.xlu0 %1979
        %1981 = vrot.lane.b32.xlu0 %v1760, 112
        %v1982 = vpop.permute.xlu0 %1981
        %v1984 = vsel %vm1058, %v1980, 0
        %v1987 = vsel %vm1058, %v1982, 0
        %1989 = vmatprep.subr.bf16.mxu0 0
        %1990 = vmatpush1.bf16.xpose.msra.mxu0 0
        %1991 = vmatprep.subr.bf16.mxu0 0
        %1992 = vmatpush1.bf16.xpose.msra.mxu0 0
        %1993 = vmatprep.subr.bf16.mxu0 0
        %1994 = vmatpush1.bf16.xpose.msra.mxu0 0
        %1995 = vmatprep.subr.bf16.mxu0 0
        %1996 = vmatpush1.bf16.xpose.msra.mxu0 0
        %1997 = vmatprep.subr.bf16.mxu0 0
        %1998 = vmatpush1.bf16.xpose.msra.mxu0 0
        %1999 = vmatprep.subr.bf16.mxu0 0
        %2000 = vmatpush1.bf16.xpose.msra.mxu0 0
        %2001 = vmatprep.subr.bf16.mxu0 0
        %2002 = vmatpush1.bf16.xpose.msra.mxu0 0
        %2003 = vmatprep.subr.bf16.mxu0 0
        %2004 = vmatpush1.bf16.xpose.msra.mxu0 %v1987
        %2005 = vmatprep.subr.bf16.mxu0 0
        %2006 = vmatpush2.bf16.xpose.msra.mxu0 0
        %2007 = vmatprep.subr.bf16.mxu0 0
        %2008 = vmatpush2.bf16.xpose.msra.mxu0 0
        %2009 = vmatprep.subr.bf16.mxu0 0
        %2010 = vmatpush2.bf16.xpose.msra.mxu0 0
        %2011 = vmatprep.subr.bf16.mxu0 0
        %2012 = vmatpush2.bf16.xpose.msra.mxu0 0
        %2013 = vmatprep.subr.bf16.mxu0 0
        %2014 = vmatpush2.bf16.xpose.msra.mxu0 0
        %2015 = vmatprep.subr.bf16.mxu0 0
        %2016 = vmatpush2.bf16.xpose.msra.mxu0 0
        %2017 = vmatprep.subr.bf16.mxu0 0
        %2018 = vmatpush2.bf16.xpose.msra.mxu0 0
        %2019 = vmatprep.subr.bf16.mxu0 0
        %2020 = vmatpush2.bf16.xpose.msra.mxu0 0
        %2021 = vmatprep.mubr.bf16.mxu0 0
        %2022 = vmatmul.mubr.bf16.gmra.mxu0 %v1984
        %v2023 = vpop.f32.mrf.mxu0
        %v2024 = vadd.f32 0.0, %v2023
        %v2025 = vpop.f32.mrf.mxu0
        %v2026 = vpop.f32.mrf.mxu0
        %v2027 = vpop.f32.mrf.mxu0
        %2028 = vdwg.mxu0
        %v2029 = vmul.f32 %v2024, 0.17677669
        %v2030 = vsel %vm1527, %v2029, -inf
        %2031 = vmax.xlane.f32.xlu0 %v2030
        %v2032 = vpop.xlane.xlu0 %2031
        %v2033 = vsub.f32 %v2029, %v2032
        %v2034 = vmul.f32 %v2033, 1.442695
        %v2035 = vpow.pop %v2034
        %v2036 = vsel %vm1527, %v2035, 0.0
        %2037 = vadd.xlane.f32.xlu0 %v2036
        %v2038 = vpop.xlane.xlu0 %2037
        %v2039 = vrcp.pop %v2038
        %v2040 = vmul.f32 %v2035, %v2039
        %s2041 = scalar_lea.vmem %s896, 16 [#allocation20]
        %2042 = vst.msk [vmem:[%s2041] sm:$0xff] %vm1527, %v2040
        %v2043 = vpack.c.bf16 %v2040, %v2040
        %2044 = vrot.lane.b32.xlu0 %v1821, 112
        %v2045 = vpop.permute.xlu0 %2044
        %v2048 = vsel %vm1527, %v2043, 0
        %2050 = vmatprep.subr.bf16.mxu0 0
        %2051 = vmatpush1.bf16.msra.mxu0 0
        %2052 = vmatprep.subr.bf16.mxu0 0
        %2053 = vmatpush1.bf16.msra.mxu0 0
        %2054 = vmatprep.subr.bf16.mxu0 0
        %2055 = vmatpush1.bf16.msra.mxu0 0
        %2056 = vmatprep.subr.bf16.mxu0 0
        %2057 = vmatpush1.bf16.msra.mxu0 0
        %2058 = vmatprep.subr.bf16.mxu0 0
        %2059 = vmatpush1.bf16.msra.mxu0 0
        %2060 = vmatprep.subr.bf16.mxu0 0
        %2061 = vmatpush1.bf16.msra.mxu0 0
        %2062 = vmatprep.subr.bf16.mxu0 0
        %2063 = vmatpush1.bf16.msra.mxu0 0
        %2064 = vmatprep.subr.bf16.mxu0 0
        %2065 = vmatpush1.bf16.msra.mxu0 %v2045
        %2066 = vmatprep.subr.bf16.mxu0 0
        %2067 = vmatpush2.bf16.msra.mxu0 0
        %2068 = vmatprep.subr.bf16.mxu0 0
        %2069 = vmatpush2.bf16.msra.mxu0 0
        %2070 = vmatprep.subr.bf16.mxu0 0
        %2071 = vmatpush2.bf16.msra.mxu0 0
        %2072 = vmatprep.subr.bf16.mxu0 0
        %2073 = vmatpush2.bf16.msra.mxu0 0
        %2074 = vmatprep.subr.bf16.mxu0 0
        %2075 = vmatpush2.bf16.msra.mxu0 0
        %2076 = vmatprep.subr.bf16.mxu0 0
        %2077 = vmatpush2.bf16.msra.mxu0 0
        %2078 = vmatprep.subr.bf16.mxu0 0
        %2079 = vmatpush2.bf16.msra.mxu0 0
        %2080 = vmatprep.subr.bf16.mxu0 0
        %2081 = vmatpush2.bf16.msra.mxu0 0
        %2082 = vmatprep.mubr.bf16.mxu0 0
        %2083 = vmatmul.mubr.bf16.gmra.mxu0 %v2048
        %v2084 = vpop.f32.mrf.mxu0
        %v2085 = vadd.f32 0.0, %v2084
        %v2086 = vpop.f32.mrf.mxu0
        %v2087 = vpop.f32.mrf.mxu0
        %v2088 = vpop.f32.mrf.mxu0
        %2089 = vdwg.mxu0
        %2090 = vrot.lane.b32.xlu0 %v1759, 104
        %v2091 = vpop.permute.xlu0 %2090
        %2092 = vrot.lane.b32.xlu0 %v1760, 104
        %v2093 = vpop.permute.xlu0 %2092
        %v2095 = vsel %vm1058, %v2091, 0
        %v2098 = vsel %vm1058, %v2093, 0
        %2100 = vmatprep.subr.bf16.mxu0 0
        %2101 = vmatpush1.bf16.xpose.msra.mxu0 0
        %2102 = vmatprep.subr.bf16.mxu0 0
        %2103 = vmatpush1.bf16.xpose.msra.mxu0 0
        %2104 = vmatprep.subr.bf16.mxu0 0
        %2105 = vmatpush1.bf16.xpose.msra.mxu0 0
        %2106 = vmatprep.subr.bf16.mxu0 0
        %2107 = vmatpush1.bf16.xpose.msra.mxu0 0
        %2108 = vmatprep.subr.bf16.mxu0 0
        %2109 = vmatpush1.bf16.xpose.msra.mxu0 0
        %2110 = vmatprep.subr.bf16.mxu0 0
        %2111 = vmatpush1.bf16.xpose.msra.mxu0 0
        %2112 = vmatprep.subr.bf16.mxu0 0
        %2113 = vmatpush1.bf16.xpose.msra.mxu0 0
        %2114 = vmatprep.subr.bf16.mxu0 0
        %2115 = vmatpush1.bf16.xpose.msra.mxu0 %v2098
        %2116 = vmatprep.subr.bf16.mxu0 0
        %2117 = vmatpush2.bf16.xpose.msra.mxu0 0
        %2118 = vmatprep.subr.bf16.mxu0 0
        %2119 = vmatpush2.bf16.xpose.msra.mxu0 0
        %2120 = vmatprep.subr.bf16.mxu0 0
        %2121 = vmatpush2.bf16.xpose.msra.mxu0 0
        %2122 = vmatprep.subr.bf16.mxu0 0
        %2123 = vmatpush2.bf16.xpose.msra.mxu0 0
        %2124 = vmatprep.subr.bf16.mxu0 0
        %2125 = vmatpush2.bf16.xpose.msra.mxu0 0
        %2126 = vmatprep.subr.bf16.mxu0 0
        %2127 = vmatpush2.bf16.xpose.msra.mxu0 0
        %2128 = vmatprep.subr.bf16.mxu0 0
        %2129 = vmatpush2.bf16.xpose.msra.mxu0 0
        %2130 = vmatprep.subr.bf16.mxu0 0
        %2131 = vmatpush2.bf16.xpose.msra.mxu0 0
        %2132 = vmatprep.mubr.bf16.mxu0 0
        %2133 = vmatmul.mubr.bf16.gmra.mxu0 %v2095
        %v2134 = vpop.f32.mrf.mxu0
        %v2135 = vadd.f32 0.0, %v2134
        %v2136 = vpop.f32.mrf.mxu0
        %v2137 = vpop.f32.mrf.mxu0
        %v2138 = vpop.f32.mrf.mxu0
        %2139 = vdwg.mxu0
        %v2140 = vmul.f32 %v2135, 0.17677669
        %v2141 = vsel %vm1527, %v2140, -inf
        %2142 = vmax.xlane.f32.xlu0 %v2141
        %v2143 = vpop.xlane.xlu0 %2142
        %v2144 = vsub.f32 %v2140, %v2143
        %v2145 = vmul.f32 %v2144, 1.442695
        %v2146 = vpow.pop %v2145
        %v2147 = vsel %vm1527, %v2146, 0.0
        %2148 = vadd.xlane.f32.xlu0 %v2147
        %v2149 = vpop.xlane.xlu0 %2148
        %v2150 = vrcp.pop %v2149
        %v2151 = vmul.f32 %v2146, %v2150
        %s2152 = scalar_lea.vmem %s896, 24 [#allocation20]
        %2153 = vst.msk [vmem:[%s2152] sm:$0xff] %vm1527, %v2151
        %v2154 = vpack.c.bf16 %v2151, %v2151
        %2155 = vrot.lane.b32.xlu0 %v1821, 104
        %v2156 = vpop.permute.xlu0 %2155
        %v2159 = vsel %vm1527, %v2154, 0
        %2161 = vmatprep.subr.bf16.mxu0 0
        %2162 = vmatpush1.bf16.msra.mxu0 0
        %2163 = vmatprep.subr.bf16.mxu0 0
        %2164 = vmatpush1.bf16.msra.mxu0 0
        %2165 = vmatprep.subr.bf16.mxu0 0
        %2166 = vmatpush1.bf16.msra.mxu0 0
        %2167 = vmatprep.subr.bf16.mxu0 0
        %2168 = vmatpush1.bf16.msra.mxu0 0
        %2169 = vmatprep.subr.bf16.mxu0 0
        %2170 = vmatpush1.bf16.msra.mxu0 0
        %2171 = vmatprep.subr.bf16.mxu0 0
        %2172 = vmatpush1.bf16.msra.mxu0 0
        %2173 = vmatprep.subr.bf16.mxu0 0
        %2174 = vmatpush1.bf16.msra.mxu0 0
        %2175 = vmatprep.subr.bf16.mxu0 0
        %2176 = vmatpush1.bf16.msra.mxu0 %v2156
        %2177 = vmatprep.subr.bf16.mxu0 0
        %2178 = vmatpush2.bf16.msra.mxu0 0
        %2179 = vmatprep.subr.bf16.mxu0 0
        %2180 = vmatpush2.bf16.msra.mxu0 0
        %2181 = vmatprep.subr.bf16.mxu0 0
        %2182 = vmatpush2.bf16.msra.mxu0 0
        %2183 = vmatprep.subr.bf16.mxu0 0
        %2184 = vmatpush2.bf16.msra.mxu0 0
        %2185 = vmatprep.subr.bf16.mxu0 0
        %2186 = vmatpush2.bf16.msra.mxu0 0
        %2187 = vmatprep.subr.bf16.mxu0 0
        %2188 = vmatpush2.bf16.msra.mxu0 0
        %2189 = vmatprep.subr.bf16.mxu0 0
        %2190 = vmatpush2.bf16.msra.mxu0 0
        %2191 = vmatprep.subr.bf16.mxu0 0
        %2192 = vmatpush2.bf16.msra.mxu0 0
        %2193 = vmatprep.mubr.bf16.mxu0 0
        %2194 = vmatmul.mubr.bf16.gmra.mxu0 %v2159
        %v2195 = vpop.f32.mrf.mxu0
        %v2196 = vadd.f32 0.0, %v2195
        %v2197 = vpop.f32.mrf.mxu0
        %v2198 = vpop.f32.mrf.mxu0
        %v2199 = vpop.f32.mrf.mxu0
        %2200 = vdwg.mxu0
        %2202 = vrot.lane.b32.xlu0 %v1974, 8
        %v2203 = vpop.permute.xlu0 %2202
        %2206 = vrot.lane.b32.xlu0 %v2085, 16
        %v2207 = vpop.permute.xlu0 %2206
        %2210 = vrot.lane.b32.xlu0 %v2196, 24
        %v2211 = vpop.permute.xlu0 %2210
        %v2213 = vsel %vm1058, %v1860, %v2203
        %v2214 = vsel %vm1527, %v2213, %v2207
        %v2215 = vsel %vm1529, %v2214, %v2211
        %v2216 = vpack.c.bf16 %v2215, %v2215
        %v2217 = vpack.c.bf16 %v1618, %v1617
        %v2218 = vpack.c.bf16 %v1620, %v1619
        %v2220 = vsel %vm928, %v2216, 0
        %2222 = vmatprep.subr.bf16.mxu0 0
        %2223 = vmatpush1.bf16.msra.mxu0 0
        %2224 = vmatprep.subr.bf16.mxu0 0
        %2225 = vmatpush1.bf16.msra.mxu0 0
        %2226 = vmatprep.subr.bf16.mxu0 0
        %2227 = vmatpush1.bf16.msra.mxu0 0
        %2228 = vmatprep.subr.bf16.mxu0 0
        %2229 = vmatpush1.bf16.msra.mxu0 0
        %2230 = vmatprep.subr.bf16.mxu0 0
        %2231 = vmatpush1.bf16.msra.mxu0 0
        %2232 = vmatprep.subr.bf16.mxu0 0
        %2233 = vmatpush1.bf16.msra.mxu0 0
        %2234 = vmatprep.subr.bf16.mxu0 0
        %2235 = vmatpush1.bf16.msra.mxu0 %v2218
        %2236 = vmatprep.subr.bf16.mxu0 0
        %2237 = vmatpush1.bf16.msra.mxu0 %v2217
        %2238 = vmatprep.subr.bf16.mxu0 0
        %2239 = vmatpush2.bf16.msra.mxu0 0
        %2240 = vmatprep.subr.bf16.mxu0 0
        %2241 = vmatpush2.bf16.msra.mxu0 0
        %2242 = vmatprep.subr.bf16.mxu0 0
        %2243 = vmatpush2.bf16.msra.mxu0 0
        %2244 = vmatprep.subr.bf16.mxu0 0
        %2245 = vmatpush2.bf16.msra.mxu0 0
        %2246 = vmatprep.subr.bf16.mxu0 0
        %2247 = vmatpush2.bf16.msra.mxu0 0
        %2248 = vmatprep.subr.bf16.mxu0 0
        %2249 = vmatpush2.bf16.msra.mxu0 0
        %2250 = vmatprep.subr.bf16.mxu0 0
        %2251 = vmatpush2.bf16.msra.mxu0 0
        %2252 = vmatprep.subr.bf16.mxu0 0
        %2253 = vmatpush2.bf16.msra.mxu0 0
        %2254 = vmatprep.mubr.bf16.mxu0 0
        %2255 = vmatmul.mubr.bf16.gmra.mxu0 %v2220
        %v2256 = vpop.f32.mrf.mxu0
        %v2257 = vadd.f32 %v1604, %v2256
        %v2258 = vpop.f32.mrf.mxu0
        %v2259 = vpop.f32.mrf.mxu0
        %v2260 = vpop.f32.mrf.mxu0
        %2261 = vdwg.mxu0
        %v2262 = vsel %vm928, %v2257, 0.0
        %2263 = vadd.xlane.f32.xlu0 %v2262
        %v2264 = vpop.xlane.xlu0 %2263
        %v2265 = vmul.f32 %v2264, %v1580
        %v2266 = vsub.f32 %v2257, %v2265
        %v2267 = vmul.f32 %v2266, %v2266
        %v2268 = vsel %vm928, %v2267, 0.0
        %2269 = vadd.xlane.f32.xlu0 %v2268
        %v2270 = vpop.xlane.xlu0 %2269
        %v2271 = vmul.f32 %v2270, %v1580
        %v2272 = vadd.f32 %v2271, 1e-05
        %v2273 = vrsqrt.pop %v2272
        %v2274 = vmul.f32 %v2266, %v2273
        %v2276 = vlaneseq
        %v2277 = vshrl.u32 %v2276, 7
        %v2278 = vsub.s32 0, %v2277
        %v2279 = vrot.slane %v1621, %v2278
        %v2281 = vmul.f32 %v2274, %v2279
        %v2283 = vlaneseq
        %v2284 = vshrl.u32 %v2283, 7
        %v2285 = vsub.s32 0, %v2284
        %v2286 = vrot.slane %v1622, %v2285
        %v2288 = vadd.f32 %v2281, %v2286
        %v2289 = vpack.c.bf16 %v2288, %v2288
        %v2290 = vld [vmem:[#allocation16] sm:$0xff]
        %v2291 = vld [vmem:[#allocation16 + $0x8] sm:$0xff]
        %v2292 = vld [vmem:[#allocation16 + $0x10] sm:$0xff]
        %v2293 = vld [vmem:[#allocation16 + $0x18] sm:$0xff]
        %v2294 = vpack.c.bf16 %v2291, %v2290
        %v2295 = vpack.c.bf16 %v2293, %v2292
        %v2296 = vld [vmem:[%s16] sm:$0x1]
        %v2298 = vlaneseq
        %v2299 = vshrl.u32 %v2298, 7
        %v2300 = vsub.s32 0, %v2299
        %v2301 = vrot.slane %v2296, %v2300
        %v2304 = vsel %vm928, %v2289, 0
        %2306 = vmatprep.subr.bf16.mxu0 0
        %2307 = vmatpush1.bf16.msra.mxu0 0
        %2308 = vmatprep.subr.bf16.mxu0 0
        %2309 = vmatpush1.bf16.msra.mxu0 0
        %2310 = vmatprep.subr.bf16.mxu0 0
        %2311 = vmatpush1.bf16.msra.mxu0 0
        %2312 = vmatprep.subr.bf16.mxu0 0
        %2313 = vmatpush1.bf16.msra.mxu0 0
        %2314 = vmatprep.subr.bf16.mxu0 0
        %2315 = vmatpush1.bf16.msra.mxu0 0
        %2316 = vmatprep.subr.bf16.mxu0 0
        %2317 = vmatpush1.bf16.msra.mxu0 0
        %2318 = vmatprep.subr.bf16.mxu0 0
        %2319 = vmatpush1.bf16.msra.mxu0 %v2295
        %2320 = vmatprep.subr.bf16.mxu0 0
        %2321 = vmatpush1.bf16.msra.mxu0 %v2294
        %2322 = vmatprep.subr.bf16.mxu0 0
        %2323 = vmatpush2.bf16.msra.mxu0 0
        %2324 = vmatprep.subr.bf16.mxu0 0
        %2325 = vmatpush2.bf16.msra.mxu0 0
        %2326 = vmatprep.subr.bf16.mxu0 0
        %2327 = vmatpush2.bf16.msra.mxu0 0
        %2328 = vmatprep.subr.bf16.mxu0 0
        %2329 = vmatpush2.bf16.msra.mxu0 0
        %2330 = vmatprep.subr.bf16.mxu0 0
        %2331 = vmatpush2.bf16.msra.mxu0 0
        %2332 = vmatprep.subr.bf16.mxu0 0
        %2333 = vmatpush2.bf16.msra.mxu0 0
        %2334 = vmatprep.subr.bf16.mxu0 0
        %2335 = vmatpush2.bf16.msra.mxu0 0
        %2336 = vmatprep.subr.bf16.mxu0 0
        %2337 = vmatpush2.bf16.msra.mxu0 0
        %2338 = vmatprep.mubr.bf16.mxu0 0
        %2339 = vmatmul.mubr.bf16.gmra.mxu0 %v2304
        %v2340 = vpop.f32.mrf.mxu0
        %v2341 = vadd.f32 %v2301, %v2340
        %v2342 = vpop.f32.mrf.mxu0
        %v2343 = vpop.f32.mrf.mxu0
        %v2344 = vpop.f32.mrf.mxu0
        %2345 = vdwg.mxu0
        %v2346 = vmax.f32 %v2341, 0.0
        %v2347 = vpack.c.bf16 %v2346, %v2346
        %v2348 = vld [vmem:[%s17] sm:$0xff]
        %v2349 = vld [vmem:[%s17 + $0x8] sm:$0xff]
        %v2350 = vld [vmem:[%s17 + $0x10] sm:$0xff]
        %v2351 = vld [vmem:[%s17 + $0x18] sm:$0xff]
        %v2352 = vld [vmem:[%s17 + $0x20] sm:$0xff]
        %v2353 = vld [vmem:[%s17 + $0x28] sm:$0xff]
        %v2354 = vld [vmem:[%s17 + $0x30] sm:$0xff]
        %v2355 = vld [vmem:[%s17 + $0x38] sm:$0xff]
        %v2356 = vpack.c.bf16 %v2349, %v2348
        %v2357 = vpack.c.bf16 %v2351, %v2350
        %v2358 = vpack.c.bf16 %v2353, %v2352
        %v2359 = vpack.c.bf16 %v2355, %v2354
        %v2360 = vld [vmem:[%s18] sm:$0x1]
        %v2362 = vlaneseq
        %v2363 = vshrl.u32 %v2362, 7
        %v2364 = vsub.s32 0, %v2363
        %v2365 = vrot.slane %v2360, %v2364
        %vm2367 = vcmask 523264
        %v2369 = vsel %vm2367, %v2347, 0
        %2371 = vmatprep.subr.bf16.mxu0 0
        %2372 = vmatpush1.bf16.msra.mxu0 0
        %2373 = vmatprep.subr.bf16.mxu0 0
        %2374 = vmatpush1.bf16.msra.mxu0 0
        %2375 = vmatprep.subr.bf16.mxu0 0
        %2376 = vmatpush1.bf16.msra.mxu0 0
        %2377 = vmatprep.subr.bf16.mxu0 0
        %2378 = vmatpush1.bf16.msra.mxu0 0
        %2379 = vmatprep.subr.bf16.mxu0 0
        %2380 = vmatpush1.bf16.msra.mxu0 %v2359
        %2381 = vmatprep.subr.bf16.mxu0 0
        %2382 = vmatpush1.bf16.msra.mxu0 %v2358
        %2383 = vmatprep.subr.bf16.mxu0 0
        %2384 = vmatpush1.bf16.msra.mxu0 %v2357
        %2385 = vmatprep.subr.bf16.mxu0 0
        %2386 = vmatpush1.bf16.msra.mxu0 %v2356
        %2387 = vmatprep.subr.bf16.mxu0 0
        %2388 = vmatpush2.bf16.msra.mxu0 0
        %2389 = vmatprep.subr.bf16.mxu0 0
        %2390 = vmatpush2.bf16.msra.mxu0 0
        %2391 = vmatprep.subr.bf16.mxu0 0
        %2392 = vmatpush2.bf16.msra.mxu0 0
        %2393 = vmatprep.subr.bf16.mxu0 0
        %2394 = vmatpush2.bf16.msra.mxu0 0
        %2395 = vmatprep.subr.bf16.mxu0 0
        %2396 = vmatpush2.bf16.msra.mxu0 0
        %2397 = vmatprep.subr.bf16.mxu0 0
        %2398 = vmatpush2.bf16.msra.mxu0 0
        %2399 = vmatprep.subr.bf16.mxu0 0
        %2400 = vmatpush2.bf16.msra.mxu0 0
        %2401 = vmatprep.subr.bf16.mxu0 0
        %2402 = vmatpush2.bf16.msra.mxu0 0
        %2403 = vmatprep.mubr.bf16.mxu0 0
        %2404 = vmatmul.mubr.bf16.gmra.mxu0 %v2369
        %v2405 = vpop.f32.mrf.mxu0
        %v2406 = vadd.f32 %v2365, %v2405
        %v2407 = vpop.f32.mrf.mxu0
        %v2408 = vpop.f32.mrf.mxu0
        %v2409 = vpop.f32.mrf.mxu0
        %2410 = vdwg.mxu0
        %v2411 = vadd.f32 %v2406, %v2288
        %v2412 = vld [vmem:[%s19] sm:$0x1]
        %v2413 = vld [vmem:[%s20] sm:$0x1]
        %v2414 = vsel %vm928, %v2411, 0.0
        %2415 = vadd.xlane.f32.xlu0 %v2414
        %v2416 = vpop.xlane.xlu0 %2415
        %v2417 = vmul.f32 %v2416, %v1580
        %v2418 = vsub.f32 %v2411, %v2417
        %v2419 = vmul.f32 %v2418, %v2418
        %v2420 = vsel %vm928, %v2419, 0.0
        %2421 = vadd.xlane.f32.xlu0 %v2420
        %v2422 = vpop.xlane.xlu0 %2421
        %v2423 = vmul.f32 %v2422, %v1580
        %v2424 = vadd.f32 %v2423, 1e-05
        %v2425 = vrsqrt.pop %v2424
        %v2426 = vmul.f32 %v2418, %v2425
        %v2428 = vlaneseq
        %v2429 = vshrl.u32 %v2428, 7
        %v2430 = vsub.s32 0, %v2429
        %v2431 = vrot.slane %v2412, %v2430
        %v2433 = vmul.f32 %v2426, %v2431
        %v2435 = vlaneseq
        %v2436 = vshrl.u32 %v2435, 7
        %v2437 = vsub.s32 0, %v2436
        %v2438 = vrot.slane %v2413, %v2437
        %v2440 = vadd.f32 %v2433, %v2438
        %2441 = vst.msk [vmem:[%s882] sm:$0xff] %vm928, %v2440
        %s2442 = sand.u32 %s514, 1
        %s2443 = scalar_lea.sflag [#allocation4], %s2442
        %s2444 = sand.u32 %s514, 1
        %s2445 = smul.addr %s2444, 8
        %s2446 = scalar_lea.vmem [#allocation17], %s2445
        %s2447 = sand.u32 %s50, 1
        %s2448 = scalar_lea.sflag [#allocation19], %s2447
        %s2449 = sand.u32 %s540, 1
        %s2450 = smul.addr %s2449, 32
        %s2451 = scalar_lea.vmem [#allocation18], %s2450
        %s2452 = sand.u32 %s50, 1
        %s2453 = scalar_lea.sflag [#allocation19], %s2452
        %s2454 = sand.u32 %s566, 1
        %s2455 = smul.addr %s2454, 32
        %s2456 = scalar_lea.vmem [#allocation20], %s2455
        // Predicated region
        $region141: #{tpu_custom_call.1} parent=103 // pred_check
          %p2457 = pneg %p524
        $region142: #{tpu_custom_call.1} parent=103 // pred_check_branch
          %2459 = sbr.rel (%p2457) target = $region144
        $region143: #{tpu_custom_call.1} parent=103 // pred_region
          %s2461 = ssub.s32 128, 128
          %2462 = vsyncadd %s2443, %s2461
          %s2463 = smul.addr %s50, 128
          %s2464 = scalar_lea.hbm %s21, %s2463
          %s2466 = sshll.u32 %s2446, 4
          %s2467 = int_to_ptr.vmem [resolvable:$true] %s2466
          %2469 = dma.vmem_to_hbm [thread:$0]  %s2467, 128, %s2464, %s2443
        $region144: #{tpu_custom_call.1} parent=103 // pred_fallthru
          _
        // Predicated region
        $region145: #{tpu_custom_call.1} parent=103 // pred_check
          %p2470 = pneg %p550
        $region146: #{tpu_custom_call.1} parent=103 // pred_check_branch
          %2472 = sbr.rel (%p2470) target = $region148
        $region147: #{tpu_custom_call.1} parent=103 // pred_region
          %s2474 = ssub.s32 512, 512
          %2475 = vsyncadd %s2448, %s2474
          %s2476 = smul.addr %s50, 128
          %s2477 = scalar_lea.hbm %s22, %s2476
          %s2478 = sshll.u32 %s2451, 4
          %s2479 = int_to_ptr.vmem [resolvable:$true] %s2478
          %2484 = dma.vmem_to_hbm [thread:$0]  %s2479, 512, %s2477, %s2448, 128, 256, 8
        $region148: #{tpu_custom_call.1} parent=103 // pred_fallthru
          _
        // Predicated region
        $region149: #{tpu_custom_call.1} parent=103 // pred_check
          %p2485 = pneg %p576
        $region150: #{tpu_custom_call.1} parent=103 // pred_check_branch
          %2487 = sbr.rel (%p2485) target = $region152
        $region151: #{tpu_custom_call.1} parent=103 // pred_region
          %s2489 = ssub.s32 512, 512
          %2490 = vsyncadd %s2453, %s2489
          %s2491 = smul.addr %s50, 128
          %s2492 = scalar_lea.hbm %s23, %s2491
          %s2493 = sshll.u32 %s2456, 4
          %s2494 = int_to_ptr.vmem [resolvable:$true] %s2493
          %2499 = dma.vmem_to_hbm [thread:$0]  %s2494, 512, %s2492, %s2453, 128, 256, 8
        $region152: #{tpu_custom_call.1} parent=103 // pred_fallthru
          _
      $region104: #{tpu_custom_call.1} parent=5 // pred_fallthru
        _
      %p2500 = scmp.le.s32.totalorder 2, %s45
      // Predicated region
      $region153: #{tpu_custom_call.1} parent=5 // pred_check
        %p2501 = pneg %p2500
      $region154: #{tpu_custom_call.1} parent=5 // pred_check_branch
        %2503 = sbr.rel (%p2501) target = $region156
      $region155: #{tpu_custom_call.1} parent=5 // pred_region
        %s2504 = ssub.s32 %s45, 2
        // Predicated region
        $region157: #{tpu_custom_call.1} parent=155 // pred_check
          %p2505 = pneg %p530
        $region158: #{tpu_custom_call.1} parent=155 // pred_check_branch
          %2507 = sbr.rel (%p2505) target = $region160
        $region159: #{tpu_custom_call.1} parent=155 // pred_region
          %s2508 = sand.u32 %s515, 1
          %s2509 = scalar_lea.sflag [#allocation4], %s2508
          %s2510 = sand.u32 %s515, 1
          %s2511 = smul.addr %s2510, 8
          %s2512 = scalar_lea.vmem [#allocation17], %s2511
          %2513 = dma.done %s2509, 128
        $region160: #{tpu_custom_call.1} parent=155 // pred_fallthru
          _
        // Predicated region
        $region161: #{tpu_custom_call.1} parent=155 // pred_check
          %p2514 = pneg %p556
        $region162: #{tpu_custom_call.1} parent=155 // pred_check_branch
          %2516 = sbr.rel (%p2514) target = $region164
        $region163: #{tpu_custom_call.1} parent=155 // pred_region
          %s2517 = sand.u32 %s51, 1
          %s2518 = scalar_lea.sflag [#allocation19], %s2517
          %s2519 = sand.u32 %s541, 1
          %s2520 = smul.addr %s2519, 32
          %s2521 = scalar_lea.vmem [#allocation18], %s2520
          %2522 = dma.done %s2518, 512
        $region164: #{tpu_custom_call.1} parent=155 // pred_fallthru
          _
        // Predicated region
        $region165: #{tpu_custom_call.1} parent=155 // pred_check
          %p2523 = pneg %p582
        $region166: #{tpu_custom_call.1} parent=155 // pred_check_branch
          %2525 = sbr.rel (%p2523) target = $region168
        $region167: #{tpu_custom_call.1} parent=155 // pred_region
          %s2526 = sand.u32 %s51, 1
          %s2527 = scalar_lea.sflag [#allocation19], %s2526
          %s2528 = sand.u32 %s567, 1
          %s2529 = smul.addr %s2528, 32
          %s2530 = scalar_lea.vmem [#allocation20], %s2529
          %2531 = dma.done %s2527, 512
        $region168: #{tpu_custom_call.1} parent=155 // pred_fallthru
          _
      $region156: #{tpu_custom_call.1} parent=5 // pred_fallthru
        _
    $region6: #{tpu_custom_call.1} parent=1 // loop_footer
      %s49 = sadd.s32 1, %s45
    $region7: #{tpu_custom_call.1} parent=1 // loop_footer_branch
      %44 = sbr.rel target = $region3
    $region8: #{tpu_custom_call.1} parent=1 // loop_exit
      _
    %2532 = vsyncpa [#allocation3], 1
    %s2533 = scalar_lea.sflag [#allocation3], 1
    %2534 = vsyncpa %s2533, 1
    %2535 = vsyncpa [#allocation6], 1
    %s2536 = scalar_lea.sflag [#allocation6], 1
    %2537 = vsyncpa %s2536, 1
    %2538 = vsyncpa [#allocation9], 1
    %2539 = vsyncpa [#allocation12], 1
    %2540 = vsyncpa [#allocation15], 1
    %2541 = vsyncpa [#allocation4], 1
    %s2542 = scalar_lea.sflag [#allocation4], 1
    %2543 = vsyncpa %s2542, 1
    %2544 = vsyncpa [#allocation19], 1
    %s2545 = scalar_lea.sflag [#allocation19], 1
    %2546 = vsyncpa %s2545, 1

</llo_original>
